<compile_context>
chip_gen: v6e
topology: v6e:2x2x1
jax: 0.10.0
libtpu: 0.0.40
codegen_flags: <defaults>
</compile_context>

<pallas_src>
import jax
import jax.numpy as jnp
from jax.experimental import pallas as pl
from jax.experimental.pallas import tpu as pltpu

INPUT_BITS = 256
H1 = 512
H2 = 256
OUT = 1


def _leaky_relu(x, slope=0.2):
    # slope < 1  =>  leaky_relu(x) == max(x, slope*x); 2 VALU ops, no select.
    return jnp.maximum(x, slope * x)


def discriminator_kernel(x_ref, w1_ref, b1_ref, w2_ref, b2_ref, w3t_ref, b3_ref,
                         o_ref):
    """Forward pass for one batch tile; all operands resident in VMEM/SMEM."""
    # x arrives in f32 straight from HBM; cast to bf16 on the VPU here instead
    # of a separate wrapper-side XLA cast pass.
    x = x_ref[...].astype(jnp.bfloat16)                               # (TB, 256)

    # Layer 1: (TB, 256) @ (256, 512) on the MXU, f32 accumulation.
    h1 = jnp.dot(x, w1_ref[...], preferred_element_type=jnp.float32)
    h1 = _leaky_relu(h1 + b1_ref[...])                                # f32

    # Layer 2: (TB, 512) @ (512, 256).
    h2 = jnp.dot(h1.astype(jnp.bfloat16), w2_ref[...],
                 preferred_element_type=jnp.float32)
    h2 = _leaky_relu(h2 + b2_ref[...])                                # f32

    # Layer 3 (256 -> 1): plain N=1 matmul against w3.T (256, 1).  No feature-
    # axis einsum -> no XLU transpose of the (TB, 256) h2 tile; the (TB, 1)
    # masked column store costs only 4 B/row.
    logits = jnp.dot(h2.astype(jnp.bfloat16), w3t_ref[...],
                     preferred_element_type=jnp.float32)              # (TB, 1)

    # b3 is a scalar living in SMEM.
    o_ref[...] = jax.nn.sigmoid(logits + b3_ref[0, 0]).astype(o_ref.dtype)


def _round_up(a, m):
    return -(-a // m) * m


def _num_tensorcores():
    """2 for v7x-class parts (megacore batch sharding), else 1."""
    try:
        kind = jax.devices()[0].device_kind.lower().replace(" ", "")
        if "v7" in kind or "tpu7" in kind:
            return 2
    except Exception:
        pass
    return 1


def _pick_batch_tile(B, tile_b, n_tc):
    """Pick the batch tile.

    Single TensorCore (v5e/v6e): use the biggest tile that covers B — extra
    grid steps only add ~0.35 us each and there is no second core to feed.
    Two TensorCores (v7x): when the batch would fit in <= 2 tiles, split it
    into two balanced steps so each core gets one; otherwise use tile_b.
    """
    tile_b = max(128, (tile_b // 128) * 128)
    cover = _round_up(B, 128)                      # smallest one-step tile
    if n_tc >= 2:
        if cover <= 128:
            return 128                             # can't split below (8,128)
        two_step = _round_up(-(-B // 2), 128)      # ceil(B/2) rounded to 128
        if -(-B // tile_b) <= 2 and two_step <= tile_b:
            return two_step                        # 2 balanced steps, 1 per TC
        return tile_b
    return min(tile_b, cover)


def discriminator_forward(x, params, *, tile_b=1024):
    """x: (B, 256) float array. params: dict w1,b1,w2,b2,w3,b3. Returns (B, 1) f32."""
    B, D = x.shape
    assert D == INPUT_BITS

    tb = _pick_batch_tile(B, tile_b, _num_tensorcores())
    grid = (pl.cdiv(B, tb),)                       # ragged tail handled by Pallas

    # Weights to bf16 for the MXU (tiny one-time cast); x stays f32 and is cast
    # in-kernel.  f32 accumulation happens inside the kernel.
    w1 = params["w1"].astype(jnp.bfloat16)         # (256, 512)
    w2 = params["w2"].astype(jnp.bfloat16)         # (512, 256)
    w3t = params["w3"].T.astype(jnp.bfloat16)      # (256, 1)
    b1, b2, b3 = params["b1"], params["b2"], params["b3"]   # f32

    # Constant index_map -> fetched into VMEM once and revisited every step.
    full = lambda a: pl.BlockSpec(a.shape, lambda i: (0,) * a.ndim)

    weight_bytes = (w1.size + w2.size + w3t.size) * 2 + (b1.size + b2.size + b3.size) * 4
    cost = pl.CostEstimate(
        flops=2 * B * (INPUT_BITS * H1 + H1 * H2 + H2 * OUT),
        transcendentals=B,                          # sigmoid exp per row
        bytes_accessed=B * INPUT_BITS * 4 + weight_bytes + B * 4,
    )

    out = pl.pallas_call(
        discriminator_kernel,
        out_shape=jax.ShapeDtypeStruct((B, OUT), jnp.float32),
        grid_spec=pltpu.PrefetchScalarGridSpec(
            num_scalar_prefetch=0,
            grid=grid,
            in_specs=[
                pl.BlockSpec((tb, INPUT_BITS), lambda i: (i, 0)),   # x batch tile (f32)
                full(w1), full(b1),
                full(w2), full(b2),
                full(w3t),
                pl.BlockSpec(memory_space=pltpu.MemorySpace.SMEM),  # b3 scalar
            ],
            out_specs=pl.BlockSpec((tb, OUT), lambda i: (i, 0)),
        ),
        compiler_params=pltpu.CompilerParams(
            dimension_semantics=("parallel",)),
        cost_estimate=cost,
    )(x, w1, b1, w2, b2, w3t, b3)

    return out


def init_params(key):
    """Deterministic init mirroring nn.Linear (uniform +/- 1/sqrt(fan_in)).
    w1/w2 stored as (in, out) == PyTorch weight.T; w3 stored as (out, in)."""
    ks = jax.random.split(key, 6)

    def linear(kw, kb, fan_in, fan_out):
        bound = 1.0 / jnp.sqrt(float(fan_in))
        w = jax.random.uniform(kw, (fan_in, fan_out), jnp.float32, -bound, bound)
        b = jax.random.uniform(kb, (1, fan_out), jnp.float32, -bound, bound)
        return w, b

    w1, b1 = linear(ks[0], ks[1], INPUT_BITS, H1)
    w2, b2 = linear(ks[2], ks[3], H1, H2)
    bound3 = 1.0 / jnp.sqrt(float(H2))
    w3 = jax.random.uniform(ks[4], (OUT, H2), jnp.float32, -bound3, bound3)
    b3 = jax.random.uniform(ks[5], (1, OUT), jnp.float32, -bound3, bound3)
    return {"w1": w1, "b1": b1, "w2": w2, "b2": b2, "w3": w3, "b3": b3}


def reference_forward(x, p):
    """Pure-JAX f32 reference matching the PyTorch module."""
    h = jnp.dot(x, p["w1"]) + p["b1"]
    h = jnp.where(h > 0, h, 0.2 * h)
    h = jnp.dot(h, p["w2"]) + p["b2"]
    h = jnp.where(h > 0, h, 0.2 * h)
    h = jnp.dot(h, p["w3"].T) + p["b3"]
    return jax.nn.sigmoid(h)


if __name__ == "__main__":
    key = jax.random.PRNGKey(0)
    k_param, k_x = jax.random.split(key)

    params = init_params(k_param)

    # Batch deliberately NOT a multiple of 128: exercises the ragged boundary
    # block (masked output writeback) and, on v7x, the two-balanced-step grid.
    B = 300
    x = jax.random.bernoulli(k_x, 0.5, (B, INPUT_BITS)).astype(jnp.float32)

    out = jax.block_until_ready(discriminator_forward(x, params))
    ref = reference_forward(x, params)

    assert out.shape == (B, 1)
    max_err = float(jnp.max(jnp.abs(out - ref)))
    # bf16 matmuls with f32 accumulation vs an all-f32 reference.
    assert max_err < 2e-2, f"mismatch vs reference: max abs err {max_err}"

    print("KERNEL_OK")
</pallas_src>

<mosaic_0001>
module attributes {stable_mosaic.version = 11 : i64} {
  func.func @discriminator_kernel(%arg0: i32, %arg1: memref<384x256xf32, #tpu.memory_space<vmem>>, %arg2: memref<256x512xbf16, #tpu.memory_space<vmem>>, %arg3: memref<1x512xf32, #tpu.memory_space<vmem>>, %arg4: memref<512x256xbf16, #tpu.memory_space<vmem>>, %arg5: memref<1x256xf32, #tpu.memory_space<vmem>>, %arg6: memref<256x1xbf16, #tpu.memory_space<vmem>>, %arg7: memref<1x1xf32, #tpu.memory_space<smem>>, %arg8: memref<384x1xf32, #tpu.memory_space<vmem>>) attributes {dimension_semantics = [#tpu.dimension_semantics<parallel>], iteration_bounds = array<i64: 1>, scalar_prefetch = 0 : i64, scratch_operands = 0 : i64, tpu.core_type = #tpu.core_type<tc>, window_params = [{transform_indices = @transform_0, window_bounds = array<i64: 384, 256>}, {pipeline_mode = #tpu.pipeline_mode<synchronous>, transform_indices = @transform_1, window_bounds = array<i64: 256, 512>}, {pipeline_mode = #tpu.pipeline_mode<synchronous>, transform_indices = @transform_2, window_bounds = array<i64: 1, 512>}, {pipeline_mode = #tpu.pipeline_mode<synchronous>, transform_indices = @transform_3, window_bounds = array<i64: 512, 256>}, {pipeline_mode = #tpu.pipeline_mode<synchronous>, transform_indices = @transform_4, window_bounds = array<i64: 1, 256>}, {pipeline_mode = #tpu.pipeline_mode<synchronous>, transform_indices = @transform_5, window_bounds = array<i64: 256, 1>}, {transform_indices = @transform_6, window_bounds = array<i64: 1, 1>}, {transform_indices = @transform_7, window_bounds = array<i64: 384, 1>}]} {
    %c0 = arith.constant 0 : index
    %c0_0 = arith.constant 0 : index
    %0 = vector.load %arg1[%c0, %c0_0] : memref<384x256xf32, #tpu.memory_space<vmem>>, vector<384x256xf32>
    %1 = arith.truncf %0 : vector<384x256xf32> to vector<384x256xbf16>
    %c0_1 = arith.constant 0 : index
    %c0_2 = arith.constant 0 : index
    %2 = vector.load %arg2[%c0_1, %c0_2] : memref<256x512xbf16, #tpu.memory_space<vmem>>, vector<256x512xbf16>
    %cst = arith.constant dense<0.000000e+00> : vector<384x512xf32>
    %3 = tpu.matmul %1, %2, %cst {dimension_numbers = #tpu.dot_dimension_numbers<[1], [0], [0], [1], [0, 0, 1, 1], [], []>} : vector<384x256xbf16>, vector<256x512xbf16>, vector<384x512xf32> -> vector<384x512xf32>
    %c0_3 = arith.constant 0 : index
    %c0_4 = arith.constant 0 : index
    %4 = vector.load %arg3[%c0_3, %c0_4] : memref<1x512xf32, #tpu.memory_space<vmem>>, vector<1x512xf32>
    %5 = vector.broadcast %4 : vector<1x512xf32> to vector<384x512xf32>
    %6 = arith.addf %3, %5 : vector<384x512xf32>
    %cst_5 = arith.constant 2.000000e-01 : f32
    %7 = vector.broadcast %cst_5 : f32 to vector<384x512xf32>
    %8 = arith.mulf %7, %6 : vector<384x512xf32>
    %9 = arith.maximumf %6, %8 : vector<384x512xf32>
    %10 = arith.truncf %9 : vector<384x512xf32> to vector<384x512xbf16>
    %c0_6 = arith.constant 0 : index
    %c0_7 = arith.constant 0 : index
    %11 = vector.load %arg4[%c0_6, %c0_7] : memref<512x256xbf16, #tpu.memory_space<vmem>>, vector<512x256xbf16>
    %cst_8 = arith.constant dense<0.000000e+00> : vector<384x256xf32>
    %12 = tpu.matmul %10, %11, %cst_8 {dimension_numbers = #tpu.dot_dimension_numbers<[1], [0], [0], [1], [0, 0, 1, 1], [], []>} : vector<384x512xbf16>, vector<512x256xbf16>, vector<384x256xf32> -> vector<384x256xf32>
    %c0_9 = arith.constant 0 : index
    %c0_10 = arith.constant 0 : index
    %13 = vector.load %arg5[%c0_9, %c0_10] : memref<1x256xf32, #tpu.memory_space<vmem>>, vector<1x256xf32>
    %14 = vector.broadcast %13 : vector<1x256xf32> to vector<384x256xf32>
    %15 = arith.addf %12, %14 : vector<384x256xf32>
    %cst_11 = arith.constant 2.000000e-01 : f32
    %16 = vector.broadcast %cst_11 : f32 to vector<384x256xf32>
    %17 = arith.mulf %16, %15 : vector<384x256xf32>
    %18 = arith.maximumf %15, %17 : vector<384x256xf32>
    %19 = arith.truncf %18 : vector<384x256xf32> to vector<384x256xbf16>
    %c0_12 = arith.constant 0 : index
    %c0_13 = arith.constant 0 : index
    %20 = vector.load %arg6[%c0_12, %c0_13] : memref<256x1xbf16, #tpu.memory_space<vmem>>, vector<256x1xbf16>
    %cst_14 = arith.constant dense<0.000000e+00> : vector<384x1xf32>
    %21 = tpu.matmul %19, %20, %cst_14 {dimension_numbers = #tpu.dot_dimension_numbers<[1], [0], [0], [1], [0, 0, 1, 1], [], []>} : vector<384x256xbf16>, vector<256x1xbf16>, vector<384x1xf32> -> vector<384x1xf32>
    %c0_15 = arith.constant 0 : index
    %c0_16 = arith.constant 0 : index
    %22 = memref.load %arg7[%c0_15, %c0_16] : memref<1x1xf32, #tpu.memory_space<smem>>
    %23 = vector.broadcast %22 : f32 to vector<384x1xf32>
    %24 = arith.addf %21, %23 : vector<384x1xf32>
    %25 = arith.negf %24 : vector<384x1xf32>
    %26 = math.exp %25 : vector<384x1xf32>
    %cst_17 = arith.constant 1.000000e+00 : f32
    %27 = vector.broadcast %cst_17 : f32 to vector<384x1xf32>
    %28 = arith.addf %27, %26 : vector<384x1xf32>
    %29 = arith.divf %27, %28 : vector<384x1xf32>
    %c0_18 = arith.constant 0 : index
    %c0_19 = arith.constant 0 : index
    %30 = vector.load %arg8[%c0_18, %c0_19] : memref<384x1xf32, #tpu.memory_space<vmem>>, vector<384x1xf32>
    tpu.vector_store %arg8[%c0_18, %c0_19], %29 {strides = array<i32>} : memref<384x1xf32, #tpu.memory_space<vmem>>, vector<384x1xf32>,
    return
  }
  func.func @transform_0(%arg0: i32) -> (i32, i32) {
    %c0_i32 = arith.constant 0 : i32
    %c0_i32_0 = arith.constant 0 : i32
    return %arg0, %c0_i32 : i32, i32
  }
  func.func @transform_1(%arg0: i32) -> (i32, i32) {
    %c0_i32 = arith.constant 0 : i32
    %c0_i32_0 = arith.constant 0 : i32
    %c0_i32_1 = arith.constant 0 : i32
    return %c0_i32, %c0_i32_0 : i32, i32
  }
  func.func @transform_2(%arg0: i32) -> (i32, i32) {
    %c0_i32 = arith.constant 0 : i32
    %c0_i32_0 = arith.constant 0 : i32
    %c0_i32_1 = arith.constant 0 : i32
    return %c0_i32, %c0_i32_0 : i32, i32
  }
  func.func @transform_3(%arg0: i32) -> (i32, i32) {
    %c0_i32 = arith.constant 0 : i32
    %c0_i32_0 = arith.constant 0 : i32
    %c0_i32_1 = arith.constant 0 : i32
    return %c0_i32, %c0_i32_0 : i32, i32
  }
  func.func @transform_4(%arg0: i32) -> (i32, i32) {
    %c0_i32 = arith.constant 0 : i32
    %c0_i32_0 = arith.constant 0 : i32
    %c0_i32_1 = arith.constant 0 : i32
    return %c0_i32, %c0_i32_0 : i32, i32
  }
  func.func @transform_5(%arg0: i32) -> (i32, i32) {
    %c0_i32 = arith.constant 0 : i32
    %c0_i32_0 = arith.constant 0 : i32
    %c0_i32_1 = arith.constant 0 : i32
    return %c0_i32, %c0_i32_0 : i32, i32
  }
  func.func @transform_6(%arg0: i32) -> (i32, i32) {
    %c0_i32 = arith.constant 0 : i32
    %c0_i32_0 = arith.constant 0 : i32
    %c0_i32_1 = arith.constant 0 : i32
    return %c0_i32, %c0_i32_0 : i32, i32
  }
  func.func @transform_7(%arg0: i32) -> (i32, i32) {
    %c0_i32 = arith.constant 0 : i32
    %c0_i32_0 = arith.constant 0 : i32
    return %arg0, %c0_i32 : i32, i32
  }
}

</mosaic_0001>

<llo_original>
// kernel: tpu_custom_call.1
$region0: #{tpu_custom_call.1}
  #allocation0 [shape = 'u32[]', space=smem, size = 0x4, offset = 0x4, fixed_abs, tag = 'smem constant byte address 0x4 - core index']
  #allocation1 [shape = 'u32[144,128]{1,0:T(1,128)}', space=vmem, size = 0x12000, scoped, tag = 'internal scratch']
  #allocation2 [shape = 'f32[1,1]{1,0:T(1,128)S(6)}', space=smem, size = 0x200, scoped, tag = 'scoped memory for tpu_custom_call.1']
  %s0 = inlined_call_operand.hbm [shape: f32[300,256], index: 0, kind: input, shape index: {}]
  %s1 = inlined_call_operand.hbm [shape: bf16[256,512], index: 1, kind: input, shape index: {}]
  %s2 = inlined_call_operand.vmem [shape: f32[1,512], index: 2, kind: input, shape index: {}]
  %s3 = inlined_call_operand.hbm [shape: bf16[512,256], index: 3, kind: input, shape index: {}]
  %s4 = inlined_call_operand.vmem [shape: f32[1,256], index: 4, kind: input, shape index: {}]
  %s5 = inlined_call_operand.vmem [shape: bf16[256,1], index: 5, kind: input, shape index: {}]
  %s6 = inlined_call_operand.<no memory space> [shape: f32[1,1], index: 6, kind: input, shape index: {}]
  %s7 = inlined_call_operand.vmem [shape: f32[300,1], index: 7, kind: output, shape index: {}]
  %s8 = sld [smem:[#allocation0]]
  $region84: #{tpu_custom_call.1} parent=0
    _
  %s10 = ssub.s32 1, %s8
  %s11 = scalar_select 0, %s10, %s8
  %12 = sst [smem:[#allocation2]] %s6
  $region1: #{tpu_custom_call.1} parent=0
    #allocation3 [shape = 'u8[393216]{0}', space=vmem, size = 0x60000, scoped, tag = 'input window, operand 0, single buffered']
    #allocation4 [shape = 's32[1]{0}', space=sflag, size = 0x4, scoped, tag = 'scoped memory for tpu_custom_call.1']
    #allocation5 [shape = 'u8[262144]{0}', space=vmem, size = 0x40000, scoped, tag = 'input window, operand 1, single buffered']
    #allocation6 [shape = 's32[1]{0}', space=sflag, size = 0x4, scoped, tag = 'scoped memory for tpu_custom_call.1']
    #allocation7 [shape = 'u8[262144]{0}', space=vmem, size = 0x40000, scoped, tag = 'input window, operand 3, single buffered']
    #allocation8 [shape = 'u8[196608]{0}', space=vmem, size = 0x30000, scoped, tag = 'output window, operand 0, single buffered']
    %13 = vsyncpa [#allocation4], 0
    %14 = vsyncpa [#allocation6], 0
    // Predicated region
    $region2: #{tpu_custom_call.1} parent=1 // pred_check
      _
    $region3: #{tpu_custom_call.1} parent=1 // pred_check_branch
      %16 = sbr.rel (0) target = $region5
    $region4: #{tpu_custom_call.1} parent=1 // pred_region
      %s18 = ssub.s32 12288, 9728
      %19 = vsyncadd [#allocation4], %s18
      %s20 = sshll.u32 [#allocation3], 4
      %s21 = int_to_ptr.vmem [resolvable:$true] %s20
      %26 = dma.hbm_to_vmem [thread:$0]  %s0, 9728, %s21, [#allocation4], 256, 256, 16
    $region5: #{tpu_custom_call.1} parent=1 // pred_fallthru
      _
    // Predicated region
    $region6: #{tpu_custom_call.1} parent=1 // pred_check
      _
    $region7: #{tpu_custom_call.1} parent=1 // pred_check_branch
      %28 = sbr.rel (0) target = $region9
    $region8: #{tpu_custom_call.1} parent=1 // pred_region
      %s30 = ssub.s32 8192, 8192
      %31 = vsyncadd [#allocation6], %s30
      %s32 = sshll.u32 [#allocation5], 4
      %s33 = int_to_ptr.vmem [resolvable:$true] %s32
      %38 = dma.hbm_to_vmem [thread:$0]  %s1, 8192, %s33, [#allocation6], 256, 256, 16
    $region9: #{tpu_custom_call.1} parent=1 // pred_fallthru
      _
    // Predicated region
    $region10: #{tpu_custom_call.1} parent=1 // pred_check
      _
    $region11: #{tpu_custom_call.1} parent=1 // pred_check_branch
      %40 = sbr.rel (0) target = $region13
    $region12: #{tpu_custom_call.1} parent=1 // pred_region
      _
    $region13: #{tpu_custom_call.1} parent=1 // pred_fallthru
      _
    // Predicated region
    $region14: #{tpu_custom_call.1} parent=1 // pred_check
      _
    $region15: #{tpu_custom_call.1} parent=1 // pred_check_branch
      %42 = sbr.rel (0) target = $region17
    $region16: #{tpu_custom_call.1} parent=1 // pred_region
      %s44 = ssub.s32 8192, 8192
      %45 = vsyncadd [#allocation6], %s44
      %s46 = sshll.u32 [#allocation7], 4
      %s47 = int_to_ptr.vmem [resolvable:$true] %s46
      %52 = dma.hbm_to_vmem [thread:$0]  %s3, 8192, %s47, [#allocation6], 128, 128, 8
    $region17: #{tpu_custom_call.1} parent=1 // pred_fallthru
      _
    // Predicated region
    $region18: #{tpu_custom_call.1} parent=1 // pred_check
      _
    $region19: #{tpu_custom_call.1} parent=1 // pred_check_branch
      %54 = sbr.rel (0) target = $region21
    $region20: #{tpu_custom_call.1} parent=1 // pred_region
      _
    $region21: #{tpu_custom_call.1} parent=1 // pred_fallthru
      _
    // Predicated region
    $region22: #{tpu_custom_call.1} parent=1 // pred_check
      _
    $region23: #{tpu_custom_call.1} parent=1 // pred_check_branch
      %56 = sbr.rel (0) target = $region25
    $region24: #{tpu_custom_call.1} parent=1 // pred_region
      _
    $region25: #{tpu_custom_call.1} parent=1 // pred_fallthru
      _
    // Predicated region
    $region26: #{tpu_custom_call.1} parent=1 // pred_check
      _
    $region27: #{tpu_custom_call.1} parent=1 // pred_check_branch
      %58 = sbr.rel (0) target = $region29
    $region28: #{tpu_custom_call.1} parent=1 // pred_region
      _
    $region29: #{tpu_custom_call.1} parent=1 // pred_fallthru
      _
    // Predicated region
    $region30: #{tpu_custom_call.1} parent=1 // pred_check
      _
    $region31: #{tpu_custom_call.1} parent=1 // pred_check_branch
      %60 = sbr.rel (0) target = $region33
    $region32: #{tpu_custom_call.1} parent=1 // pred_region
      %61 = dma.done [#allocation4], 12288
    $region33: #{tpu_custom_call.1} parent=1 // pred_fallthru
      _
    // Predicated region
    $region34: #{tpu_custom_call.1} parent=1 // pred_check
      _
    $region35: #{tpu_custom_call.1} parent=1 // pred_check_branch
      %63 = sbr.rel (0) target = $region37
    $region36: #{tpu_custom_call.1} parent=1 // pred_region
      %64 = dma.done [#allocation6], 8192
    $region37: #{tpu_custom_call.1} parent=1 // pred_fallthru
      _
    // Predicated region
    $region38: #{tpu_custom_call.1} parent=1 // pred_check
      _
    $region39: #{tpu_custom_call.1} parent=1 // pred_check_branch
      %66 = sbr.rel (0) target = $region41
    $region40: #{tpu_custom_call.1} parent=1 // pred_region
      %67 = dma.done [#allocation6], 8192
    $region41: #{tpu_custom_call.1} parent=1 // pred_fallthru
      _
    %v69 = vld [vmem:[#allocation3] sm:$0xff]
    %v70 = vld [vmem:[#allocation3 + $0x8] sm:$0xff]
    %v71 = vld [vmem:[#allocation3 + $0x10] sm:$0xff]
    %v72 = vld [vmem:[#allocation3 + $0x18] sm:$0xff]
    %v73 = vld [vmem:[#allocation3 + $0x20] sm:$0xff]
    %v74 = vld [vmem:[#allocation3 + $0x28] sm:$0xff]
    %v75 = vld [vmem:[#allocation3 + $0x30] sm:$0xff]
    %v76 = vld [vmem:[#allocation3 + $0x38] sm:$0xff]
    %v77 = vld [vmem:[#allocation3 + $0x40] sm:$0xff]
    %v78 = vld [vmem:[#allocation3 + $0x48] sm:$0xff]
    %v79 = vld [vmem:[#allocation3 + $0x50] sm:$0xff]
    %v80 = vld [vmem:[#allocation3 + $0x58] sm:$0xff]
    %v81 = vld [vmem:[#allocation3 + $0x60] sm:$0xff]
    %v82 = vld [vmem:[#allocation3 + $0x68] sm:$0xff]
    %v83 = vld [vmem:[#allocation3 + $0x70] sm:$0xff]
    %v84 = vld [vmem:[#allocation3 + $0x78] sm:$0xff]
    %v85 = vld [vmem:[#allocation3 + $0x80] sm:$0xff]
    %v86 = vld [vmem:[#allocation3 + $0x88] sm:$0xff]
    %v87 = vld [vmem:[#allocation3 + $0x90] sm:$0xff]
    %v88 = vld [vmem:[#allocation3 + $0x98] sm:$0xff]
    %v89 = vld [vmem:[#allocation3 + $0xa0] sm:$0xff]
    %v90 = vld [vmem:[#allocation3 + $0xa8] sm:$0xff]
    %v91 = vld [vmem:[#allocation3 + $0xb0] sm:$0xff]
    %v92 = vld [vmem:[#allocation3 + $0xb8] sm:$0xff]
    %v93 = vld [vmem:[#allocation3 + $0xc0] sm:$0xff]
    %v94 = vld [vmem:[#allocation3 + $0xc8] sm:$0xff]
    %v95 = vld [vmem:[#allocation3 + $0xd0] sm:$0xff]
    %v96 = vld [vmem:[#allocation3 + $0xd8] sm:$0xff]
    %v97 = vld [vmem:[#allocation3 + $0xe0] sm:$0xff]
    %v98 = vld [vmem:[#allocation3 + $0xe8] sm:$0xff]
    %v99 = vld [vmem:[#allocation3 + $0xf0] sm:$0xff]
    %v100 = vld [vmem:[#allocation3 + $0xf8] sm:$0xff]
    %v101 = vld [vmem:[#allocation3 + $0x100] sm:$0xff]
    %v102 = vld [vmem:[#allocation3 + $0x108] sm:$0xff]
    %v103 = vld [vmem:[#allocation3 + $0x110] sm:$0xff]
    %v104 = vld [vmem:[#allocation3 + $0x118] sm:$0xff]
    %v105 = vld [vmem:[#allocation3 + $0x120] sm:$0xff]
    %v106 = vld [vmem:[#allocation3 + $0x128] sm:$0xff]
    %v107 = vld [vmem:[#allocation3 + $0x130] sm:$0xff]
    %v108 = vld [vmem:[#allocation3 + $0x138] sm:$0xff]
    %v109 = vld [vmem:[#allocation3 + $0x140] sm:$0xff]
    %v110 = vld [vmem:[#allocation3 + $0x148] sm:$0xff]
    %v111 = vld [vmem:[#allocation3 + $0x150] sm:$0xff]
    %v112 = vld [vmem:[#allocation3 + $0x158] sm:$0xff]
    %v113 = vld [vmem:[#allocation3 + $0x160] sm:$0xff]
    %v114 = vld [vmem:[#allocation3 + $0x168] sm:$0xff]
    %v115 = vld [vmem:[#allocation3 + $0x170] sm:$0xff]
    %v116 = vld [vmem:[#allocation3 + $0x178] sm:$0xff]
    %v117 = vld [vmem:[#allocation3 + $0x180] sm:$0xff]
    %v118 = vld [vmem:[#allocation3 + $0x188] sm:$0xff]
    %v119 = vld [vmem:[#allocation3 + $0x190] sm:$0xff]
    %v120 = vld [vmem:[#allocation3 + $0x198] sm:$0xff]
    %v121 = vld [vmem:[#allocation3 + $0x1a0] sm:$0xff]
    %v122 = vld [vmem:[#allocation3 + $0x1a8] sm:$0xff]
    %v123 = vld [vmem:[#allocation3 + $0x1b0] sm:$0xff]
    %v124 = vld [vmem:[#allocation3 + $0x1b8] sm:$0xff]
    %v125 = vld [vmem:[#allocation3 + $0x1c0] sm:$0xff]
    %v126 = vld [vmem:[#allocation3 + $0x1c8] sm:$0xff]
    %v127 = vld [vmem:[#allocation3 + $0x1d0] sm:$0xff]
    %v128 = vld [vmem:[#allocation3 + $0x1d8] sm:$0xff]
    %v129 = vld [vmem:[#allocation3 + $0x1e0] sm:$0xff]
    %v130 = vld [vmem:[#allocation3 + $0x1e8] sm:$0xff]
    %v131 = vld [vmem:[#allocation3 + $0x1f0] sm:$0xff]
    %v132 = vld [vmem:[#allocation3 + $0x1f8] sm:$0xff]
    %v133 = vld [vmem:[#allocation3 + $0x200] sm:$0xff]
    %v134 = vld [vmem:[#allocation3 + $0x208] sm:$0xff]
    %v135 = vld [vmem:[#allocation3 + $0x210] sm:$0xff]
    %v136 = vld [vmem:[#allocation3 + $0x218] sm:$0xff]
    %v137 = vld [vmem:[#allocation3 + $0x220] sm:$0xff]
    %v138 = vld [vmem:[#allocation3 + $0x228] sm:$0xff]
    %v139 = vld [vmem:[#allocation3 + $0x230] sm:$0xff]
    %v140 = vld [vmem:[#allocation3 + $0x238] sm:$0xff]
    %v141 = vld [vmem:[#allocation3 + $0x240] sm:$0xff]
    %v142 = vld [vmem:[#allocation3 + $0x248] sm:$0xff]
    %v143 = vld [vmem:[#allocation3 + $0x250] sm:$0xff]
    %v144 = vld [vmem:[#allocation3 + $0x258] sm:$0xff]
    %v145 = vld [vmem:[#allocation3 + $0x260] sm:$0xff]
    %v146 = vld [vmem:[#allocation3 + $0x268] sm:$0xff]
    %v147 = vld [vmem:[#allocation3 + $0x270] sm:$0xff]
    %v148 = vld [vmem:[#allocation3 + $0x278] sm:$0xff]
    %v149 = vld [vmem:[#allocation3 + $0x280] sm:$0xff]
    %v150 = vld [vmem:[#allocation3 + $0x288] sm:$0xff]
    %v151 = vld [vmem:[#allocation3 + $0x290] sm:$0xff]
    %v152 = vld [vmem:[#allocation3 + $0x298] sm:$0xff]
    %v153 = vld [vmem:[#allocation3 + $0x2a0] sm:$0xff]
    %v154 = vld [vmem:[#allocation3 + $0x2a8] sm:$0xff]
    %v155 = vld [vmem:[#allocation3 + $0x2b0] sm:$0xff]
    %v156 = vld [vmem:[#allocation3 + $0x2b8] sm:$0xff]
    %v157 = vld [vmem:[#allocation3 + $0x2c0] sm:$0xff]
    %v158 = vld [vmem:[#allocation3 + $0x2c8] sm:$0xff]
    %v159 = vld [vmem:[#allocation3 + $0x2d0] sm:$0xff]
    %v160 = vld [vmem:[#allocation3 + $0x2d8] sm:$0xff]
    %v161 = vld [vmem:[#allocation3 + $0x2e0] sm:$0xff]
    %v162 = vld [vmem:[#allocation3 + $0x2e8] sm:$0xff]
    %v163 = vld [vmem:[#allocation3 + $0x2f0] sm:$0xff]
    %v164 = vld [vmem:[#allocation3 + $0x2f8] sm:$0xff]
    %v165 = vpack.c.bf16 %v71, %v69
    %v166 = vpack.c.bf16 %v72, %v70
    %v167 = vpack.c.bf16 %v75, %v73
    %v168 = vpack.c.bf16 %v76, %v74
    %v169 = vpack.c.bf16 %v79, %v77
    %v170 = vpack.c.bf16 %v80, %v78
    %v171 = vpack.c.bf16 %v83, %v81
    %v172 = vpack.c.bf16 %v84, %v82
    %v173 = vpack.c.bf16 %v87, %v85
    %v174 = vpack.c.bf16 %v88, %v86
    %v175 = vpack.c.bf16 %v91, %v89
    %v176 = vpack.c.bf16 %v92, %v90
    %v177 = vpack.c.bf16 %v95, %v93
    %v178 = vpack.c.bf16 %v96, %v94
    %v179 = vpack.c.bf16 %v99, %v97
    %v180 = vpack.c.bf16 %v100, %v98
    %v181 = vpack.c.bf16 %v103, %v101
    %v182 = vpack.c.bf16 %v104, %v102
    %v183 = vpack.c.bf16 %v107, %v105
    %v184 = vpack.c.bf16 %v108, %v106
    %v185 = vpack.c.bf16 %v111, %v109
    %v186 = vpack.c.bf16 %v112, %v110
    %v187 = vpack.c.bf16 %v115, %v113
    %v188 = vpack.c.bf16 %v116, %v114
    %v189 = vpack.c.bf16 %v119, %v117
    %v190 = vpack.c.bf16 %v120, %v118
    %v191 = vpack.c.bf16 %v123, %v121
    %v192 = vpack.c.bf16 %v124, %v122
    %v193 = vpack.c.bf16 %v127, %v125
    %v194 = vpack.c.bf16 %v128, %v126
    %v195 = vpack.c.bf16 %v131, %v129
    %v196 = vpack.c.bf16 %v132, %v130
    %v197 = vpack.c.bf16 %v135, %v133
    %v198 = vpack.c.bf16 %v136, %v134
    %v199 = vpack.c.bf16 %v139, %v137
    %v200 = vpack.c.bf16 %v140, %v138
    %v201 = vpack.c.bf16 %v143, %v141
    %v202 = vpack.c.bf16 %v144, %v142
    %v203 = vpack.c.bf16 %v147, %v145
    %v204 = vpack.c.bf16 %v148, %v146
    %v205 = vpack.c.bf16 %v151, %v149
    %v206 = vpack.c.bf16 %v152, %v150
    %v207 = vpack.c.bf16 %v155, %v153
    %v208 = vpack.c.bf16 %v156, %v154
    %v209 = vpack.c.bf16 %v159, %v157
    %v210 = vpack.c.bf16 %v160, %v158
    %v211 = vpack.c.bf16 %v163, %v161
    %v212 = vpack.c.bf16 %v164, %v162
    %v213 = vld [vmem:[#allocation5] sm:$0xff]
    %v214 = vld [vmem:[#allocation5 + $0x8] sm:$0xff]
    %v215 = vld [vmem:[#allocation5 + $0x10] sm:$0xff]
    %v216 = vld [vmem:[#allocation5 + $0x18] sm:$0xff]
    %v217 = vld [vmem:[#allocation5 + $0x20] sm:$0xff]
    %v218 = vld [vmem:[#allocation5 + $0x28] sm:$0xff]
    %v219 = vld [vmem:[#allocation5 + $0x30] sm:$0xff]
    %v220 = vld [vmem:[#allocation5 + $0x38] sm:$0xff]
    %v221 = vld [vmem:[#allocation5 + $0x40] sm:$0xff]
    %v222 = vld [vmem:[#allocation5 + $0x48] sm:$0xff]
    %v223 = vld [vmem:[#allocation5 + $0x50] sm:$0xff]
    %v224 = vld [vmem:[#allocation5 + $0x58] sm:$0xff]
    %v225 = vld [vmem:[#allocation5 + $0x60] sm:$0xff]
    %v226 = vld [vmem:[#allocation5 + $0x68] sm:$0xff]
    %v227 = vld [vmem:[#allocation5 + $0x70] sm:$0xff]
    %v228 = vld [vmem:[#allocation5 + $0x78] sm:$0xff]
    %v229 = vld [vmem:[#allocation5 + $0x80] sm:$0xff]
    %v230 = vld [vmem:[#allocation5 + $0x88] sm:$0xff]
    %v231 = vld [vmem:[#allocation5 + $0x90] sm:$0xff]
    %v232 = vld [vmem:[#allocation5 + $0x98] sm:$0xff]
    %v233 = vld [vmem:[#allocation5 + $0xa0] sm:$0xff]
    %v234 = vld [vmem:[#allocation5 + $0xa8] sm:$0xff]
    %v235 = vld [vmem:[#allocation5 + $0xb0] sm:$0xff]
    %v236 = vld [vmem:[#allocation5 + $0xb8] sm:$0xff]
    %v237 = vld [vmem:[#allocation5 + $0xc0] sm:$0xff]
    %v238 = vld [vmem:[#allocation5 + $0xc8] sm:$0xff]
    %v239 = vld [vmem:[#allocation5 + $0xd0] sm:$0xff]
    %v240 = vld [vmem:[#allocation5 + $0xd8] sm:$0xff]
    %v241 = vld [vmem:[#allocation5 + $0xe0] sm:$0xff]
    %v242 = vld [vmem:[#allocation5 + $0xe8] sm:$0xff]
    %v243 = vld [vmem:[#allocation5 + $0xf0] sm:$0xff]
    %v244 = vld [vmem:[#allocation5 + $0xf8] sm:$0xff]
    %v245 = vld [vmem:[#allocation5 + $0x100] sm:$0xff]
    %v246 = vld [vmem:[#allocation5 + $0x108] sm:$0xff]
    %v247 = vld [vmem:[#allocation5 + $0x110] sm:$0xff]
    %v248 = vld [vmem:[#allocation5 + $0x118] sm:$0xff]
    %v249 = vld [vmem:[#allocation5 + $0x120] sm:$0xff]
    %v250 = vld [vmem:[#allocation5 + $0x128] sm:$0xff]
    %v251 = vld [vmem:[#allocation5 + $0x130] sm:$0xff]
    %v252 = vld [vmem:[#allocation5 + $0x138] sm:$0xff]
    %v253 = vld [vmem:[#allocation5 + $0x140] sm:$0xff]
    %v254 = vld [vmem:[#allocation5 + $0x148] sm:$0xff]
    %v255 = vld [vmem:[#allocation5 + $0x150] sm:$0xff]
    %v256 = vld [vmem:[#allocation5 + $0x158] sm:$0xff]
    %v257 = vld [vmem:[#allocation5 + $0x160] sm:$0xff]
    %v258 = vld [vmem:[#allocation5 + $0x168] sm:$0xff]
    %v259 = vld [vmem:[#allocation5 + $0x170] sm:$0xff]
    %v260 = vld [vmem:[#allocation5 + $0x178] sm:$0xff]
    %v261 = vld [vmem:[#allocation5 + $0x180] sm:$0xff]
    %v262 = vld [vmem:[#allocation5 + $0x188] sm:$0xff]
    %v263 = vld [vmem:[#allocation5 + $0x190] sm:$0xff]
    %v264 = vld [vmem:[#allocation5 + $0x198] sm:$0xff]
    %v265 = vld [vmem:[#allocation5 + $0x1a0] sm:$0xff]
    %v266 = vld [vmem:[#allocation5 + $0x1a8] sm:$0xff]
    %v267 = vld [vmem:[#allocation5 + $0x1b0] sm:$0xff]
    %v268 = vld [vmem:[#allocation5 + $0x1b8] sm:$0xff]
    %v269 = vld [vmem:[#allocation5 + $0x1c0] sm:$0xff]
    %v270 = vld [vmem:[#allocation5 + $0x1c8] sm:$0xff]
    %v271 = vld [vmem:[#allocation5 + $0x1d0] sm:$0xff]
    %v272 = vld [vmem:[#allocation5 + $0x1d8] sm:$0xff]
    %v273 = vld [vmem:[#allocation5 + $0x1e0] sm:$0xff]
    %v274 = vld [vmem:[#allocation5 + $0x1e8] sm:$0xff]
    %v275 = vld [vmem:[#allocation5 + $0x1f0] sm:$0xff]
    %v276 = vld [vmem:[#allocation5 + $0x1f8] sm:$0xff]
    %v277 = vld [vmem:[%s2] sm:$0xf]
    %v279 = vlaneseq
    %v280 = vshrl.u32 %v279, 7
    %v281 = vsub.s32 0, %v280
    %v282 = vrot.slane %v277, %v281
    %v283 = vlaneseq
    %v284 = vshrl.u32 %v283, 7
    %v285 = vsub.s32 1, %v284
    %v286 = vrot.slane %v277, %v285
    %v287 = vlaneseq
    %v288 = vshrl.u32 %v287, 7
    %v289 = vsub.s32 2, %v288
    %v290 = vrot.slane %v277, %v289
    %v291 = vlaneseq
    %v292 = vshrl.u32 %v291, 7
    %v293 = vsub.s32 3, %v292
    %v294 = vrot.slane %v277, %v293
    %v363 = vunpack.c.l.b16 %v213
    %v364 = vunpack.c.h.b16 %v213
    %v365 = vunpack.c.l.b16 %v214
    %v366 = vunpack.c.h.b16 %v214
    %v367 = vunpack.c.l.b16 %v215
    %v368 = vunpack.c.h.b16 %v215
    %v369 = vunpack.c.l.b16 %v216
    %v370 = vunpack.c.h.b16 %v216
    %v371 = vunpack.c.l.b16 %v217
    %v372 = vunpack.c.h.b16 %v217
    %v373 = vunpack.c.l.b16 %v218
    %v374 = vunpack.c.h.b16 %v218
    %v375 = vunpack.c.l.b16 %v219
    %v376 = vunpack.c.h.b16 %v219
    %v377 = vunpack.c.l.b16 %v220
    %v378 = vunpack.c.h.b16 %v220
    %v379 = vunpack.c.l.b16 %v221
    %v380 = vunpack.c.h.b16 %v221
    %v381 = vunpack.c.l.b16 %v222
    %v382 = vunpack.c.h.b16 %v222
    %v383 = vunpack.c.l.b16 %v223
    %v384 = vunpack.c.h.b16 %v223
    %v385 = vunpack.c.l.b16 %v224
    %v386 = vunpack.c.h.b16 %v224
    %v387 = vunpack.c.l.b16 %v225
    %v388 = vunpack.c.h.b16 %v225
    %v389 = vunpack.c.l.b16 %v226
    %v390 = vunpack.c.h.b16 %v226
    %v391 = vunpack.c.l.b16 %v227
    %v392 = vunpack.c.h.b16 %v227
    %v393 = vunpack.c.l.b16 %v228
    %v394 = vunpack.c.h.b16 %v228
    %v395 = vunpack.c.l.b16 %v229
    %v396 = vunpack.c.h.b16 %v229
    %v397 = vunpack.c.l.b16 %v230
    %v398 = vunpack.c.h.b16 %v230
    %v399 = vunpack.c.l.b16 %v231
    %v400 = vunpack.c.h.b16 %v231
    %v401 = vunpack.c.l.b16 %v232
    %v402 = vunpack.c.h.b16 %v232
    %v403 = vunpack.c.l.b16 %v233
    %v404 = vunpack.c.h.b16 %v233
    %v405 = vunpack.c.l.b16 %v234
    %v406 = vunpack.c.h.b16 %v234
    %v407 = vunpack.c.l.b16 %v235
    %v408 = vunpack.c.h.b16 %v235
    %v409 = vunpack.c.l.b16 %v236
    %v410 = vunpack.c.h.b16 %v236
    %v411 = vunpack.c.l.b16 %v237
    %v412 = vunpack.c.h.b16 %v237
    %v413 = vunpack.c.l.b16 %v238
    %v414 = vunpack.c.h.b16 %v238
    %v415 = vunpack.c.l.b16 %v239
    %v416 = vunpack.c.h.b16 %v239
    %v417 = vunpack.c.l.b16 %v240
    %v418 = vunpack.c.h.b16 %v240
    %v419 = vunpack.c.l.b16 %v241
    %v420 = vunpack.c.h.b16 %v241
    %v421 = vunpack.c.l.b16 %v242
    %v422 = vunpack.c.h.b16 %v242
    %v423 = vunpack.c.l.b16 %v243
    %v424 = vunpack.c.h.b16 %v243
    %v425 = vunpack.c.l.b16 %v244
    %v426 = vunpack.c.h.b16 %v244
    %v427 = vunpack.c.l.b16 %v245
    %v428 = vunpack.c.h.b16 %v245
    %v429 = vunpack.c.l.b16 %v246
    %v430 = vunpack.c.h.b16 %v246
    %v431 = vunpack.c.l.b16 %v247
    %v432 = vunpack.c.h.b16 %v247
    %v433 = vunpack.c.l.b16 %v248
    %v434 = vunpack.c.h.b16 %v248
    %v435 = vunpack.c.l.b16 %v249
    %v436 = vunpack.c.h.b16 %v249
    %v437 = vunpack.c.l.b16 %v250
    %v438 = vunpack.c.h.b16 %v250
    %v439 = vunpack.c.l.b16 %v251
    %v440 = vunpack.c.h.b16 %v251
    %v441 = vunpack.c.l.b16 %v252
    %v442 = vunpack.c.h.b16 %v252
    %v443 = vunpack.c.l.b16 %v253
    %v444 = vunpack.c.h.b16 %v253
    %v445 = vunpack.c.l.b16 %v254
    %v446 = vunpack.c.h.b16 %v254
    %v447 = vunpack.c.l.b16 %v255
    %v448 = vunpack.c.h.b16 %v255
    %v449 = vunpack.c.l.b16 %v256
    %v450 = vunpack.c.h.b16 %v256
    %v451 = vunpack.c.l.b16 %v257
    %v452 = vunpack.c.h.b16 %v257
    %v453 = vunpack.c.l.b16 %v258
    %v454 = vunpack.c.h.b16 %v258
    %v455 = vunpack.c.l.b16 %v259
    %v456 = vunpack.c.h.b16 %v259
    %v457 = vunpack.c.l.b16 %v260
    %v458 = vunpack.c.h.b16 %v260
    %v459 = vunpack.c.l.b16 %v261
    %v460 = vunpack.c.h.b16 %v261
    %v461 = vunpack.c.l.b16 %v262
    %v462 = vunpack.c.h.b16 %v262
    %v463 = vunpack.c.l.b16 %v263
    %v464 = vunpack.c.h.b16 %v263
    %v465 = vunpack.c.l.b16 %v264
    %v466 = vunpack.c.h.b16 %v264
    %v467 = vunpack.c.l.b16 %v265
    %v468 = vunpack.c.h.b16 %v265
    %v469 = vunpack.c.l.b16 %v266
    %v470 = vunpack.c.h.b16 %v266
    %v471 = vunpack.c.l.b16 %v267
    %v472 = vunpack.c.h.b16 %v267
    %v473 = vunpack.c.l.b16 %v268
    %v474 = vunpack.c.h.b16 %v268
    %v475 = vunpack.c.l.b16 %v269
    %v476 = vunpack.c.h.b16 %v269
    %v477 = vunpack.c.l.b16 %v270
    %v478 = vunpack.c.h.b16 %v270
    %v479 = vunpack.c.l.b16 %v271
    %v480 = vunpack.c.h.b16 %v271
    %v481 = vunpack.c.l.b16 %v272
    %v482 = vunpack.c.h.b16 %v272
    %v483 = vunpack.c.l.b16 %v273
    %v484 = vunpack.c.h.b16 %v273
    %v485 = vunpack.c.l.b16 %v274
    %v486 = vunpack.c.h.b16 %v274
    %v487 = vunpack.c.l.b16 %v275
    %v488 = vunpack.c.h.b16 %v275
    %v489 = vunpack.c.l.b16 %v276
    %v490 = vunpack.c.h.b16 %v276
    %v491 = vpack.c.b16 %v367, %v363
    %v492 = vpack.c.b16 %v368, %v364
    %v493 = vpack.c.b16 %v369, %v365
    %v494 = vpack.c.b16 %v370, %v366
    %v495 = vpack.c.b16 %v375, %v371
    %v496 = vpack.c.b16 %v376, %v372
    %v497 = vpack.c.b16 %v377, %v373
    %v498 = vpack.c.b16 %v378, %v374
    %v499 = vpack.c.b16 %v383, %v379
    %v500 = vpack.c.b16 %v384, %v380
    %v501 = vpack.c.b16 %v385, %v381
    %v502 = vpack.c.b16 %v386, %v382
    %v503 = vpack.c.b16 %v391, %v387
    %v504 = vpack.c.b16 %v392, %v388
    %v505 = vpack.c.b16 %v393, %v389
    %v506 = vpack.c.b16 %v394, %v390
    %v507 = vpack.c.b16 %v399, %v395
    %v508 = vpack.c.b16 %v400, %v396
    %v509 = vpack.c.b16 %v401, %v397
    %v510 = vpack.c.b16 %v402, %v398
    %v511 = vpack.c.b16 %v407, %v403
    %v512 = vpack.c.b16 %v408, %v404
    %v513 = vpack.c.b16 %v409, %v405
    %v514 = vpack.c.b16 %v410, %v406
    %v515 = vpack.c.b16 %v415, %v411
    %v516 = vpack.c.b16 %v416, %v412
    %v517 = vpack.c.b16 %v417, %v413
    %v518 = vpack.c.b16 %v418, %v414
    %v519 = vpack.c.b16 %v423, %v419
    %v520 = vpack.c.b16 %v424, %v420
    %v521 = vpack.c.b16 %v425, %v421
    %v522 = vpack.c.b16 %v426, %v422
    %v523 = vpack.c.b16 %v431, %v427
    %v524 = vpack.c.b16 %v432, %v428
    %v525 = vpack.c.b16 %v433, %v429
    %v526 = vpack.c.b16 %v434, %v430
    %v527 = vpack.c.b16 %v439, %v435
    %v528 = vpack.c.b16 %v440, %v436
    %v529 = vpack.c.b16 %v441, %v437
    %v530 = vpack.c.b16 %v442, %v438
    %v531 = vpack.c.b16 %v447, %v443
    %v532 = vpack.c.b16 %v448, %v444
    %v533 = vpack.c.b16 %v449, %v445
    %v534 = vpack.c.b16 %v450, %v446
    %v535 = vpack.c.b16 %v455, %v451
    %v536 = vpack.c.b16 %v456, %v452
    %v537 = vpack.c.b16 %v457, %v453
    %v538 = vpack.c.b16 %v458, %v454
    %v539 = vpack.c.b16 %v463, %v459
    %v540 = vpack.c.b16 %v464, %v460
    %v541 = vpack.c.b16 %v465, %v461
    %v542 = vpack.c.b16 %v466, %v462
    %v543 = vpack.c.b16 %v471, %v467
    %v544 = vpack.c.b16 %v472, %v468
    %v545 = vpack.c.b16 %v473, %v469
    %v546 = vpack.c.b16 %v474, %v470
    %v547 = vpack.c.b16 %v479, %v475
    %v548 = vpack.c.b16 %v480, %v476
    %v549 = vpack.c.b16 %v481, %v477
    %v550 = vpack.c.b16 %v482, %v478
    %v551 = vpack.c.b16 %v487, %v483
    %v552 = vpack.c.b16 %v488, %v484
    %v553 = vpack.c.b16 %v489, %v485
    %v554 = vpack.c.b16 %v490, %v486
    %619 = vmatprep.subr.bf16.mxu0 %v520
    %620 = vmatpush1.bf16.msra.mxu0 %v519
    %621 = vmatprep.subr.bf16.mxu0 %v516
    %622 = vmatpush1.bf16.msra.mxu0 %v515
    %623 = vmatprep.subr.bf16.mxu0 %v512
    %624 = vmatpush1.bf16.msra.mxu0 %v511
    %625 = vmatprep.subr.bf16.mxu0 %v508
    %626 = vmatpush1.bf16.msra.mxu0 %v507
    %627 = vmatprep.subr.bf16.mxu0 %v504
    %628 = vmatpush1.bf16.msra.mxu0 %v503
    %629 = vmatprep.subr.bf16.mxu0 %v500
    %630 = vmatpush1.bf16.msra.mxu0 %v499
    %631 = vmatprep.subr.bf16.mxu0 %v496
    %632 = vmatpush1.bf16.msra.mxu0 %v495
    %633 = vmatprep.subr.bf16.mxu0 %v492
    %634 = vmatpush1.bf16.msra.mxu0 %v491
    %635 = vmatprep.subr.bf16.mxu0 %v552
    %636 = vmatpush2.bf16.msra.mxu0 %v551
    %637 = vmatprep.subr.bf16.mxu0 %v548
    %638 = vmatpush2.bf16.msra.mxu0 %v547
    %639 = vmatprep.subr.bf16.mxu0 %v544
    %640 = vmatpush2.bf16.msra.mxu0 %v543
    %641 = vmatprep.subr.bf16.mxu0 %v540
    %642 = vmatpush2.bf16.msra.mxu0 %v539
    %643 = vmatprep.subr.bf16.mxu0 %v536
    %644 = vmatpush2.bf16.msra.mxu0 %v535
    %645 = vmatprep.subr.bf16.mxu0 %v532
    %646 = vmatpush2.bf16.msra.mxu0 %v531
    %647 = vmatprep.subr.bf16.mxu0 %v528
    %648 = vmatpush2.bf16.msra.mxu0 %v527
    %649 = vmatprep.subr.bf16.mxu0 %v524
    %650 = vmatpush2.bf16.msra.mxu0 %v523
    %651 = vmatprep.mubr.bf16.mxu0 %v166
    %652 = vmatmul.mubr.bf16.gmra.mxu0 %v165
    %v653 = vpop.f32.mrf.mxu0
    %v654 = vadd.f32 %v282, %v653
    %v655 = vpop.f32.mrf.mxu0
    %v656 = vadd.f32 %v286, %v655
    %v657 = vpop.f32.mrf.mxu0
    %v658 = vadd.f32 %v282, %v657
    %v659 = vpop.f32.mrf.mxu0
    %v660 = vadd.f32 %v286, %v659
    %661 = vmatprep.mubr.bf16.mxu0 %v168
    %662 = vmatmul.mubr.bf16.gmra.mxu0 %v167
    %v663 = vpop.f32.mrf.mxu0
    %v664 = vadd.f32 %v282, %v663
    %v665 = vpop.f32.mrf.mxu0
    %v666 = vadd.f32 %v286, %v665
    %v667 = vpop.f32.mrf.mxu0
    %v668 = vadd.f32 %v282, %v667
    %v669 = vpop.f32.mrf.mxu0
    %v670 = vadd.f32 %v286, %v669
    %671 = vmatprep.mubr.bf16.mxu0 %v170
    %672 = vmatmul.mubr.bf16.gmra.mxu0 %v169
    %v673 = vpop.f32.mrf.mxu0
    %v674 = vadd.f32 %v282, %v673
    %v675 = vpop.f32.mrf.mxu0
    %v676 = vadd.f32 %v286, %v675
    %v677 = vpop.f32.mrf.mxu0
    %v678 = vadd.f32 %v282, %v677
    %v679 = vpop.f32.mrf.mxu0
    %v680 = vadd.f32 %v286, %v679
    %681 = vmatprep.mubr.bf16.mxu0 %v172
    %682 = vmatmul.mubr.bf16.gmra.mxu0 %v171
    %v683 = vpop.f32.mrf.mxu0
    %v684 = vadd.f32 %v282, %v683
    %v685 = vpop.f32.mrf.mxu0
    %v686 = vadd.f32 %v286, %v685
    %v687 = vpop.f32.mrf.mxu0
    %v688 = vadd.f32 %v282, %v687
    %v689 = vpop.f32.mrf.mxu0
    %v690 = vadd.f32 %v286, %v689
    %691 = vmatprep.mubr.bf16.mxu0 %v174
    %692 = vmatmul.mubr.bf16.gmra.mxu0 %v173
    %v693 = vpop.f32.mrf.mxu0
    %v694 = vadd.f32 %v282, %v693
    %v695 = vpop.f32.mrf.mxu0
    %v696 = vadd.f32 %v286, %v695
    %v697 = vpop.f32.mrf.mxu0
    %v698 = vadd.f32 %v282, %v697
    %v699 = vpop.f32.mrf.mxu0
    %v700 = vadd.f32 %v286, %v699
    %701 = vmatprep.mubr.bf16.mxu0 %v176
    %702 = vmatmul.mubr.bf16.gmra.mxu0 %v175
    %v703 = vpop.f32.mrf.mxu0
    %v704 = vadd.f32 %v282, %v703
    %v705 = vpop.f32.mrf.mxu0
    %v706 = vadd.f32 %v286, %v705
    %v707 = vpop.f32.mrf.mxu0
    %v708 = vadd.f32 %v282, %v707
    %v709 = vpop.f32.mrf.mxu0
    %v710 = vadd.f32 %v286, %v709
    %711 = vmatprep.mubr.bf16.mxu0 %v178
    %712 = vmatmul.mubr.bf16.gmra.mxu0 %v177
    %v713 = vpop.f32.mrf.mxu0
    %v714 = vadd.f32 %v282, %v713
    %v715 = vpop.f32.mrf.mxu0
    %v716 = vadd.f32 %v286, %v715
    %v717 = vpop.f32.mrf.mxu0
    %v718 = vadd.f32 %v282, %v717
    %v719 = vpop.f32.mrf.mxu0
    %v720 = vadd.f32 %v286, %v719
    %721 = vmatprep.mubr.bf16.mxu0 %v180
    %722 = vmatmul.mubr.bf16.gmra.mxu0 %v179
    %v723 = vpop.f32.mrf.mxu0
    %v724 = vadd.f32 %v282, %v723
    %v725 = vpop.f32.mrf.mxu0
    %v726 = vadd.f32 %v286, %v725
    %v727 = vpop.f32.mrf.mxu0
    %v728 = vadd.f32 %v282, %v727
    %v729 = vpop.f32.mrf.mxu0
    %v730 = vadd.f32 %v286, %v729
    %731 = vmatprep.mubr.bf16.mxu0 %v182
    %732 = vmatmul.mubr.bf16.gmra.mxu0 %v181
    %v733 = vpop.f32.mrf.mxu0
    %v734 = vadd.f32 %v282, %v733
    %v735 = vpop.f32.mrf.mxu0
    %v736 = vadd.f32 %v286, %v735
    %v737 = vpop.f32.mrf.mxu0
    %v738 = vadd.f32 %v282, %v737
    %v739 = vpop.f32.mrf.mxu0
    %v740 = vadd.f32 %v286, %v739
    %741 = vmatprep.mubr.bf16.mxu0 %v184
    %742 = vmatmul.mubr.bf16.gmra.mxu0 %v183
    %v743 = vpop.f32.mrf.mxu0
    %v744 = vadd.f32 %v282, %v743
    %v745 = vpop.f32.mrf.mxu0
    %v746 = vadd.f32 %v286, %v745
    %v747 = vpop.f32.mrf.mxu0
    %v748 = vadd.f32 %v282, %v747
    %v749 = vpop.f32.mrf.mxu0
    %v750 = vadd.f32 %v286, %v749
    %751 = vmatprep.mubr.bf16.mxu0 %v186
    %752 = vmatmul.mubr.bf16.gmra.mxu0 %v185
    %v753 = vpop.f32.mrf.mxu0
    %v754 = vadd.f32 %v282, %v753
    %v755 = vpop.f32.mrf.mxu0
    %v756 = vadd.f32 %v286, %v755
    %v757 = vpop.f32.mrf.mxu0
    %v758 = vadd.f32 %v282, %v757
    %v759 = vpop.f32.mrf.mxu0
    %v760 = vadd.f32 %v286, %v759
    %761 = vmatprep.mubr.bf16.mxu0 %v188
    %762 = vmatmul.mubr.bf16.gmra.mxu0 %v187
    %v763 = vpop.f32.mrf.mxu0
    %v764 = vadd.f32 %v282, %v763
    %v765 = vpop.f32.mrf.mxu0
    %v766 = vadd.f32 %v286, %v765
    %v767 = vpop.f32.mrf.mxu0
    %v768 = vadd.f32 %v282, %v767
    %v769 = vpop.f32.mrf.mxu0
    %v770 = vadd.f32 %v286, %v769
    %771 = vmatprep.mubr.bf16.mxu0 %v190
    %772 = vmatmul.mubr.bf16.gmra.mxu0 %v189
    %v773 = vpop.f32.mrf.mxu0
    %v774 = vadd.f32 %v282, %v773
    %v775 = vpop.f32.mrf.mxu0
    %v776 = vadd.f32 %v286, %v775
    %v777 = vpop.f32.mrf.mxu0
    %v778 = vadd.f32 %v282, %v777
    %v779 = vpop.f32.mrf.mxu0
    %v780 = vadd.f32 %v286, %v779
    %781 = vmatprep.mubr.bf16.mxu0 %v192
    %782 = vmatmul.mubr.bf16.gmra.mxu0 %v191
    %v783 = vpop.f32.mrf.mxu0
    %v784 = vadd.f32 %v282, %v783
    %v785 = vpop.f32.mrf.mxu0
    %v786 = vadd.f32 %v286, %v785
    %v787 = vpop.f32.mrf.mxu0
    %v788 = vadd.f32 %v282, %v787
    %v789 = vpop.f32.mrf.mxu0
    %v790 = vadd.f32 %v286, %v789
    %791 = vmatprep.mubr.bf16.mxu0 %v194
    %792 = vmatmul.mubr.bf16.gmra.mxu0 %v193
    %v793 = vpop.f32.mrf.mxu0
    %v794 = vadd.f32 %v282, %v793
    %v795 = vpop.f32.mrf.mxu0
    %v796 = vadd.f32 %v286, %v795
    %v797 = vpop.f32.mrf.mxu0
    %v798 = vadd.f32 %v282, %v797
    %v799 = vpop.f32.mrf.mxu0
    %v800 = vadd.f32 %v286, %v799
    %801 = vmatprep.mubr.bf16.mxu0 %v196
    %802 = vmatmul.mubr.bf16.gmra.mxu0 %v195
    %v803 = vpop.f32.mrf.mxu0
    %v804 = vadd.f32 %v282, %v803
    %v805 = vpop.f32.mrf.mxu0
    %v806 = vadd.f32 %v286, %v805
    %v807 = vpop.f32.mrf.mxu0
    %v808 = vadd.f32 %v282, %v807
    %v809 = vpop.f32.mrf.mxu0
    %v810 = vadd.f32 %v286, %v809
    %811 = vmatprep.mubr.bf16.mxu0 %v198
    %812 = vmatmul.mubr.bf16.gmra.mxu0 %v197
    %v813 = vpop.f32.mrf.mxu0
    %v814 = vadd.f32 %v282, %v813
    %v815 = vpop.f32.mrf.mxu0
    %v816 = vadd.f32 %v286, %v815
    %v817 = vpop.f32.mrf.mxu0
    %v818 = vadd.f32 %v282, %v817
    %v819 = vpop.f32.mrf.mxu0
    %v820 = vadd.f32 %v286, %v819
    %821 = vmatprep.mubr.bf16.mxu0 %v200
    %822 = vmatmul.mubr.bf16.gmra.mxu0 %v199
    %v823 = vpop.f32.mrf.mxu0
    %v824 = vadd.f32 %v282, %v823
    %v825 = vpop.f32.mrf.mxu0
    %v826 = vadd.f32 %v286, %v825
    %v827 = vpop.f32.mrf.mxu0
    %v828 = vadd.f32 %v282, %v827
    %v829 = vpop.f32.mrf.mxu0
    %v830 = vadd.f32 %v286, %v829
    %831 = vmatprep.mubr.bf16.mxu0 %v202
    %832 = vmatmul.mubr.bf16.gmra.mxu0 %v201
    %v833 = vpop.f32.mrf.mxu0
    %v834 = vadd.f32 %v282, %v833
    %v835 = vpop.f32.mrf.mxu0
    %v836 = vadd.f32 %v286, %v835
    %v837 = vpop.f32.mrf.mxu0
    %v838 = vadd.f32 %v282, %v837
    %v839 = vpop.f32.mrf.mxu0
    %v840 = vadd.f32 %v286, %v839
    %841 = vmatprep.mubr.bf16.mxu0 %v204
    %842 = vmatmul.mubr.bf16.gmra.mxu0 %v203
    %v843 = vpop.f32.mrf.mxu0
    %v844 = vadd.f32 %v282, %v843
    %v845 = vpop.f32.mrf.mxu0
    %v846 = vadd.f32 %v286, %v845
    %v847 = vpop.f32.mrf.mxu0
    %v848 = vadd.f32 %v282, %v847
    %v849 = vpop.f32.mrf.mxu0
    %v850 = vadd.f32 %v286, %v849
    %851 = vmatprep.mubr.bf16.mxu0 %v206
    %852 = vmatmul.mubr.bf16.gmra.mxu0 %v205
    %v853 = vpop.f32.mrf.mxu0
    %v854 = vadd.f32 %v282, %v853
    %v855 = vpop.f32.mrf.mxu0
    %v856 = vadd.f32 %v286, %v855
    %v857 = vpop.f32.mrf.mxu0
    %v858 = vadd.f32 %v282, %v857
    %v859 = vpop.f32.mrf.mxu0
    %v860 = vadd.f32 %v286, %v859
    %861 = vmatprep.mubr.bf16.mxu0 %v208
    %862 = vmatmul.mubr.bf16.gmra.mxu0 %v207
    %v863 = vpop.f32.mrf.mxu0
    %v864 = vadd.f32 %v282, %v863
    %v865 = vpop.f32.mrf.mxu0
    %v866 = vadd.f32 %v286, %v865
    %v867 = vpop.f32.mrf.mxu0
    %v868 = vadd.f32 %v282, %v867
    %v869 = vpop.f32.mrf.mxu0
    %v870 = vadd.f32 %v286, %v869
    %871 = vmatprep.mubr.bf16.mxu0 %v210
    %872 = vmatmul.mubr.bf16.gmra.mxu0 %v209
    %v873 = vpop.f32.mrf.mxu0
    %v874 = vadd.f32 %v282, %v873
    %v875 = vpop.f32.mrf.mxu0
    %v876 = vadd.f32 %v286, %v875
    %v877 = vpop.f32.mrf.mxu0
    %v878 = vadd.f32 %v282, %v877
    %v879 = vpop.f32.mrf.mxu0
    %v880 = vadd.f32 %v286, %v879
    %881 = vmatprep.mubr.bf16.mxu0 %v212
    %882 = vmatmul.mubr.bf16.gmra.mxu0 %v211
    %v883 = vpop.f32.mrf.mxu0
    %v884 = vadd.f32 %v282, %v883
    %v885 = vpop.f32.mrf.mxu0
    %v886 = vadd.f32 %v286, %v885
    %v887 = vpop.f32.mrf.mxu0
    %v888 = vadd.f32 %v282, %v887
    %v889 = vpop.f32.mrf.mxu0
    %v890 = vadd.f32 %v286, %v889
    %891 = vdwg.mxu0
    %892 = vmatprep.subr.bf16.mxu0 %v522
    %893 = vmatpush1.bf16.msra.mxu0 %v521
    %894 = vmatprep.subr.bf16.mxu0 %v518
    %895 = vmatpush1.bf16.msra.mxu0 %v517
    %896 = vmatprep.subr.bf16.mxu0 %v514
    %897 = vmatpush1.bf16.msra.mxu0 %v513
    %898 = vmatprep.subr.bf16.mxu0 %v510
    %899 = vmatpush1.bf16.msra.mxu0 %v509
    %900 = vmatprep.subr.bf16.mxu0 %v506
    %901 = vmatpush1.bf16.msra.mxu0 %v505
    %902 = vmatprep.subr.bf16.mxu0 %v502
    %903 = vmatpush1.bf16.msra.mxu0 %v501
    %904 = vmatprep.subr.bf16.mxu0 %v498
    %905 = vmatpush1.bf16.msra.mxu0 %v497
    %906 = vmatprep.subr.bf16.mxu0 %v494
    %907 = vmatpush1.bf16.msra.mxu0 %v493
    %908 = vmatprep.subr.bf16.mxu0 %v554
    %909 = vmatpush2.bf16.msra.mxu0 %v553
    %910 = vmatprep.subr.bf16.mxu0 %v550
    %911 = vmatpush2.bf16.msra.mxu0 %v549
    %912 = vmatprep.subr.bf16.mxu0 %v546
    %913 = vmatpush2.bf16.msra.mxu0 %v545
    %914 = vmatprep.subr.bf16.mxu0 %v542
    %915 = vmatpush2.bf16.msra.mxu0 %v541
    %916 = vmatprep.subr.bf16.mxu0 %v538
    %917 = vmatpush2.bf16.msra.mxu0 %v537
    %918 = vmatprep.subr.bf16.mxu0 %v534
    %919 = vmatpush2.bf16.msra.mxu0 %v533
    %920 = vmatprep.subr.bf16.mxu0 %v530
    %921 = vmatpush2.bf16.msra.mxu0 %v529
    %922 = vmatprep.subr.bf16.mxu0 %v526
    %923 = vmatpush2.bf16.msra.mxu0 %v525
    %924 = vmatprep.mubr.bf16.mxu0 %v166
    %925 = vmatmul.mubr.bf16.gmra.mxu0 %v165
    %v926 = vpop.f32.mrf.mxu0
    %v927 = vadd.f32 %v290, %v926
    %v928 = vpop.f32.mrf.mxu0
    %v929 = vadd.f32 %v294, %v928
    %v930 = vpop.f32.mrf.mxu0
    %v931 = vadd.f32 %v290, %v930
    %v932 = vpop.f32.mrf.mxu0
    %v933 = vadd.f32 %v294, %v932
    %934 = vmatprep.mubr.bf16.mxu0 %v168
    %935 = vmatmul.mubr.bf16.gmra.mxu0 %v167
    %v936 = vpop.f32.mrf.mxu0
    %v937 = vadd.f32 %v290, %v936
    %v938 = vpop.f32.mrf.mxu0
    %v939 = vadd.f32 %v294, %v938
    %v940 = vpop.f32.mrf.mxu0
    %v941 = vadd.f32 %v290, %v940
    %v942 = vpop.f32.mrf.mxu0
    %v943 = vadd.f32 %v294, %v942
    %944 = vmatprep.mubr.bf16.mxu0 %v170
    %945 = vmatmul.mubr.bf16.gmra.mxu0 %v169
    %v946 = vpop.f32.mrf.mxu0
    %v947 = vadd.f32 %v290, %v946
    %v948 = vpop.f32.mrf.mxu0
    %v949 = vadd.f32 %v294, %v948
    %v950 = vpop.f32.mrf.mxu0
    %v951 = vadd.f32 %v290, %v950
    %v952 = vpop.f32.mrf.mxu0
    %v953 = vadd.f32 %v294, %v952
    %954 = vmatprep.mubr.bf16.mxu0 %v172
    %955 = vmatmul.mubr.bf16.gmra.mxu0 %v171
    %v956 = vpop.f32.mrf.mxu0
    %v957 = vadd.f32 %v290, %v956
    %v958 = vpop.f32.mrf.mxu0
    %v959 = vadd.f32 %v294, %v958
    %v960 = vpop.f32.mrf.mxu0
    %v961 = vadd.f32 %v290, %v960
    %v962 = vpop.f32.mrf.mxu0
    %v963 = vadd.f32 %v294, %v962
    %964 = vmatprep.mubr.bf16.mxu0 %v174
    %965 = vmatmul.mubr.bf16.gmra.mxu0 %v173
    %v966 = vpop.f32.mrf.mxu0
    %v967 = vadd.f32 %v290, %v966
    %v968 = vpop.f32.mrf.mxu0
    %v969 = vadd.f32 %v294, %v968
    %v970 = vpop.f32.mrf.mxu0
    %v971 = vadd.f32 %v290, %v970
    %v972 = vpop.f32.mrf.mxu0
    %v973 = vadd.f32 %v294, %v972
    %974 = vmatprep.mubr.bf16.mxu0 %v176
    %975 = vmatmul.mubr.bf16.gmra.mxu0 %v175
    %v976 = vpop.f32.mrf.mxu0
    %v977 = vadd.f32 %v290, %v976
    %v978 = vpop.f32.mrf.mxu0
    %v979 = vadd.f32 %v294, %v978
    %v980 = vpop.f32.mrf.mxu0
    %v981 = vadd.f32 %v290, %v980
    %v982 = vpop.f32.mrf.mxu0
    %v983 = vadd.f32 %v294, %v982
    %984 = vmatprep.mubr.bf16.mxu0 %v178
    %985 = vmatmul.mubr.bf16.gmra.mxu0 %v177
    %v986 = vpop.f32.mrf.mxu0
    %v987 = vadd.f32 %v290, %v986
    %v988 = vpop.f32.mrf.mxu0
    %v989 = vadd.f32 %v294, %v988
    %v990 = vpop.f32.mrf.mxu0
    %v991 = vadd.f32 %v290, %v990
    %v992 = vpop.f32.mrf.mxu0
    %v993 = vadd.f32 %v294, %v992
    %994 = vmatprep.mubr.bf16.mxu0 %v180
    %995 = vmatmul.mubr.bf16.gmra.mxu0 %v179
    %v996 = vpop.f32.mrf.mxu0
    %v997 = vadd.f32 %v290, %v996
    %v998 = vpop.f32.mrf.mxu0
    %v999 = vadd.f32 %v294, %v998
    %v1000 = vpop.f32.mrf.mxu0
    %v1001 = vadd.f32 %v290, %v1000
    %v1002 = vpop.f32.mrf.mxu0
    %v1003 = vadd.f32 %v294, %v1002
    %1004 = vmatprep.mubr.bf16.mxu0 %v182
    %1005 = vmatmul.mubr.bf16.gmra.mxu0 %v181
    %v1006 = vpop.f32.mrf.mxu0
    %v1007 = vadd.f32 %v290, %v1006
    %v1008 = vpop.f32.mrf.mxu0
    %v1009 = vadd.f32 %v294, %v1008
    %v1010 = vpop.f32.mrf.mxu0
    %v1011 = vadd.f32 %v290, %v1010
    %v1012 = vpop.f32.mrf.mxu0
    %v1013 = vadd.f32 %v294, %v1012
    %1014 = vmatprep.mubr.bf16.mxu0 %v184
    %1015 = vmatmul.mubr.bf16.gmra.mxu0 %v183
    %v1016 = vpop.f32.mrf.mxu0
    %v1017 = vadd.f32 %v290, %v1016
    %v1018 = vpop.f32.mrf.mxu0
    %v1019 = vadd.f32 %v294, %v1018
    %v1020 = vpop.f32.mrf.mxu0
    %v1021 = vadd.f32 %v290, %v1020
    %v1022 = vpop.f32.mrf.mxu0
    %v1023 = vadd.f32 %v294, %v1022
    %1024 = vmatprep.mubr.bf16.mxu0 %v186
    %1025 = vmatmul.mubr.bf16.gmra.mxu0 %v185
    %v1026 = vpop.f32.mrf.mxu0
    %v1027 = vadd.f32 %v290, %v1026
    %v1028 = vpop.f32.mrf.mxu0
    %v1029 = vadd.f32 %v294, %v1028
    %v1030 = vpop.f32.mrf.mxu0
    %v1031 = vadd.f32 %v290, %v1030
    %v1032 = vpop.f32.mrf.mxu0
    %v1033 = vadd.f32 %v294, %v1032
    %1034 = vmatprep.mubr.bf16.mxu0 %v188
    %1035 = vmatmul.mubr.bf16.gmra.mxu0 %v187
    %v1036 = vpop.f32.mrf.mxu0
    %v1037 = vadd.f32 %v290, %v1036
    %v1038 = vpop.f32.mrf.mxu0
    %v1039 = vadd.f32 %v294, %v1038
    %v1040 = vpop.f32.mrf.mxu0
    %v1041 = vadd.f32 %v290, %v1040
    %v1042 = vpop.f32.mrf.mxu0
    %v1043 = vadd.f32 %v294, %v1042
    %1044 = vmatprep.mubr.bf16.mxu0 %v190
    %1045 = vmatmul.mubr.bf16.gmra.mxu0 %v189
    %v1046 = vpop.f32.mrf.mxu0
    %v1047 = vadd.f32 %v290, %v1046
    %v1048 = vpop.f32.mrf.mxu0
    %v1049 = vadd.f32 %v294, %v1048
    %v1050 = vpop.f32.mrf.mxu0
    %v1051 = vadd.f32 %v290, %v1050
    %v1052 = vpop.f32.mrf.mxu0
    %v1053 = vadd.f32 %v294, %v1052
    %1054 = vmatprep.mubr.bf16.mxu0 %v192
    %1055 = vmatmul.mubr.bf16.gmra.mxu0 %v191
    %v1056 = vpop.f32.mrf.mxu0
    %v1057 = vadd.f32 %v290, %v1056
    %v1058 = vpop.f32.mrf.mxu0
    %v1059 = vadd.f32 %v294, %v1058
    %v1060 = vpop.f32.mrf.mxu0
    %v1061 = vadd.f32 %v290, %v1060
    %v1062 = vpop.f32.mrf.mxu0
    %v1063 = vadd.f32 %v294, %v1062
    %1064 = vmatprep.mubr.bf16.mxu0 %v194
    %1065 = vmatmul.mubr.bf16.gmra.mxu0 %v193
    %v1066 = vpop.f32.mrf.mxu0
    %v1067 = vadd.f32 %v290, %v1066
    %v1068 = vpop.f32.mrf.mxu0
    %v1069 = vadd.f32 %v294, %v1068
    %v1070 = vpop.f32.mrf.mxu0
    %v1071 = vadd.f32 %v290, %v1070
    %v1072 = vpop.f32.mrf.mxu0
    %v1073 = vadd.f32 %v294, %v1072
    %1074 = vmatprep.mubr.bf16.mxu0 %v196
    %1075 = vmatmul.mubr.bf16.gmra.mxu0 %v195
    %v1076 = vpop.f32.mrf.mxu0
    %v1077 = vadd.f32 %v290, %v1076
    %v1078 = vpop.f32.mrf.mxu0
    %v1079 = vadd.f32 %v294, %v1078
    %v1080 = vpop.f32.mrf.mxu0
    %v1081 = vadd.f32 %v290, %v1080
    %v1082 = vpop.f32.mrf.mxu0
    %v1083 = vadd.f32 %v294, %v1082
    %1084 = vmatprep.mubr.bf16.mxu0 %v198
    %1085 = vmatmul.mubr.bf16.gmra.mxu0 %v197
    %v1086 = vpop.f32.mrf.mxu0
    %v1087 = vadd.f32 %v290, %v1086
    %v1088 = vpop.f32.mrf.mxu0
    %v1089 = vadd.f32 %v294, %v1088
    %v1090 = vpop.f32.mrf.mxu0
    %v1091 = vadd.f32 %v290, %v1090
    %v1092 = vpop.f32.mrf.mxu0
    %v1093 = vadd.f32 %v294, %v1092
    %1094 = vmatprep.mubr.bf16.mxu0 %v200
    %1095 = vmatmul.mubr.bf16.gmra.mxu0 %v199
    %v1096 = vpop.f32.mrf.mxu0
    %v1097 = vadd.f32 %v290, %v1096
    %v1098 = vpop.f32.mrf.mxu0
    %v1099 = vadd.f32 %v294, %v1098
    %v1100 = vpop.f32.mrf.mxu0
    %v1101 = vadd.f32 %v290, %v1100
    %v1102 = vpop.f32.mrf.mxu0
    %v1103 = vadd.f32 %v294, %v1102
    %1104 = vmatprep.mubr.bf16.mxu0 %v202
    %1105 = vmatmul.mubr.bf16.gmra.mxu0 %v201
    %v1106 = vpop.f32.mrf.mxu0
    %v1107 = vadd.f32 %v290, %v1106
    %v1108 = vpop.f32.mrf.mxu0
    %v1109 = vadd.f32 %v294, %v1108
    %v1110 = vpop.f32.mrf.mxu0
    %v1111 = vadd.f32 %v290, %v1110
    %v1112 = vpop.f32.mrf.mxu0
    %v1113 = vadd.f32 %v294, %v1112
    %1114 = vmatprep.mubr.bf16.mxu0 %v204
    %1115 = vmatmul.mubr.bf16.gmra.mxu0 %v203
    %v1116 = vpop.f32.mrf.mxu0
    %v1117 = vadd.f32 %v290, %v1116
    %v1118 = vpop.f32.mrf.mxu0
    %v1119 = vadd.f32 %v294, %v1118
    %v1120 = vpop.f32.mrf.mxu0
    %v1121 = vadd.f32 %v290, %v1120
    %v1122 = vpop.f32.mrf.mxu0
    %v1123 = vadd.f32 %v294, %v1122
    %1124 = vmatprep.mubr.bf16.mxu0 %v206
    %1125 = vmatmul.mubr.bf16.gmra.mxu0 %v205
    %v1126 = vpop.f32.mrf.mxu0
    %v1127 = vadd.f32 %v290, %v1126
    %v1128 = vpop.f32.mrf.mxu0
    %v1129 = vadd.f32 %v294, %v1128
    %v1130 = vpop.f32.mrf.mxu0
    %v1131 = vadd.f32 %v290, %v1130
    %v1132 = vpop.f32.mrf.mxu0
    %v1133 = vadd.f32 %v294, %v1132
    %1134 = vmatprep.mubr.bf16.mxu0 %v208
    %1135 = vmatmul.mubr.bf16.gmra.mxu0 %v207
    %v1136 = vpop.f32.mrf.mxu0
    %v1137 = vadd.f32 %v290, %v1136
    %v1138 = vpop.f32.mrf.mxu0
    %v1139 = vadd.f32 %v294, %v1138
    %v1140 = vpop.f32.mrf.mxu0
    %v1141 = vadd.f32 %v290, %v1140
    %v1142 = vpop.f32.mrf.mxu0
    %v1143 = vadd.f32 %v294, %v1142
    %1144 = vmatprep.mubr.bf16.mxu0 %v210
    %1145 = vmatmul.mubr.bf16.gmra.mxu0 %v209
    %v1146 = vpop.f32.mrf.mxu0
    %v1147 = vadd.f32 %v290, %v1146
    %v1148 = vpop.f32.mrf.mxu0
    %v1149 = vadd.f32 %v294, %v1148
    %v1150 = vpop.f32.mrf.mxu0
    %v1151 = vadd.f32 %v290, %v1150
    %v1152 = vpop.f32.mrf.mxu0
    %v1153 = vadd.f32 %v294, %v1152
    %1154 = vmatprep.mubr.bf16.mxu0 %v212
    %1155 = vmatmul.mubr.bf16.gmra.mxu0 %v211
    %v1156 = vpop.f32.mrf.mxu0
    %v1157 = vadd.f32 %v290, %v1156
    %v1158 = vpop.f32.mrf.mxu0
    %v1159 = vadd.f32 %v294, %v1158
    %v1160 = vpop.f32.mrf.mxu0
    %v1161 = vadd.f32 %v290, %v1160
    %v1162 = vpop.f32.mrf.mxu0
    %v1163 = vadd.f32 %v294, %v1162
    %1164 = vdwg.mxu0
    %v1165 = vmul.f32 %v654, 0.2
    %v1166 = vmul.f32 %v656, 0.2
    %v1167 = vmul.f32 %v927, 0.2
    %v1168 = vmul.f32 %v929, 0.2
    %v1169 = vmul.f32 %v658, 0.2
    %v1170 = vmul.f32 %v660, 0.2
    %v1171 = vmul.f32 %v931, 0.2
    %v1172 = vmul.f32 %v933, 0.2
    %v1173 = vmul.f32 %v664, 0.2
    %v1174 = vmul.f32 %v666, 0.2
    %v1175 = vmul.f32 %v937, 0.2
    %v1176 = vmul.f32 %v939, 0.2
    %v1177 = vmul.f32 %v668, 0.2
    %v1178 = vmul.f32 %v670, 0.2
    %v1179 = vmul.f32 %v941, 0.2
    %v1180 = vmul.f32 %v943, 0.2
    %v1181 = vmul.f32 %v674, 0.2
    %v1182 = vmul.f32 %v676, 0.2
    %v1183 = vmul.f32 %v947, 0.2
    %v1184 = vmul.f32 %v949, 0.2
    %v1185 = vmul.f32 %v678, 0.2
    %v1186 = vmul.f32 %v680, 0.2
    %v1187 = vmul.f32 %v951, 0.2
    %v1188 = vmul.f32 %v953, 0.2
    %v1189 = vmul.f32 %v684, 0.2
    %v1190 = vmul.f32 %v686, 0.2
    %v1191 = vmul.f32 %v957, 0.2
    %v1192 = vmul.f32 %v959, 0.2
    %v1193 = vmul.f32 %v688, 0.2
    %v1194 = vmul.f32 %v690, 0.2
    %v1195 = vmul.f32 %v961, 0.2
    %v1196 = vmul.f32 %v963, 0.2
    %v1197 = vmul.f32 %v694, 0.2
    %v1198 = vmul.f32 %v696, 0.2
    %v1199 = vmul.f32 %v967, 0.2
    %v1200 = vmul.f32 %v969, 0.2
    %v1201 = vmul.f32 %v698, 0.2
    %v1202 = vmul.f32 %v700, 0.2
    %v1203 = vmul.f32 %v971, 0.2
    %v1204 = vmul.f32 %v973, 0.2
    %v1205 = vmul.f32 %v704, 0.2
    %v1206 = vmul.f32 %v706, 0.2
    %v1207 = vmul.f32 %v977, 0.2
    %v1208 = vmul.f32 %v979, 0.2
    %v1209 = vmul.f32 %v708, 0.2
    %v1210 = vmul.f32 %v710, 0.2
    %v1211 = vmul.f32 %v981, 0.2
    %v1212 = vmul.f32 %v983, 0.2
    %v1213 = vmul.f32 %v714, 0.2
    %v1214 = vmul.f32 %v716, 0.2
    %v1215 = vmul.f32 %v987, 0.2
    %v1216 = vmul.f32 %v989, 0.2
    %v1217 = vmul.f32 %v718, 0.2
    %v1218 = vmul.f32 %v720, 0.2
    %v1219 = vmul.f32 %v991, 0.2
    %v1220 = vmul.f32 %v993, 0.2
    %v1221 = vmul.f32 %v724, 0.2
    %v1222 = vmul.f32 %v726, 0.2
    %v1223 = vmul.f32 %v997, 0.2
    %v1224 = vmul.f32 %v999, 0.2
    %v1225 = vmul.f32 %v728, 0.2
    %v1226 = vmul.f32 %v730, 0.2
    %v1227 = vmul.f32 %v1001, 0.2
    %v1228 = vmul.f32 %v1003, 0.2
    %v1229 = vmul.f32 %v734, 0.2
    %v1230 = vmul.f32 %v736, 0.2
    %v1231 = vmul.f32 %v1007, 0.2
    %v1232 = vmul.f32 %v1009, 0.2
    %v1233 = vmul.f32 %v738, 0.2
    %v1234 = vmul.f32 %v740, 0.2
    %v1235 = vmul.f32 %v1011, 0.2
    %v1236 = vmul.f32 %v1013, 0.2
    %v1237 = vmul.f32 %v744, 0.2
    %v1238 = vmul.f32 %v746, 0.2
    %v1239 = vmul.f32 %v1017, 0.2
    %v1240 = vmul.f32 %v1019, 0.2
    %v1241 = vmul.f32 %v748, 0.2
    %v1242 = vmul.f32 %v750, 0.2
    %v1243 = vmul.f32 %v1021, 0.2
    %v1244 = vmul.f32 %v1023, 0.2
    %v1245 = vmul.f32 %v754, 0.2
    %v1246 = vmul.f32 %v756, 0.2
    %v1247 = vmul.f32 %v1027, 0.2
    %v1248 = vmul.f32 %v1029, 0.2
    %v1249 = vmul.f32 %v758, 0.2
    %v1250 = vmul.f32 %v760, 0.2
    %v1251 = vmul.f32 %v1031, 0.2
    %v1252 = vmul.f32 %v1033, 0.2
    %v1253 = vmul.f32 %v764, 0.2
    %v1254 = vmul.f32 %v766, 0.2
    %v1255 = vmul.f32 %v1037, 0.2
    %v1256 = vmul.f32 %v1039, 0.2
    %v1257 = vmul.f32 %v768, 0.2
    %v1258 = vmul.f32 %v770, 0.2
    %v1259 = vmul.f32 %v1041, 0.2
    %v1260 = vmul.f32 %v1043, 0.2
    %v1261 = vmul.f32 %v774, 0.2
    %v1262 = vmul.f32 %v776, 0.2
    %v1263 = vmul.f32 %v1047, 0.2
    %v1264 = vmul.f32 %v1049, 0.2
    %v1265 = vmul.f32 %v778, 0.2
    %v1266 = vmul.f32 %v780, 0.2
    %v1267 = vmul.f32 %v1051, 0.2
    %v1268 = vmul.f32 %v1053, 0.2
    %v1269 = vmul.f32 %v784, 0.2
    %v1270 = vmul.f32 %v786, 0.2
    %v1271 = vmul.f32 %v1057, 0.2
    %v1272 = vmul.f32 %v1059, 0.2
    %v1273 = vmul.f32 %v788, 0.2
    %v1274 = vmul.f32 %v790, 0.2
    %v1275 = vmul.f32 %v1061, 0.2
    %v1276 = vmul.f32 %v1063, 0.2
    %v1277 = vmul.f32 %v794, 0.2
    %v1278 = vmul.f32 %v796, 0.2
    %v1279 = vmul.f32 %v1067, 0.2
    %v1280 = vmul.f32 %v1069, 0.2
    %v1281 = vmul.f32 %v798, 0.2
    %v1282 = vmul.f32 %v800, 0.2
    %v1283 = vmul.f32 %v1071, 0.2
    %v1284 = vmul.f32 %v1073, 0.2
    %v1285 = vmul.f32 %v804, 0.2
    %v1286 = vmul.f32 %v806, 0.2
    %v1287 = vmul.f32 %v1077, 0.2
    %v1288 = vmul.f32 %v1079, 0.2
    %v1289 = vmul.f32 %v808, 0.2
    %v1290 = vmul.f32 %v810, 0.2
    %v1291 = vmul.f32 %v1081, 0.2
    %v1292 = vmul.f32 %v1083, 0.2
    %v1293 = vmul.f32 %v814, 0.2
    %v1294 = vmul.f32 %v816, 0.2
    %v1295 = vmul.f32 %v1087, 0.2
    %v1296 = vmul.f32 %v1089, 0.2
    %v1297 = vmul.f32 %v818, 0.2
    %v1298 = vmul.f32 %v820, 0.2
    %v1299 = vmul.f32 %v1091, 0.2
    %v1300 = vmul.f32 %v1093, 0.2
    %v1301 = vmul.f32 %v824, 0.2
    %v1302 = vmul.f32 %v826, 0.2
    %v1303 = vmul.f32 %v1097, 0.2
    %v1304 = vmul.f32 %v1099, 0.2
    %v1305 = vmul.f32 %v828, 0.2
    %v1306 = vmul.f32 %v830, 0.2
    %v1307 = vmul.f32 %v1101, 0.2
    %v1308 = vmul.f32 %v1103, 0.2
    %v1309 = vmul.f32 %v834, 0.2
    %v1310 = vmul.f32 %v836, 0.2
    %v1311 = vmul.f32 %v1107, 0.2
    %v1312 = vmul.f32 %v1109, 0.2
    %v1313 = vmul.f32 %v838, 0.2
    %v1314 = vmul.f32 %v840, 0.2
    %v1315 = vmul.f32 %v1111, 0.2
    %v1316 = vmul.f32 %v1113, 0.2
    %v1317 = vmul.f32 %v844, 0.2
    %v1318 = vmul.f32 %v846, 0.2
    %v1319 = vmul.f32 %v1117, 0.2
    %v1320 = vmul.f32 %v1119, 0.2
    %v1321 = vmul.f32 %v848, 0.2
    %v1322 = vmul.f32 %v850, 0.2
    %v1323 = vmul.f32 %v1121, 0.2
    %v1324 = vmul.f32 %v1123, 0.2
    %v1325 = vmul.f32 %v854, 0.2
    %v1326 = vmul.f32 %v856, 0.2
    %v1327 = vmul.f32 %v1127, 0.2
    %v1328 = vmul.f32 %v1129, 0.2
    %v1329 = vmul.f32 %v858, 0.2
    %v1330 = vmul.f32 %v860, 0.2
    %v1331 = vmul.f32 %v1131, 0.2
    %v1332 = vmul.f32 %v1133, 0.2
    %v1333 = vmul.f32 %v864, 0.2
    %v1334 = vmul.f32 %v866, 0.2
    %v1335 = vmul.f32 %v1137, 0.2
    %v1336 = vmul.f32 %v1139, 0.2
    %v1337 = vmul.f32 %v868, 0.2
    %v1338 = vmul.f32 %v870, 0.2
    %v1339 = vmul.f32 %v1141, 0.2
    %v1340 = vmul.f32 %v1143, 0.2
    %v1341 = vmul.f32 %v874, 0.2
    %v1342 = vmul.f32 %v876, 0.2
    %v1343 = vmul.f32 %v1147, 0.2
    %v1344 = vmul.f32 %v1149, 0.2
    %v1345 = vmul.f32 %v878, 0.2
    %v1346 = vmul.f32 %v880, 0.2
    %v1347 = vmul.f32 %v1151, 0.2
    %v1348 = vmul.f32 %v1153, 0.2
    %v1349 = vmul.f32 %v884, 0.2
    %v1350 = vmul.f32 %v886, 0.2
    %v1351 = vmul.f32 %v1157, 0.2
    %v1352 = vmul.f32 %v1159, 0.2
    %v1353 = vmul.f32 %v888, 0.2
    %v1354 = vmul.f32 %v890, 0.2
    %v1355 = vmul.f32 %v1161, 0.2
    %v1356 = vmul.f32 %v1163, 0.2
    %v1357 = vmax.f32 %v654, %v1165
    %v1358 = vmax.f32 %v656, %v1166
    %v1359 = vmax.f32 %v927, %v1167
    %v1360 = vmax.f32 %v929, %v1168
    %v1361 = vmax.f32 %v658, %v1169
    %v1362 = vmax.f32 %v660, %v1170
    %v1363 = vmax.f32 %v931, %v1171
    %v1364 = vmax.f32 %v933, %v1172
    %v1365 = vmax.f32 %v664, %v1173
    %v1366 = vmax.f32 %v666, %v1174
    %v1367 = vmax.f32 %v937, %v1175
    %v1368 = vmax.f32 %v939, %v1176
    %v1369 = vmax.f32 %v668, %v1177
    %v1370 = vmax.f32 %v670, %v1178
    %v1371 = vmax.f32 %v941, %v1179
    %v1372 = vmax.f32 %v943, %v1180
    %v1373 = vmax.f32 %v674, %v1181
    %v1374 = vmax.f32 %v676, %v1182
    %v1375 = vmax.f32 %v947, %v1183
    %v1376 = vmax.f32 %v949, %v1184
    %v1377 = vmax.f32 %v678, %v1185
    %v1378 = vmax.f32 %v680, %v1186
    %v1379 = vmax.f32 %v951, %v1187
    %v1380 = vmax.f32 %v953, %v1188
    %v1381 = vmax.f32 %v684, %v1189
    %v1382 = vmax.f32 %v686, %v1190
    %v1383 = vmax.f32 %v957, %v1191
    %v1384 = vmax.f32 %v959, %v1192
    %v1385 = vmax.f32 %v688, %v1193
    %v1386 = vmax.f32 %v690, %v1194
    %v1387 = vmax.f32 %v961, %v1195
    %v1388 = vmax.f32 %v963, %v1196
    %v1389 = vmax.f32 %v694, %v1197
    %v1390 = vmax.f32 %v696, %v1198
    %v1391 = vmax.f32 %v967, %v1199
    %v1392 = vmax.f32 %v969, %v1200
    %v1393 = vmax.f32 %v698, %v1201
    %v1394 = vmax.f32 %v700, %v1202
    %v1395 = vmax.f32 %v971, %v1203
    %v1396 = vmax.f32 %v973, %v1204
    %v1397 = vmax.f32 %v704, %v1205
    %v1398 = vmax.f32 %v706, %v1206
    %v1399 = vmax.f32 %v977, %v1207
    %v1400 = vmax.f32 %v979, %v1208
    %v1401 = vmax.f32 %v708, %v1209
    %v1402 = vmax.f32 %v710, %v1210
    %v1403 = vmax.f32 %v981, %v1211
    %v1404 = vmax.f32 %v983, %v1212
    %v1405 = vmax.f32 %v714, %v1213
    %v1406 = vmax.f32 %v716, %v1214
    %v1407 = vmax.f32 %v987, %v1215
    %v1408 = vmax.f32 %v989, %v1216
    %v1409 = vmax.f32 %v718, %v1217
    %v1410 = vmax.f32 %v720, %v1218
    %v1411 = vmax.f32 %v991, %v1219
    %v1412 = vmax.f32 %v993, %v1220
    %v1413 = vmax.f32 %v724, %v1221
    %v1414 = vmax.f32 %v726, %v1222
    %v1415 = vmax.f32 %v997, %v1223
    %v1416 = vmax.f32 %v999, %v1224
    %v1417 = vmax.f32 %v728, %v1225
    %v1418 = vmax.f32 %v730, %v1226
    %v1419 = vmax.f32 %v1001, %v1227
    %v1420 = vmax.f32 %v1003, %v1228
    %v1421 = vmax.f32 %v734, %v1229
    %v1422 = vmax.f32 %v736, %v1230
    %v1423 = vmax.f32 %v1007, %v1231
    %v1424 = vmax.f32 %v1009, %v1232
    %v1425 = vmax.f32 %v738, %v1233
    %v1426 = vmax.f32 %v740, %v1234
    %v1427 = vmax.f32 %v1011, %v1235
    %v1428 = vmax.f32 %v1013, %v1236
    %v1429 = vmax.f32 %v744, %v1237
    %v1430 = vmax.f32 %v746, %v1238
    %v1431 = vmax.f32 %v1017, %v1239
    %v1432 = vmax.f32 %v1019, %v1240
    %v1433 = vmax.f32 %v748, %v1241
    %v1434 = vmax.f32 %v750, %v1242
    %v1435 = vmax.f32 %v1021, %v1243
    %v1436 = vmax.f32 %v1023, %v1244
    %v1437 = vmax.f32 %v754, %v1245
    %v1438 = vmax.f32 %v756, %v1246
    %v1439 = vmax.f32 %v1027, %v1247
    %v1440 = vmax.f32 %v1029, %v1248
    %v1441 = vmax.f32 %v758, %v1249
    %v1442 = vmax.f32 %v760, %v1250
    %v1443 = vmax.f32 %v1031, %v1251
    %v1444 = vmax.f32 %v1033, %v1252
    %v1445 = vmax.f32 %v764, %v1253
    %v1446 = vmax.f32 %v766, %v1254
    %v1447 = vmax.f32 %v1037, %v1255
    %v1448 = vmax.f32 %v1039, %v1256
    %v1449 = vmax.f32 %v768, %v1257
    %v1450 = vmax.f32 %v770, %v1258
    %v1451 = vmax.f32 %v1041, %v1259
    %v1452 = vmax.f32 %v1043, %v1260
    %v1453 = vmax.f32 %v774, %v1261
    %v1454 = vmax.f32 %v776, %v1262
    %v1455 = vmax.f32 %v1047, %v1263
    %v1456 = vmax.f32 %v1049, %v1264
    %v1457 = vmax.f32 %v778, %v1265
    %v1458 = vmax.f32 %v780, %v1266
    %v1459 = vmax.f32 %v1051, %v1267
    %v1460 = vmax.f32 %v1053, %v1268
    %v1461 = vmax.f32 %v784, %v1269
    %v1462 = vmax.f32 %v786, %v1270
    %v1463 = vmax.f32 %v1057, %v1271
    %v1464 = vmax.f32 %v1059, %v1272
    %v1465 = vmax.f32 %v788, %v1273
    %v1466 = vmax.f32 %v790, %v1274
    %v1467 = vmax.f32 %v1061, %v1275
    %v1468 = vmax.f32 %v1063, %v1276
    %v1469 = vmax.f32 %v794, %v1277
    %v1470 = vmax.f32 %v796, %v1278
    %v1471 = vmax.f32 %v1067, %v1279
    %v1472 = vmax.f32 %v1069, %v1280
    %v1473 = vmax.f32 %v798, %v1281
    %v1474 = vmax.f32 %v800, %v1282
    %v1475 = vmax.f32 %v1071, %v1283
    %v1476 = vmax.f32 %v1073, %v1284
    %v1477 = vmax.f32 %v804, %v1285
    %v1478 = vmax.f32 %v806, %v1286
    %v1479 = vmax.f32 %v1077, %v1287
    %v1480 = vmax.f32 %v1079, %v1288
    %v1481 = vmax.f32 %v808, %v1289
    %v1482 = vmax.f32 %v810, %v1290
    %v1483 = vmax.f32 %v1081, %v1291
    %v1484 = vmax.f32 %v1083, %v1292
    %v1485 = vmax.f32 %v814, %v1293
    %v1486 = vmax.f32 %v816, %v1294
    %v1487 = vmax.f32 %v1087, %v1295
    %v1488 = vmax.f32 %v1089, %v1296
    %v1489 = vmax.f32 %v818, %v1297
    %v1490 = vmax.f32 %v820, %v1298
    %v1491 = vmax.f32 %v1091, %v1299
    %v1492 = vmax.f32 %v1093, %v1300
    %v1493 = vmax.f32 %v824, %v1301
    %v1494 = vmax.f32 %v826, %v1302
    %v1495 = vmax.f32 %v1097, %v1303
    %v1496 = vmax.f32 %v1099, %v1304
    %v1497 = vmax.f32 %v828, %v1305
    %v1498 = vmax.f32 %v830, %v1306
    %v1499 = vmax.f32 %v1101, %v1307
    %v1500 = vmax.f32 %v1103, %v1308
    %v1501 = vmax.f32 %v834, %v1309
    %v1502 = vmax.f32 %v836, %v1310
    %v1503 = vmax.f32 %v1107, %v1311
    %v1504 = vmax.f32 %v1109, %v1312
    %v1505 = vmax.f32 %v838, %v1313
    %v1506 = vmax.f32 %v840, %v1314
    %v1507 = vmax.f32 %v1111, %v1315
    %v1508 = vmax.f32 %v1113, %v1316
    %v1509 = vmax.f32 %v844, %v1317
    %v1510 = vmax.f32 %v846, %v1318
    %v1511 = vmax.f32 %v1117, %v1319
    %v1512 = vmax.f32 %v1119, %v1320
    %v1513 = vmax.f32 %v848, %v1321
    %v1514 = vmax.f32 %v850, %v1322
    %v1515 = vmax.f32 %v1121, %v1323
    %v1516 = vmax.f32 %v1123, %v1324
    %v1517 = vmax.f32 %v854, %v1325
    %v1518 = vmax.f32 %v856, %v1326
    %v1519 = vmax.f32 %v1127, %v1327
    %v1520 = vmax.f32 %v1129, %v1328
    %v1521 = vmax.f32 %v858, %v1329
    %v1522 = vmax.f32 %v860, %v1330
    %v1523 = vmax.f32 %v1131, %v1331
    %v1524 = vmax.f32 %v1133, %v1332
    %v1525 = vmax.f32 %v864, %v1333
    %v1526 = vmax.f32 %v866, %v1334
    %v1527 = vmax.f32 %v1137, %v1335
    %v1528 = vmax.f32 %v1139, %v1336
    %v1529 = vmax.f32 %v868, %v1337
    %v1530 = vmax.f32 %v870, %v1338
    %v1531 = vmax.f32 %v1141, %v1339
    %v1532 = vmax.f32 %v1143, %v1340
    %v1533 = vmax.f32 %v874, %v1341
    %v1534 = vmax.f32 %v876, %v1342
    %v1535 = vmax.f32 %v1147, %v1343
    %v1536 = vmax.f32 %v1149, %v1344
    %v1537 = vmax.f32 %v878, %v1345
    %v1538 = vmax.f32 %v880, %v1346
    %v1539 = vmax.f32 %v1151, %v1347
    %v1540 = vmax.f32 %v1153, %v1348
    %v1541 = vmax.f32 %v884, %v1349
    %v1542 = vmax.f32 %v886, %v1350
    %v1543 = vmax.f32 %v1157, %v1351
    %v1544 = vmax.f32 %v1159, %v1352
    %v1545 = vmax.f32 %v888, %v1353
    %v1546 = vmax.f32 %v890, %v1354
    %v1547 = vmax.f32 %v1161, %v1355
    %v1548 = vmax.f32 %v1163, %v1356
    %v1549 = vpack.c.bf16 %v1361, %v1357
    %v1550 = vpack.c.bf16 %v1362, %v1358
    %v1551 = vpack.c.bf16 %v1363, %v1359
    %v1552 = vpack.c.bf16 %v1364, %v1360
    %v1553 = vpack.c.bf16 %v1369, %v1365
    %v1554 = vpack.c.bf16 %v1370, %v1366
    %v1555 = vpack.c.bf16 %v1371, %v1367
    %v1556 = vpack.c.bf16 %v1372, %v1368
    %v1557 = vpack.c.bf16 %v1377, %v1373
    %v1558 = vpack.c.bf16 %v1378, %v1374
    %v1559 = vpack.c.bf16 %v1379, %v1375
    %v1560 = vpack.c.bf16 %v1380, %v1376
    %v1561 = vpack.c.bf16 %v1385, %v1381
    %v1562 = vpack.c.bf16 %v1386, %v1382
    %v1563 = vpack.c.bf16 %v1387, %v1383
    %v1564 = vpack.c.bf16 %v1388, %v1384
    %v1565 = vpack.c.bf16 %v1393, %v1389
    %v1566 = vpack.c.bf16 %v1394, %v1390
    %v1567 = vpack.c.bf16 %v1395, %v1391
    %v1568 = vpack.c.bf16 %v1396, %v1392
    %v1569 = vpack.c.bf16 %v1401, %v1397
    %v1570 = vpack.c.bf16 %v1402, %v1398
    %v1571 = vpack.c.bf16 %v1403, %v1399
    %v1572 = vpack.c.bf16 %v1404, %v1400
    %v1573 = vpack.c.bf16 %v1409, %v1405
    %v1574 = vpack.c.bf16 %v1410, %v1406
    %v1575 = vpack.c.bf16 %v1411, %v1407
    %v1576 = vpack.c.bf16 %v1412, %v1408
    %v1577 = vpack.c.bf16 %v1417, %v1413
    %v1578 = vpack.c.bf16 %v1418, %v1414
    %v1579 = vpack.c.bf16 %v1419, %v1415
    %v1580 = vpack.c.bf16 %v1420, %v1416
    %v1581 = vpack.c.bf16 %v1425, %v1421
    %v1582 = vpack.c.bf16 %v1426, %v1422
    %v1583 = vpack.c.bf16 %v1427, %v1423
    %v1584 = vpack.c.bf16 %v1428, %v1424
    %v1585 = vpack.c.bf16 %v1433, %v1429
    %v1586 = vpack.c.bf16 %v1434, %v1430
    %v1587 = vpack.c.bf16 %v1435, %v1431
    %v1588 = vpack.c.bf16 %v1436, %v1432
    %v1589 = vpack.c.bf16 %v1441, %v1437
    %v1590 = vpack.c.bf16 %v1442, %v1438
    %v1591 = vpack.c.bf16 %v1443, %v1439
    %v1592 = vpack.c.bf16 %v1444, %v1440
    %v1593 = vpack.c.bf16 %v1449, %v1445
    %v1594 = vpack.c.bf16 %v1450, %v1446
    %v1595 = vpack.c.bf16 %v1451, %v1447
    %v1596 = vpack.c.bf16 %v1452, %v1448
    %v1597 = vpack.c.bf16 %v1457, %v1453
    %v1598 = vpack.c.bf16 %v1458, %v1454
    %v1599 = vpack.c.bf16 %v1459, %v1455
    %v1600 = vpack.c.bf16 %v1460, %v1456
    %v1601 = vpack.c.bf16 %v1465, %v1461
    %v1602 = vpack.c.bf16 %v1466, %v1462
    %v1603 = vpack.c.bf16 %v1467, %v1463
    %v1604 = vpack.c.bf16 %v1468, %v1464
    %v1605 = vpack.c.bf16 %v1473, %v1469
    %v1606 = vpack.c.bf16 %v1474, %v1470
    %v1607 = vpack.c.bf16 %v1475, %v1471
    %v1608 = vpack.c.bf16 %v1476, %v1472
    %v1609 = vpack.c.bf16 %v1481, %v1477
    %v1610 = vpack.c.bf16 %v1482, %v1478
    %v1611 = vpack.c.bf16 %v1483, %v1479
    %v1612 = vpack.c.bf16 %v1484, %v1480
    %v1613 = vpack.c.bf16 %v1489, %v1485
    %v1614 = vpack.c.bf16 %v1490, %v1486
    %v1615 = vpack.c.bf16 %v1491, %v1487
    %v1616 = vpack.c.bf16 %v1492, %v1488
    %v1617 = vpack.c.bf16 %v1497, %v1493
    %v1618 = vpack.c.bf16 %v1498, %v1494
    %v1619 = vpack.c.bf16 %v1499, %v1495
    %v1620 = vpack.c.bf16 %v1500, %v1496
    %v1621 = vpack.c.bf16 %v1505, %v1501
    %v1622 = vpack.c.bf16 %v1506, %v1502
    %v1623 = vpack.c.bf16 %v1507, %v1503
    %v1624 = vpack.c.bf16 %v1508, %v1504
    %v1625 = vpack.c.bf16 %v1513, %v1509
    %v1626 = vpack.c.bf16 %v1514, %v1510
    %v1627 = vpack.c.bf16 %v1515, %v1511
    %v1628 = vpack.c.bf16 %v1516, %v1512
    %v1629 = vpack.c.bf16 %v1521, %v1517
    %v1630 = vpack.c.bf16 %v1522, %v1518
    %v1631 = vpack.c.bf16 %v1523, %v1519
    %v1632 = vpack.c.bf16 %v1524, %v1520
    %v1633 = vpack.c.bf16 %v1529, %v1525
    %v1634 = vpack.c.bf16 %v1530, %v1526
    %v1635 = vpack.c.bf16 %v1531, %v1527
    %v1636 = vpack.c.bf16 %v1532, %v1528
    %v1637 = vpack.c.bf16 %v1537, %v1533
    %v1638 = vpack.c.bf16 %v1538, %v1534
    %v1639 = vpack.c.bf16 %v1539, %v1535
    %v1640 = vpack.c.bf16 %v1540, %v1536
    %v1641 = vpack.c.bf16 %v1545, %v1541
    %v1642 = vpack.c.bf16 %v1546, %v1542
    %v1643 = vpack.c.bf16 %v1547, %v1543
    %v1644 = vpack.c.bf16 %v1548, %v1544
    %v1645 = vld [vmem:[#allocation7] sm:$0xff]
    %v1646 = vld [vmem:[#allocation7 + $0x8] sm:$0xff]
    %v1647 = vld [vmem:[#allocation7 + $0x10] sm:$0xff]
    %v1648 = vld [vmem:[#allocation7 + $0x18] sm:$0xff]
    %v1649 = vld [vmem:[#allocation7 + $0x20] sm:$0xff]
    %v1650 = vld [vmem:[#allocation7 + $0x28] sm:$0xff]
    %v1651 = vld [vmem:[#allocation7 + $0x30] sm:$0xff]
    %v1652 = vld [vmem:[#allocation7 + $0x38] sm:$0xff]
    %v1653 = vld [vmem:[#allocation7 + $0x40] sm:$0xff]
    %v1654 = vld [vmem:[#allocation7 + $0x48] sm:$0xff]
    %v1655 = vld [vmem:[#allocation7 + $0x50] sm:$0xff]
    %v1656 = vld [vmem:[#allocation7 + $0x58] sm:$0xff]
    %v1657 = vld [vmem:[#allocation7 + $0x60] sm:$0xff]
    %v1658 = vld [vmem:[#allocation7 + $0x68] sm:$0xff]
    %v1659 = vld [vmem:[#allocation7 + $0x70] sm:$0xff]
    %v1660 = vld [vmem:[#allocation7 + $0x78] sm:$0xff]
    %v1661 = vld [vmem:[#allocation7 + $0x80] sm:$0xff]
    %v1662 = vld [vmem:[#allocation7 + $0x88] sm:$0xff]
    %v1663 = vld [vmem:[#allocation7 + $0x90] sm:$0xff]
    %v1664 = vld [vmem:[#allocation7 + $0x98] sm:$0xff]
    %v1665 = vld [vmem:[#allocation7 + $0xa0] sm:$0xff]
    %v1666 = vld [vmem:[#allocation7 + $0xa8] sm:$0xff]
    %v1667 = vld [vmem:[#allocation7 + $0xb0] sm:$0xff]
    %v1668 = vld [vmem:[#allocation7 + $0xb8] sm:$0xff]
    %v1669 = vld [vmem:[#allocation7 + $0xc0] sm:$0xff]
    %v1670 = vld [vmem:[#allocation7 + $0xc8] sm:$0xff]
    %v1671 = vld [vmem:[#allocation7 + $0xd0] sm:$0xff]
    %v1672 = vld [vmem:[#allocation7 + $0xd8] sm:$0xff]
    %v1673 = vld [vmem:[#allocation7 + $0xe0] sm:$0xff]
    %v1674 = vld [vmem:[#allocation7 + $0xe8] sm:$0xff]
    %v1675 = vld [vmem:[#allocation7 + $0xf0] sm:$0xff]
    %v1676 = vld [vmem:[#allocation7 + $0xf8] sm:$0xff]
    %v1677 = vld [vmem:[#allocation7 + $0x100] sm:$0xff]
    %v1678 = vld [vmem:[#allocation7 + $0x108] sm:$0xff]
    %v1679 = vld [vmem:[#allocation7 + $0x110] sm:$0xff]
    %v1680 = vld [vmem:[#allocation7 + $0x118] sm:$0xff]
    %v1681 = vld [vmem:[#allocation7 + $0x120] sm:$0xff]
    %v1682 = vld [vmem:[#allocation7 + $0x128] sm:$0xff]
    %v1683 = vld [vmem:[#allocation7 + $0x130] sm:$0xff]
    %v1684 = vld [vmem:[#allocation7 + $0x138] sm:$0xff]
    %v1685 = vld [vmem:[#allocation7 + $0x140] sm:$0xff]
    %v1686 = vld [vmem:[#allocation7 + $0x148] sm:$0xff]
    %v1687 = vld [vmem:[#allocation7 + $0x150] sm:$0xff]
    %v1688 = vld [vmem:[#allocation7 + $0x158] sm:$0xff]
    %v1689 = vld [vmem:[#allocation7 + $0x160] sm:$0xff]
    %v1690 = vld [vmem:[#allocation7 + $0x168] sm:$0xff]
    %v1691 = vld [vmem:[#allocation7 + $0x170] sm:$0xff]
    %v1692 = vld [vmem:[#allocation7 + $0x178] sm:$0xff]
    %v1693 = vld [vmem:[#allocation7 + $0x180] sm:$0xff]
    %v1694 = vld [vmem:[#allocation7 + $0x188] sm:$0xff]
    %v1695 = vld [vmem:[#allocation7 + $0x190] sm:$0xff]
    %v1696 = vld [vmem:[#allocation7 + $0x198] sm:$0xff]
    %v1697 = vld [vmem:[#allocation7 + $0x1a0] sm:$0xff]
    %v1698 = vld [vmem:[#allocation7 + $0x1a8] sm:$0xff]
    %v1699 = vld [vmem:[#allocation7 + $0x1b0] sm:$0xff]
    %v1700 = vld [vmem:[#allocation7 + $0x1b8] sm:$0xff]
    %v1701 = vld [vmem:[#allocation7 + $0x1c0] sm:$0xff]
    %v1702 = vld [vmem:[#allocation7 + $0x1c8] sm:$0xff]
    %v1703 = vld [vmem:[#allocation7 + $0x1d0] sm:$0xff]
    %v1704 = vld [vmem:[#allocation7 + $0x1d8] sm:$0xff]
    %v1705 = vld [vmem:[#allocation7 + $0x1e0] sm:$0xff]
    %v1706 = vld [vmem:[#allocation7 + $0x1e8] sm:$0xff]
    %v1707 = vld [vmem:[#allocation7 + $0x1f0] sm:$0xff]
    %v1708 = vld [vmem:[#allocation7 + $0x1f8] sm:$0xff]
    %v1709 = vld [vmem:[%s4] sm:$0x3]
    %v1711 = vlaneseq
    %v1712 = vshrl.u32 %v1711, 7
    %v1713 = vsub.s32 0, %v1712
    %v1714 = vrot.slane %v1709, %v1713
    %v1715 = vlaneseq
    %v1716 = vshrl.u32 %v1715, 7
    %v1717 = vsub.s32 1, %v1716
    %v1718 = vrot.slane %v1709, %v1717
    %v1785 = vunpack.c.l.b16 %v1645
    %v1786 = vunpack.c.h.b16 %v1645
    %v1787 = vunpack.c.l.b16 %v1646
    %v1788 = vunpack.c.h.b16 %v1646
    %v1789 = vunpack.c.l.b16 %v1647
    %v1790 = vunpack.c.h.b16 %v1647
    %v1791 = vunpack.c.l.b16 %v1648
    %v1792 = vunpack.c.h.b16 %v1648
    %v1793 = vunpack.c.l.b16 %v1649
    %v1794 = vunpack.c.h.b16 %v1649
    %v1795 = vunpack.c.l.b16 %v1650
    %v1796 = vunpack.c.h.b16 %v1650
    %v1797 = vunpack.c.l.b16 %v1651
    %v1798 = vunpack.c.h.b16 %v1651
    %v1799 = vunpack.c.l.b16 %v1652
    %v1800 = vunpack.c.h.b16 %v1652
    %v1801 = vunpack.c.l.b16 %v1653
    %v1802 = vunpack.c.h.b16 %v1653
    %v1803 = vunpack.c.l.b16 %v1654
    %v1804 = vunpack.c.h.b16 %v1654
    %v1805 = vunpack.c.l.b16 %v1655
    %v1806 = vunpack.c.h.b16 %v1655
    %v1807 = vunpack.c.l.b16 %v1656
    %v1808 = vunpack.c.h.b16 %v1656
    %v1809 = vunpack.c.l.b16 %v1657
    %v1810 = vunpack.c.h.b16 %v1657
    %v1811 = vunpack.c.l.b16 %v1658
    %v1812 = vunpack.c.h.b16 %v1658
    %v1813 = vunpack.c.l.b16 %v1659
    %v1814 = vunpack.c.h.b16 %v1659
    %v1815 = vunpack.c.l.b16 %v1660
    %v1816 = vunpack.c.h.b16 %v1660
    %v1817 = vunpack.c.l.b16 %v1661
    %v1818 = vunpack.c.h.b16 %v1661
    %v1819 = vunpack.c.l.b16 %v1662
    %v1820 = vunpack.c.h.b16 %v1662
    %v1821 = vunpack.c.l.b16 %v1663
    %v1822 = vunpack.c.h.b16 %v1663
    %v1823 = vunpack.c.l.b16 %v1664
    %v1824 = vunpack.c.h.b16 %v1664
    %v1825 = vunpack.c.l.b16 %v1665
    %v1826 = vunpack.c.h.b16 %v1665
    %v1827 = vunpack.c.l.b16 %v1666
    %v1828 = vunpack.c.h.b16 %v1666
    %v1829 = vunpack.c.l.b16 %v1667
    %v1830 = vunpack.c.h.b16 %v1667
    %v1831 = vunpack.c.l.b16 %v1668
    %v1832 = vunpack.c.h.b16 %v1668
    %v1833 = vunpack.c.l.b16 %v1669
    %v1834 = vunpack.c.h.b16 %v1669
    %v1835 = vunpack.c.l.b16 %v1670
    %v1836 = vunpack.c.h.b16 %v1670
    %v1837 = vunpack.c.l.b16 %v1671
    %v1838 = vunpack.c.h.b16 %v1671
    %v1839 = vunpack.c.l.b16 %v1672
    %v1840 = vunpack.c.h.b16 %v1672
    %v1841 = vunpack.c.l.b16 %v1673
    %v1842 = vunpack.c.h.b16 %v1673
    %v1843 = vunpack.c.l.b16 %v1674
    %v1844 = vunpack.c.h.b16 %v1674
    %v1845 = vunpack.c.l.b16 %v1675
    %v1846 = vunpack.c.h.b16 %v1675
    %v1847 = vunpack.c.l.b16 %v1676
    %v1848 = vunpack.c.h.b16 %v1676
    %v1849 = vunpack.c.l.b16 %v1677
    %v1850 = vunpack.c.h.b16 %v1677
    %v1851 = vunpack.c.l.b16 %v1678
    %v1852 = vunpack.c.h.b16 %v1678
    %v1853 = vunpack.c.l.b16 %v1679
    %v1854 = vunpack.c.h.b16 %v1679
    %v1855 = vunpack.c.l.b16 %v1680
    %v1856 = vunpack.c.h.b16 %v1680
    %v1857 = vunpack.c.l.b16 %v1681
    %v1858 = vunpack.c.h.b16 %v1681
    %v1859 = vunpack.c.l.b16 %v1682
    %v1860 = vunpack.c.h.b16 %v1682
    %v1861 = vunpack.c.l.b16 %v1683
    %v1862 = vunpack.c.h.b16 %v1683
    %v1863 = vunpack.c.l.b16 %v1684
    %v1864 = vunpack.c.h.b16 %v1684
    %v1865 = vunpack.c.l.b16 %v1685
    %v1866 = vunpack.c.h.b16 %v1685
    %v1867 = vunpack.c.l.b16 %v1686
    %v1868 = vunpack.c.h.b16 %v1686
    %v1869 = vunpack.c.l.b16 %v1687
    %v1870 = vunpack.c.h.b16 %v1687
    %v1871 = vunpack.c.l.b16 %v1688
    %v1872 = vunpack.c.h.b16 %v1688
    %v1873 = vunpack.c.l.b16 %v1689
    %v1874 = vunpack.c.h.b16 %v1689
    %v1875 = vunpack.c.l.b16 %v1690
    %v1876 = vunpack.c.h.b16 %v1690
    %v1877 = vunpack.c.l.b16 %v1691
    %v1878 = vunpack.c.h.b16 %v1691
    %v1879 = vunpack.c.l.b16 %v1692
    %v1880 = vunpack.c.h.b16 %v1692
    %v1881 = vunpack.c.l.b16 %v1693
    %v1882 = vunpack.c.h.b16 %v1693
    %v1883 = vunpack.c.l.b16 %v1694
    %v1884 = vunpack.c.h.b16 %v1694
    %v1885 = vunpack.c.l.b16 %v1695
    %v1886 = vunpack.c.h.b16 %v1695
    %v1887 = vunpack.c.l.b16 %v1696
    %v1888 = vunpack.c.h.b16 %v1696
    %v1889 = vunpack.c.l.b16 %v1697
    %v1890 = vunpack.c.h.b16 %v1697
    %v1891 = vunpack.c.l.b16 %v1698
    %v1892 = vunpack.c.h.b16 %v1698
    %v1893 = vunpack.c.l.b16 %v1699
    %v1894 = vunpack.c.h.b16 %v1699
    %v1895 = vunpack.c.l.b16 %v1700
    %v1896 = vunpack.c.h.b16 %v1700
    %v1897 = vunpack.c.l.b16 %v1701
    %v1898 = vunpack.c.h.b16 %v1701
    %v1899 = vunpack.c.l.b16 %v1702
    %v1900 = vunpack.c.h.b16 %v1702
    %v1901 = vunpack.c.l.b16 %v1703
    %v1902 = vunpack.c.h.b16 %v1703
    %v1903 = vunpack.c.l.b16 %v1704
    %v1904 = vunpack.c.h.b16 %v1704
    %v1905 = vunpack.c.l.b16 %v1705
    %v1906 = vunpack.c.h.b16 %v1705
    %v1907 = vunpack.c.l.b16 %v1706
    %v1908 = vunpack.c.h.b16 %v1706
    %v1909 = vunpack.c.l.b16 %v1707
    %v1910 = vunpack.c.h.b16 %v1707
    %v1911 = vunpack.c.l.b16 %v1708
    %v1912 = vunpack.c.h.b16 %v1708
    %v1913 = vpack.c.b16 %v1787, %v1785
    %v1914 = vpack.c.b16 %v1788, %v1786
    %v1915 = vpack.c.b16 %v1791, %v1789
    %v1916 = vpack.c.b16 %v1792, %v1790
    %v1917 = vpack.c.b16 %v1795, %v1793
    %v1918 = vpack.c.b16 %v1796, %v1794
    %v1919 = vpack.c.b16 %v1799, %v1797
    %v1920 = vpack.c.b16 %v1800, %v1798
    %v1921 = vpack.c.b16 %v1803, %v1801
    %v1922 = vpack.c.b16 %v1804, %v1802
    %v1923 = vpack.c.b16 %v1807, %v1805
    %v1924 = vpack.c.b16 %v1808, %v1806
    %v1925 = vpack.c.b16 %v1811, %v1809
    %v1926 = vpack.c.b16 %v1812, %v1810
    %v1927 = vpack.c.b16 %v1815, %v1813
    %v1928 = vpack.c.b16 %v1816, %v1814
    %v1929 = vpack.c.b16 %v1819, %v1817
    %v1930 = vpack.c.b16 %v1820, %v1818
    %v1931 = vpack.c.b16 %v1823, %v1821
    %v1932 = vpack.c.b16 %v1824, %v1822
    %v1933 = vpack.c.b16 %v1827, %v1825
    %v1934 = vpack.c.b16 %v1828, %v1826
    %v1935 = vpack.c.b16 %v1831, %v1829
    %v1936 = vpack.c.b16 %v1832, %v1830
    %v1937 = vpack.c.b16 %v1835, %v1833
    %v1938 = vpack.c.b16 %v1836, %v1834
    %v1939 = vpack.c.b16 %v1839, %v1837
    %v1940 = vpack.c.b16 %v1840, %v1838
    %v1941 = vpack.c.b16 %v1843, %v1841
    %v1942 = vpack.c.b16 %v1844, %v1842
    %v1943 = vpack.c.b16 %v1847, %v1845
    %v1944 = vpack.c.b16 %v1848, %v1846
    %v1945 = vpack.c.b16 %v1851, %v1849
    %v1946 = vpack.c.b16 %v1852, %v1850
    %v1947 = vpack.c.b16 %v1855, %v1853
    %v1948 = vpack.c.b16 %v1856, %v1854
    %v1949 = vpack.c.b16 %v1859, %v1857
    %v1950 = vpack.c.b16 %v1860, %v1858
    %v1951 = vpack.c.b16 %v1863, %v1861
    %v1952 = vpack.c.b16 %v1864, %v1862
    %v1953 = vpack.c.b16 %v1867, %v1865
    %v1954 = vpack.c.b16 %v1868, %v1866
    %v1955 = vpack.c.b16 %v1871, %v1869
    %v1956 = vpack.c.b16 %v1872, %v1870
    %v1957 = vpack.c.b16 %v1875, %v1873
    %v1958 = vpack.c.b16 %v1876, %v1874
    %v1959 = vpack.c.b16 %v1879, %v1877
    %v1960 = vpack.c.b16 %v1880, %v1878
    %v1961 = vpack.c.b16 %v1883, %v1881
    %v1962 = vpack.c.b16 %v1884, %v1882
    %v1963 = vpack.c.b16 %v1887, %v1885
    %v1964 = vpack.c.b16 %v1888, %v1886
    %v1965 = vpack.c.b16 %v1891, %v1889
    %v1966 = vpack.c.b16 %v1892, %v1890
    %v1967 = vpack.c.b16 %v1895, %v1893
    %v1968 = vpack.c.b16 %v1896, %v1894
    %v1969 = vpack.c.b16 %v1899, %v1897
    %v1970 = vpack.c.b16 %v1900, %v1898
    %v1971 = vpack.c.b16 %v1903, %v1901
    %v1972 = vpack.c.b16 %v1904, %v1902
    %v1973 = vpack.c.b16 %v1907, %v1905
    %v1974 = vpack.c.b16 %v1908, %v1906
    %v1975 = vpack.c.b16 %v1911, %v1909
    %v1976 = vpack.c.b16 %v1912, %v1910
    %2041 = vmatprep.subr.bf16.mxu0 %v1928
    %2042 = vmatpush1.bf16.msra.mxu0 %v1927
    %2043 = vmatprep.subr.bf16.mxu0 %v1926
    %2044 = vmatpush1.bf16.msra.mxu0 %v1925
    %2045 = vmatprep.subr.bf16.mxu0 %v1924
    %2046 = vmatpush1.bf16.msra.mxu0 %v1923
    %2047 = vmatprep.subr.bf16.mxu0 %v1922
    %2048 = vmatpush1.bf16.msra.mxu0 %v1921
    %2049 = vmatprep.subr.bf16.mxu0 %v1920
    %2050 = vmatpush1.bf16.msra.mxu0 %v1919
    %2051 = vmatprep.subr.bf16.mxu0 %v1918
    %2052 = vmatpush1.bf16.msra.mxu0 %v1917
    %2053 = vmatprep.subr.bf16.mxu0 %v1916
    %2054 = vmatpush1.bf16.msra.mxu0 %v1915
    %2055 = vmatprep.subr.bf16.mxu0 %v1914
    %2056 = vmatpush1.bf16.msra.mxu0 %v1913
    %2057 = vmatprep.subr.bf16.mxu0 %v1944
    %2058 = vmatpush2.bf16.msra.mxu0 %v1943
    %2059 = vmatprep.subr.bf16.mxu0 %v1942
    %2060 = vmatpush2.bf16.msra.mxu0 %v1941
    %2061 = vmatprep.subr.bf16.mxu0 %v1940
    %2062 = vmatpush2.bf16.msra.mxu0 %v1939
    %2063 = vmatprep.subr.bf16.mxu0 %v1938
    %2064 = vmatpush2.bf16.msra.mxu0 %v1937
    %2065 = vmatprep.subr.bf16.mxu0 %v1936
    %2066 = vmatpush2.bf16.msra.mxu0 %v1935
    %2067 = vmatprep.subr.bf16.mxu0 %v1934
    %2068 = vmatpush2.bf16.msra.mxu0 %v1933
    %2069 = vmatprep.subr.bf16.mxu0 %v1932
    %2070 = vmatpush2.bf16.msra.mxu0 %v1931
    %2071 = vmatprep.subr.bf16.mxu0 %v1930
    %2072 = vmatpush2.bf16.msra.mxu0 %v1929
    %2073 = vmatprep.mubr.bf16.mxu0 %v1550
    %2074 = vmatmul.mubr.bf16.gmra.mxu0 %v1549
    %v2075 = vpop.f32.mrf.mxu0
    %v2076 = vadd.f32 %v1714, %v2075
    %v2077 = vpop.f32.mrf.mxu0
    %v2078 = vadd.f32 %v1718, %v2077
    %v2079 = vpop.f32.mrf.mxu0
    %v2080 = vadd.f32 %v1714, %v2079
    %v2081 = vpop.f32.mrf.mxu0
    %v2082 = vadd.f32 %v1718, %v2081
    %2083 = vmatprep.mubr.bf16.mxu0 %v1554
    %2084 = vmatmul.mubr.bf16.gmra.mxu0 %v1553
    %v2085 = vpop.f32.mrf.mxu0
    %v2086 = vadd.f32 %v1714, %v2085
    %v2087 = vpop.f32.mrf.mxu0
    %v2088 = vadd.f32 %v1718, %v2087
    %v2089 = vpop.f32.mrf.mxu0
    %v2090 = vadd.f32 %v1714, %v2089
    %v2091 = vpop.f32.mrf.mxu0
    %v2092 = vadd.f32 %v1718, %v2091
    %2093 = vmatprep.mubr.bf16.mxu0 %v1558
    %2094 = vmatmul.mubr.bf16.gmra.mxu0 %v1557
    %v2095 = vpop.f32.mrf.mxu0
    %v2096 = vadd.f32 %v1714, %v2095
    %v2097 = vpop.f32.mrf.mxu0
    %v2098 = vadd.f32 %v1718, %v2097
    %v2099 = vpop.f32.mrf.mxu0
    %v2100 = vadd.f32 %v1714, %v2099
    %v2101 = vpop.f32.mrf.mxu0
    %v2102 = vadd.f32 %v1718, %v2101
    %2103 = vmatprep.mubr.bf16.mxu0 %v1562
    %2104 = vmatmul.mubr.bf16.gmra.mxu0 %v1561
    %v2105 = vpop.f32.mrf.mxu0
    %v2106 = vadd.f32 %v1714, %v2105
    %v2107 = vpop.f32.mrf.mxu0
    %v2108 = vadd.f32 %v1718, %v2107
    %v2109 = vpop.f32.mrf.mxu0
    %v2110 = vadd.f32 %v1714, %v2109
    %v2111 = vpop.f32.mrf.mxu0
    %v2112 = vadd.f32 %v1718, %v2111
    %2113 = vmatprep.mubr.bf16.mxu0 %v1566
    %2114 = vmatmul.mubr.bf16.gmra.mxu0 %v1565
    %v2115 = vpop.f32.mrf.mxu0
    %v2116 = vadd.f32 %v1714, %v2115
    %v2117 = vpop.f32.mrf.mxu0
    %v2118 = vadd.f32 %v1718, %v2117
    %v2119 = vpop.f32.mrf.mxu0
    %v2120 = vadd.f32 %v1714, %v2119
    %v2121 = vpop.f32.mrf.mxu0
    %v2122 = vadd.f32 %v1718, %v2121
    %2123 = vmatprep.mubr.bf16.mxu0 %v1570
    %2124 = vmatmul.mubr.bf16.gmra.mxu0 %v1569
    %v2125 = vpop.f32.mrf.mxu0
    %v2126 = vadd.f32 %v1714, %v2125
    %v2127 = vpop.f32.mrf.mxu0
    %v2128 = vadd.f32 %v1718, %v2127
    %v2129 = vpop.f32.mrf.mxu0
    %v2130 = vadd.f32 %v1714, %v2129
    %v2131 = vpop.f32.mrf.mxu0
    %v2132 = vadd.f32 %v1718, %v2131
    %2133 = vmatprep.mubr.bf16.mxu0 %v1574
    %2134 = vmatmul.mubr.bf16.gmra.mxu0 %v1573
    %v2135 = vpop.f32.mrf.mxu0
    %v2136 = vadd.f32 %v1714, %v2135
    %v2137 = vpop.f32.mrf.mxu0
    %v2138 = vadd.f32 %v1718, %v2137
    %v2139 = vpop.f32.mrf.mxu0
    %v2140 = vadd.f32 %v1714, %v2139
    %v2141 = vpop.f32.mrf.mxu0
    %v2142 = vadd.f32 %v1718, %v2141
    %2143 = vmatprep.mubr.bf16.mxu0 %v1578
    %2144 = vmatmul.mubr.bf16.gmra.mxu0 %v1577
    %v2145 = vpop.f32.mrf.mxu0
    %v2146 = vadd.f32 %v1714, %v2145
    %v2147 = vpop.f32.mrf.mxu0
    %v2148 = vadd.f32 %v1718, %v2147
    %v2149 = vpop.f32.mrf.mxu0
    %v2150 = vadd.f32 %v1714, %v2149
    %v2151 = vpop.f32.mrf.mxu0
    %v2152 = vadd.f32 %v1718, %v2151
    %2153 = vmatprep.mubr.bf16.mxu0 %v1582
    %2154 = vmatmul.mubr.bf16.gmra.mxu0 %v1581
    %v2155 = vpop.f32.mrf.mxu0
    %v2156 = vadd.f32 %v1714, %v2155
    %v2157 = vpop.f32.mrf.mxu0
    %v2158 = vadd.f32 %v1718, %v2157
    %v2159 = vpop.f32.mrf.mxu0
    %v2160 = vadd.f32 %v1714, %v2159
    %v2161 = vpop.f32.mrf.mxu0
    %v2162 = vadd.f32 %v1718, %v2161
    %2163 = vmatprep.mubr.bf16.mxu0 %v1586
    %2164 = vmatmul.mubr.bf16.gmra.mxu0 %v1585
    %v2165 = vpop.f32.mrf.mxu0
    %v2166 = vadd.f32 %v1714, %v2165
    %v2167 = vpop.f32.mrf.mxu0
    %v2168 = vadd.f32 %v1718, %v2167
    %v2169 = vpop.f32.mrf.mxu0
    %v2170 = vadd.f32 %v1714, %v2169
    %v2171 = vpop.f32.mrf.mxu0
    %v2172 = vadd.f32 %v1718, %v2171
    %2173 = vmatprep.mubr.bf16.mxu0 %v1590
    %2174 = vmatmul.mubr.bf16.gmra.mxu0 %v1589
    %v2175 = vpop.f32.mrf.mxu0
    %v2176 = vadd.f32 %v1714, %v2175
    %v2177 = vpop.f32.mrf.mxu0
    %v2178 = vadd.f32 %v1718, %v2177
    %v2179 = vpop.f32.mrf.mxu0
    %v2180 = vadd.f32 %v1714, %v2179
    %v2181 = vpop.f32.mrf.mxu0
    %v2182 = vadd.f32 %v1718, %v2181
    %2183 = vmatprep.mubr.bf16.mxu0 %v1594
    %2184 = vmatmul.mubr.bf16.gmra.mxu0 %v1593
    %v2185 = vpop.f32.mrf.mxu0
    %v2186 = vadd.f32 %v1714, %v2185
    %v2187 = vpop.f32.mrf.mxu0
    %v2188 = vadd.f32 %v1718, %v2187
    %v2189 = vpop.f32.mrf.mxu0
    %v2190 = vadd.f32 %v1714, %v2189
    %v2191 = vpop.f32.mrf.mxu0
    %v2192 = vadd.f32 %v1718, %v2191
    %2193 = vmatprep.mubr.bf16.mxu0 %v1598
    %2194 = vmatmul.mubr.bf16.gmra.mxu0 %v1597
    %v2195 = vpop.f32.mrf.mxu0
    %v2196 = vadd.f32 %v1714, %v2195
    %v2197 = vpop.f32.mrf.mxu0
    %v2198 = vadd.f32 %v1718, %v2197
    %v2199 = vpop.f32.mrf.mxu0
    %v2200 = vadd.f32 %v1714, %v2199
    %v2201 = vpop.f32.mrf.mxu0
    %v2202 = vadd.f32 %v1718, %v2201
    %2203 = vmatprep.mubr.bf16.mxu0 %v1602
    %2204 = vmatmul.mubr.bf16.gmra.mxu0 %v1601
    %v2205 = vpop.f32.mrf.mxu0
    %v2206 = vadd.f32 %v1714, %v2205
    %v2207 = vpop.f32.mrf.mxu0
    %v2208 = vadd.f32 %v1718, %v2207
    %v2209 = vpop.f32.mrf.mxu0
    %v2210 = vadd.f32 %v1714, %v2209
    %v2211 = vpop.f32.mrf.mxu0
    %v2212 = vadd.f32 %v1718, %v2211
    %2213 = vmatprep.mubr.bf16.mxu0 %v1606
    %2214 = vmatmul.mubr.bf16.gmra.mxu0 %v1605
    %v2215 = vpop.f32.mrf.mxu0
    %v2216 = vadd.f32 %v1714, %v2215
    %v2217 = vpop.f32.mrf.mxu0
    %v2218 = vadd.f32 %v1718, %v2217
    %v2219 = vpop.f32.mrf.mxu0
    %v2220 = vadd.f32 %v1714, %v2219
    %v2221 = vpop.f32.mrf.mxu0
    %v2222 = vadd.f32 %v1718, %v2221
    %2223 = vmatprep.mubr.bf16.mxu0 %v1610
    %2224 = vmatmul.mubr.bf16.gmra.mxu0 %v1609
    %v2225 = vpop.f32.mrf.mxu0
    %v2226 = vadd.f32 %v1714, %v2225
    %v2227 = vpop.f32.mrf.mxu0
    %v2228 = vadd.f32 %v1718, %v2227
    %v2229 = vpop.f32.mrf.mxu0
    %v2230 = vadd.f32 %v1714, %v2229
    %v2231 = vpop.f32.mrf.mxu0
    %v2232 = vadd.f32 %v1718, %v2231
    %2233 = vmatprep.mubr.bf16.mxu0 %v1614
    %2234 = vmatmul.mubr.bf16.gmra.mxu0 %v1613
    %v2235 = vpop.f32.mrf.mxu0
    %v2236 = vadd.f32 %v1714, %v2235
    %v2237 = vpop.f32.mrf.mxu0
    %v2238 = vadd.f32 %v1718, %v2237
    %v2239 = vpop.f32.mrf.mxu0
    %v2240 = vadd.f32 %v1714, %v2239
    %v2241 = vpop.f32.mrf.mxu0
    %v2242 = vadd.f32 %v1718, %v2241
    %2243 = vmatprep.mubr.bf16.mxu0 %v1618
    %2244 = vmatmul.mubr.bf16.gmra.mxu0 %v1617
    %v2245 = vpop.f32.mrf.mxu0
    %v2246 = vadd.f32 %v1714, %v2245
    %v2247 = vpop.f32.mrf.mxu0
    %v2248 = vadd.f32 %v1718, %v2247
    %v2249 = vpop.f32.mrf.mxu0
    %v2250 = vadd.f32 %v1714, %v2249
    %v2251 = vpop.f32.mrf.mxu0
    %v2252 = vadd.f32 %v1718, %v2251
    %2253 = vmatprep.mubr.bf16.mxu0 %v1622
    %2254 = vmatmul.mubr.bf16.gmra.mxu0 %v1621
    %v2255 = vpop.f32.mrf.mxu0
    %v2256 = vadd.f32 %v1714, %v2255
    %v2257 = vpop.f32.mrf.mxu0
    %v2258 = vadd.f32 %v1718, %v2257
    %v2259 = vpop.f32.mrf.mxu0
    %v2260 = vadd.f32 %v1714, %v2259
    %v2261 = vpop.f32.mrf.mxu0
    %v2262 = vadd.f32 %v1718, %v2261
    %2263 = vmatprep.mubr.bf16.mxu0 %v1626
    %2264 = vmatmul.mubr.bf16.gmra.mxu0 %v1625
    %v2265 = vpop.f32.mrf.mxu0
    %v2266 = vadd.f32 %v1714, %v2265
    %v2267 = vpop.f32.mrf.mxu0
    %v2268 = vadd.f32 %v1718, %v2267
    %v2269 = vpop.f32.mrf.mxu0
    %v2270 = vadd.f32 %v1714, %v2269
    %v2271 = vpop.f32.mrf.mxu0
    %v2272 = vadd.f32 %v1718, %v2271
    %2273 = vmatprep.mubr.bf16.mxu0 %v1630
    %2274 = vmatmul.mubr.bf16.gmra.mxu0 %v1629
    %v2275 = vpop.f32.mrf.mxu0
    %v2276 = vadd.f32 %v1714, %v2275
    %v2277 = vpop.f32.mrf.mxu0
    %v2278 = vadd.f32 %v1718, %v2277
    %v2279 = vpop.f32.mrf.mxu0
    %v2280 = vadd.f32 %v1714, %v2279
    %v2281 = vpop.f32.mrf.mxu0
    %v2282 = vadd.f32 %v1718, %v2281
    %2283 = vmatprep.mubr.bf16.mxu0 %v1634
    %2284 = vmatmul.mubr.bf16.gmra.mxu0 %v1633
    %v2285 = vpop.f32.mrf.mxu0
    %v2286 = vadd.f32 %v1714, %v2285
    %v2287 = vpop.f32.mrf.mxu0
    %v2288 = vadd.f32 %v1718, %v2287
    %v2289 = vpop.f32.mrf.mxu0
    %v2290 = vadd.f32 %v1714, %v2289
    %v2291 = vpop.f32.mrf.mxu0
    %v2292 = vadd.f32 %v1718, %v2291
    %2293 = vmatprep.mubr.bf16.mxu0 %v1638
    %2294 = vmatmul.mubr.bf16.gmra.mxu0 %v1637
    %v2295 = vpop.f32.mrf.mxu0
    %v2296 = vadd.f32 %v1714, %v2295
    %v2297 = vpop.f32.mrf.mxu0
    %v2298 = vadd.f32 %v1718, %v2297
    %v2299 = vpop.f32.mrf.mxu0
    %v2300 = vadd.f32 %v1714, %v2299
    %v2301 = vpop.f32.mrf.mxu0
    %v2302 = vadd.f32 %v1718, %v2301
    %2303 = vmatprep.mubr.bf16.mxu0 %v1642
    %2304 = vmatmul.mubr.bf16.gmra.mxu0 %v1641
    %v2305 = vpop.f32.mrf.mxu0
    %v2306 = vadd.f32 %v1714, %v2305
    %v2307 = vpop.f32.mrf.mxu0
    %v2308 = vadd.f32 %v1718, %v2307
    %v2309 = vpop.f32.mrf.mxu0
    %v2310 = vadd.f32 %v1714, %v2309
    %v2311 = vpop.f32.mrf.mxu0
    %v2312 = vadd.f32 %v1718, %v2311
    %2313 = vdwg.mxu0
    %2314 = vmatprep.subr.bf16.mxu0 %v1960
    %2315 = vmatpush1.bf16.msra.mxu0 %v1959
    %2316 = vmatprep.subr.bf16.mxu0 %v1958
    %2317 = vmatpush1.bf16.msra.mxu0 %v1957
    %2318 = vmatprep.subr.bf16.mxu0 %v1956
    %2319 = vmatpush1.bf16.msra.mxu0 %v1955
    %2320 = vmatprep.subr.bf16.mxu0 %v1954
    %2321 = vmatpush1.bf16.msra.mxu0 %v1953
    %2322 = vmatprep.subr.bf16.mxu0 %v1952
    %2323 = vmatpush1.bf16.msra.mxu0 %v1951
    %2324 = vmatprep.subr.bf16.mxu0 %v1950
    %2325 = vmatpush1.bf16.msra.mxu0 %v1949
    %2326 = vmatprep.subr.bf16.mxu0 %v1948
    %2327 = vmatpush1.bf16.msra.mxu0 %v1947
    %2328 = vmatprep.subr.bf16.mxu0 %v1946
    %2329 = vmatpush1.bf16.msra.mxu0 %v1945
    %2330 = vmatprep.subr.bf16.mxu0 %v1976
    %2331 = vmatpush2.bf16.msra.mxu0 %v1975
    %2332 = vmatprep.subr.bf16.mxu0 %v1974
    %2333 = vmatpush2.bf16.msra.mxu0 %v1973
    %2334 = vmatprep.subr.bf16.mxu0 %v1972
    %2335 = vmatpush2.bf16.msra.mxu0 %v1971
    %2336 = vmatprep.subr.bf16.mxu0 %v1970
    %2337 = vmatpush2.bf16.msra.mxu0 %v1969
    %2338 = vmatprep.subr.bf16.mxu0 %v1968
    %2339 = vmatpush2.bf16.msra.mxu0 %v1967
    %2340 = vmatprep.subr.bf16.mxu0 %v1966
    %2341 = vmatpush2.bf16.msra.mxu0 %v1965
    %2342 = vmatprep.subr.bf16.mxu0 %v1964
    %2343 = vmatpush2.bf16.msra.mxu0 %v1963
    %2344 = vmatprep.subr.bf16.mxu0 %v1962
    %2345 = vmatpush2.bf16.msra.mxu0 %v1961
    %2346 = vmatprep.mubr.bf16.mxu0 %v1552
    %2347 = vmatmul.mubr.bf16.gmra.mxu0 %v1551
    %v2348 = vpop.f32.mrf.mxu0
    %v2349 = vadd.f32 %v2076, %v2348
    %v2350 = vpop.f32.mrf.mxu0
    %v2351 = vadd.f32 %v2078, %v2350
    %v2352 = vpop.f32.mrf.mxu0
    %v2353 = vadd.f32 %v2080, %v2352
    %v2354 = vpop.f32.mrf.mxu0
    %v2355 = vadd.f32 %v2082, %v2354
    %2356 = vmatprep.mubr.bf16.mxu0 %v1556
    %2357 = vmatmul.mubr.bf16.gmra.mxu0 %v1555
    %v2358 = vpop.f32.mrf.mxu0
    %v2359 = vadd.f32 %v2086, %v2358
    %v2360 = vpop.f32.mrf.mxu0
    %v2361 = vadd.f32 %v2088, %v2360
    %v2362 = vpop.f32.mrf.mxu0
    %v2363 = vadd.f32 %v2090, %v2362
    %v2364 = vpop.f32.mrf.mxu0
    %v2365 = vadd.f32 %v2092, %v2364
    %2366 = vmatprep.mubr.bf16.mxu0 %v1560
    %2367 = vmatmul.mubr.bf16.gmra.mxu0 %v1559
    %v2368 = vpop.f32.mrf.mxu0
    %v2369 = vadd.f32 %v2096, %v2368
    %v2370 = vpop.f32.mrf.mxu0
    %v2371 = vadd.f32 %v2098, %v2370
    %v2372 = vpop.f32.mrf.mxu0
    %v2373 = vadd.f32 %v2100, %v2372
    %v2374 = vpop.f32.mrf.mxu0
    %v2375 = vadd.f32 %v2102, %v2374
    %2376 = vmatprep.mubr.bf16.mxu0 %v1564
    %2377 = vmatmul.mubr.bf16.gmra.mxu0 %v1563
    %v2378 = vpop.f32.mrf.mxu0
    %v2379 = vadd.f32 %v2106, %v2378
    %v2380 = vpop.f32.mrf.mxu0
    %v2381 = vadd.f32 %v2108, %v2380
    %v2382 = vpop.f32.mrf.mxu0
    %v2383 = vadd.f32 %v2110, %v2382
    %v2384 = vpop.f32.mrf.mxu0
    %v2385 = vadd.f32 %v2112, %v2384
    %2386 = vmatprep.mubr.bf16.mxu0 %v1568
    %2387 = vmatmul.mubr.bf16.gmra.mxu0 %v1567
    %v2388 = vpop.f32.mrf.mxu0
    %v2389 = vadd.f32 %v2116, %v2388
    %v2390 = vpop.f32.mrf.mxu0
    %v2391 = vadd.f32 %v2118, %v2390
    %v2392 = vpop.f32.mrf.mxu0
    %v2393 = vadd.f32 %v2120, %v2392
    %v2394 = vpop.f32.mrf.mxu0
    %v2395 = vadd.f32 %v2122, %v2394
    %2396 = vmatprep.mubr.bf16.mxu0 %v1572
    %2397 = vmatmul.mubr.bf16.gmra.mxu0 %v1571
    %v2398 = vpop.f32.mrf.mxu0
    %v2399 = vadd.f32 %v2126, %v2398
    %v2400 = vpop.f32.mrf.mxu0
    %v2401 = vadd.f32 %v2128, %v2400
    %v2402 = vpop.f32.mrf.mxu0
    %v2403 = vadd.f32 %v2130, %v2402
    %v2404 = vpop.f32.mrf.mxu0
    %v2405 = vadd.f32 %v2132, %v2404
    %2406 = vmatprep.mubr.bf16.mxu0 %v1576
    %2407 = vmatmul.mubr.bf16.gmra.mxu0 %v1575
    %v2408 = vpop.f32.mrf.mxu0
    %v2409 = vadd.f32 %v2136, %v2408
    %v2410 = vpop.f32.mrf.mxu0
    %v2411 = vadd.f32 %v2138, %v2410
    %v2412 = vpop.f32.mrf.mxu0
    %v2413 = vadd.f32 %v2140, %v2412
    %v2414 = vpop.f32.mrf.mxu0
    %v2415 = vadd.f32 %v2142, %v2414
    %2416 = vmatprep.mubr.bf16.mxu0 %v1580
    %2417 = vmatmul.mubr.bf16.gmra.mxu0 %v1579
    %v2418 = vpop.f32.mrf.mxu0
    %v2419 = vadd.f32 %v2146, %v2418
    %v2420 = vpop.f32.mrf.mxu0
    %v2421 = vadd.f32 %v2148, %v2420
    %v2422 = vpop.f32.mrf.mxu0
    %v2423 = vadd.f32 %v2150, %v2422
    %v2424 = vpop.f32.mrf.mxu0
    %v2425 = vadd.f32 %v2152, %v2424
    %2426 = vmatprep.mubr.bf16.mxu0 %v1584
    %2427 = vmatmul.mubr.bf16.gmra.mxu0 %v1583
    %v2428 = vpop.f32.mrf.mxu0
    %v2429 = vadd.f32 %v2156, %v2428
    %v2430 = vpop.f32.mrf.mxu0
    %v2431 = vadd.f32 %v2158, %v2430
    %v2432 = vpop.f32.mrf.mxu0
    %v2433 = vadd.f32 %v2160, %v2432
    %v2434 = vpop.f32.mrf.mxu0
    %v2435 = vadd.f32 %v2162, %v2434
    %2436 = vmatprep.mubr.bf16.mxu0 %v1588
    %2437 = vmatmul.mubr.bf16.gmra.mxu0 %v1587
    %v2438 = vpop.f32.mrf.mxu0
    %v2439 = vadd.f32 %v2166, %v2438
    %v2440 = vpop.f32.mrf.mxu0
    %v2441 = vadd.f32 %v2168, %v2440
    %v2442 = vpop.f32.mrf.mxu0
    %v2443 = vadd.f32 %v2170, %v2442
    %v2444 = vpop.f32.mrf.mxu0
    %v2445 = vadd.f32 %v2172, %v2444
    %2446 = vmatprep.mubr.bf16.mxu0 %v1592
    %2447 = vmatmul.mubr.bf16.gmra.mxu0 %v1591
    %v2448 = vpop.f32.mrf.mxu0
    %v2449 = vadd.f32 %v2176, %v2448
    %v2450 = vpop.f32.mrf.mxu0
    %v2451 = vadd.f32 %v2178, %v2450
    %v2452 = vpop.f32.mrf.mxu0
    %v2453 = vadd.f32 %v2180, %v2452
    %v2454 = vpop.f32.mrf.mxu0
    %v2455 = vadd.f32 %v2182, %v2454
    %2456 = vmatprep.mubr.bf16.mxu0 %v1596
    %2457 = vmatmul.mubr.bf16.gmra.mxu0 %v1595
    %v2458 = vpop.f32.mrf.mxu0
    %v2459 = vadd.f32 %v2186, %v2458
    %v2460 = vpop.f32.mrf.mxu0
    %v2461 = vadd.f32 %v2188, %v2460
    %v2462 = vpop.f32.mrf.mxu0
    %v2463 = vadd.f32 %v2190, %v2462
    %v2464 = vpop.f32.mrf.mxu0
    %v2465 = vadd.f32 %v2192, %v2464
    %2466 = vmatprep.mubr.bf16.mxu0 %v1600
    %2467 = vmatmul.mubr.bf16.gmra.mxu0 %v1599
    %v2468 = vpop.f32.mrf.mxu0
    %v2469 = vadd.f32 %v2196, %v2468
    %v2470 = vpop.f32.mrf.mxu0
    %v2471 = vadd.f32 %v2198, %v2470
    %v2472 = vpop.f32.mrf.mxu0
    %v2473 = vadd.f32 %v2200, %v2472
    %v2474 = vpop.f32.mrf.mxu0
    %v2475 = vadd.f32 %v2202, %v2474
    %2476 = vmatprep.mubr.bf16.mxu0 %v1604
    %2477 = vmatmul.mubr.bf16.gmra.mxu0 %v1603
    %v2478 = vpop.f32.mrf.mxu0
    %v2479 = vadd.f32 %v2206, %v2478
    %v2480 = vpop.f32.mrf.mxu0
    %v2481 = vadd.f32 %v2208, %v2480
    %v2482 = vpop.f32.mrf.mxu0
    %v2483 = vadd.f32 %v2210, %v2482
    %v2484 = vpop.f32.mrf.mxu0
    %v2485 = vadd.f32 %v2212, %v2484
    %2486 = vmatprep.mubr.bf16.mxu0 %v1608
    %2487 = vmatmul.mubr.bf16.gmra.mxu0 %v1607
    %v2488 = vpop.f32.mrf.mxu0
    %v2489 = vadd.f32 %v2216, %v2488
    %v2490 = vpop.f32.mrf.mxu0
    %v2491 = vadd.f32 %v2218, %v2490
    %v2492 = vpop.f32.mrf.mxu0
    %v2493 = vadd.f32 %v2220, %v2492
    %v2494 = vpop.f32.mrf.mxu0
    %v2495 = vadd.f32 %v2222, %v2494
    %2496 = vmatprep.mubr.bf16.mxu0 %v1612
    %2497 = vmatmul.mubr.bf16.gmra.mxu0 %v1611
    %v2498 = vpop.f32.mrf.mxu0
    %v2499 = vadd.f32 %v2226, %v2498
    %v2500 = vpop.f32.mrf.mxu0
    %v2501 = vadd.f32 %v2228, %v2500
    %v2502 = vpop.f32.mrf.mxu0
    %v2503 = vadd.f32 %v2230, %v2502
    %v2504 = vpop.f32.mrf.mxu0
    %v2505 = vadd.f32 %v2232, %v2504
    %2506 = vmatprep.mubr.bf16.mxu0 %v1616
    %2507 = vmatmul.mubr.bf16.gmra.mxu0 %v1615
    %v2508 = vpop.f32.mrf.mxu0
    %v2509 = vadd.f32 %v2236, %v2508
    %v2510 = vpop.f32.mrf.mxu0
    %v2511 = vadd.f32 %v2238, %v2510
    %v2512 = vpop.f32.mrf.mxu0
    %v2513 = vadd.f32 %v2240, %v2512
    %v2514 = vpop.f32.mrf.mxu0
    %v2515 = vadd.f32 %v2242, %v2514
    %2516 = vmatprep.mubr.bf16.mxu0 %v1620
    %2517 = vmatmul.mubr.bf16.gmra.mxu0 %v1619
    %v2518 = vpop.f32.mrf.mxu0
    %v2519 = vadd.f32 %v2246, %v2518
    %v2520 = vpop.f32.mrf.mxu0
    %v2521 = vadd.f32 %v2248, %v2520
    %v2522 = vpop.f32.mrf.mxu0
    %v2523 = vadd.f32 %v2250, %v2522
    %v2524 = vpop.f32.mrf.mxu0
    %v2525 = vadd.f32 %v2252, %v2524
    %2526 = vmatprep.mubr.bf16.mxu0 %v1624
    %2527 = vmatmul.mubr.bf16.gmra.mxu0 %v1623
    %v2528 = vpop.f32.mrf.mxu0
    %v2529 = vadd.f32 %v2256, %v2528
    %v2530 = vpop.f32.mrf.mxu0
    %v2531 = vadd.f32 %v2258, %v2530
    %v2532 = vpop.f32.mrf.mxu0
    %v2533 = vadd.f32 %v2260, %v2532
    %v2534 = vpop.f32.mrf.mxu0
    %v2535 = vadd.f32 %v2262, %v2534
    %2536 = vmatprep.mubr.bf16.mxu0 %v1628
    %2537 = vmatmul.mubr.bf16.gmra.mxu0 %v1627
    %v2538 = vpop.f32.mrf.mxu0
    %v2539 = vadd.f32 %v2266, %v2538
    %v2540 = vpop.f32.mrf.mxu0
    %v2541 = vadd.f32 %v2268, %v2540
    %v2542 = vpop.f32.mrf.mxu0
    %v2543 = vadd.f32 %v2270, %v2542
    %v2544 = vpop.f32.mrf.mxu0
    %v2545 = vadd.f32 %v2272, %v2544
    %2546 = vmatprep.mubr.bf16.mxu0 %v1632
    %2547 = vmatmul.mubr.bf16.gmra.mxu0 %v1631
    %v2548 = vpop.f32.mrf.mxu0
    %v2549 = vadd.f32 %v2276, %v2548
    %v2550 = vpop.f32.mrf.mxu0
    %v2551 = vadd.f32 %v2278, %v2550
    %v2552 = vpop.f32.mrf.mxu0
    %v2553 = vadd.f32 %v2280, %v2552
    %v2554 = vpop.f32.mrf.mxu0
    %v2555 = vadd.f32 %v2282, %v2554
    %2556 = vmatprep.mubr.bf16.mxu0 %v1636
    %2557 = vmatmul.mubr.bf16.gmra.mxu0 %v1635
    %v2558 = vpop.f32.mrf.mxu0
    %v2559 = vadd.f32 %v2286, %v2558
    %v2560 = vpop.f32.mrf.mxu0
    %v2561 = vadd.f32 %v2288, %v2560
    %v2562 = vpop.f32.mrf.mxu0
    %v2563 = vadd.f32 %v2290, %v2562
    %v2564 = vpop.f32.mrf.mxu0
    %v2565 = vadd.f32 %v2292, %v2564
    %2566 = vmatprep.mubr.bf16.mxu0 %v1640
    %2567 = vmatmul.mubr.bf16.gmra.mxu0 %v1639
    %v2568 = vpop.f32.mrf.mxu0
    %v2569 = vadd.f32 %v2296, %v2568
    %v2570 = vpop.f32.mrf.mxu0
    %v2571 = vadd.f32 %v2298, %v2570
    %v2572 = vpop.f32.mrf.mxu0
    %v2573 = vadd.f32 %v2300, %v2572
    %v2574 = vpop.f32.mrf.mxu0
    %v2575 = vadd.f32 %v2302, %v2574
    %2576 = vmatprep.mubr.bf16.mxu0 %v1644
    %2577 = vmatmul.mubr.bf16.gmra.mxu0 %v1643
    %v2578 = vpop.f32.mrf.mxu0
    %v2579 = vadd.f32 %v2306, %v2578
    %v2580 = vpop.f32.mrf.mxu0
    %v2581 = vadd.f32 %v2308, %v2580
    %v2582 = vpop.f32.mrf.mxu0
    %v2583 = vadd.f32 %v2310, %v2582
    %v2584 = vpop.f32.mrf.mxu0
    %v2585 = vadd.f32 %v2312, %v2584
    %2586 = vdwg.mxu0
    %v2587 = vmul.f32 %v2349, 0.2
    %v2588 = vmul.f32 %v2351, 0.2
    %v2589 = vmul.f32 %v2353, 0.2
    %v2590 = vmul.f32 %v2355, 0.2
    %v2591 = vmul.f32 %v2359, 0.2
    %v2592 = vmul.f32 %v2361, 0.2
    %v2593 = vmul.f32 %v2363, 0.2
    %v2594 = vmul.f32 %v2365, 0.2
    %v2595 = vmul.f32 %v2369, 0.2
    %v2596 = vmul.f32 %v2371, 0.2
    %v2597 = vmul.f32 %v2373, 0.2
    %v2598 = vmul.f32 %v2375, 0.2
    %v2599 = vmul.f32 %v2379, 0.2
    %v2600 = vmul.f32 %v2381, 0.2
    %v2601 = vmul.f32 %v2383, 0.2
    %v2602 = vmul.f32 %v2385, 0.2
    %v2603 = vmul.f32 %v2389, 0.2
    %v2604 = vmul.f32 %v2391, 0.2
    %v2605 = vmul.f32 %v2393, 0.2
    %v2606 = vmul.f32 %v2395, 0.2
    %v2607 = vmul.f32 %v2399, 0.2
    %v2608 = vmul.f32 %v2401, 0.2
    %v2609 = vmul.f32 %v2403, 0.2
    %v2610 = vmul.f32 %v2405, 0.2
    %v2611 = vmul.f32 %v2409, 0.2
    %v2612 = vmul.f32 %v2411, 0.2
    %v2613 = vmul.f32 %v2413, 0.2
    %v2614 = vmul.f32 %v2415, 0.2
    %v2615 = vmul.f32 %v2419, 0.2
    %v2616 = vmul.f32 %v2421, 0.2
    %v2617 = vmul.f32 %v2423, 0.2
    %v2618 = vmul.f32 %v2425, 0.2
    %v2619 = vmul.f32 %v2429, 0.2
    %v2620 = vmul.f32 %v2431, 0.2
    %v2621 = vmul.f32 %v2433, 0.2
    %v2622 = vmul.f32 %v2435, 0.2
    %v2623 = vmul.f32 %v2439, 0.2
    %v2624 = vmul.f32 %v2441, 0.2
    %v2625 = vmul.f32 %v2443, 0.2
    %v2626 = vmul.f32 %v2445, 0.2
    %v2627 = vmul.f32 %v2449, 0.2
    %v2628 = vmul.f32 %v2451, 0.2
    %v2629 = vmul.f32 %v2453, 0.2
    %v2630 = vmul.f32 %v2455, 0.2
    %v2631 = vmul.f32 %v2459, 0.2
    %v2632 = vmul.f32 %v2461, 0.2
    %v2633 = vmul.f32 %v2463, 0.2
    %v2634 = vmul.f32 %v2465, 0.2
    %v2635 = vmul.f32 %v2469, 0.2
    %v2636 = vmul.f32 %v2471, 0.2
    %v2637 = vmul.f32 %v2473, 0.2
    %v2638 = vmul.f32 %v2475, 0.2
    %v2639 = vmul.f32 %v2479, 0.2
    %v2640 = vmul.f32 %v2481, 0.2
    %v2641 = vmul.f32 %v2483, 0.2
    %v2642 = vmul.f32 %v2485, 0.2
    %v2643 = vmul.f32 %v2489, 0.2
    %v2644 = vmul.f32 %v2491, 0.2
    %v2645 = vmul.f32 %v2493, 0.2
    %v2646 = vmul.f32 %v2495, 0.2
    %v2647 = vmul.f32 %v2499, 0.2
    %v2648 = vmul.f32 %v2501, 0.2
    %v2649 = vmul.f32 %v2503, 0.2
    %v2650 = vmul.f32 %v2505, 0.2
    %v2651 = vmul.f32 %v2509, 0.2
    %v2652 = vmul.f32 %v2511, 0.2
    %v2653 = vmul.f32 %v2513, 0.2
    %v2654 = vmul.f32 %v2515, 0.2
    %v2655 = vmul.f32 %v2519, 0.2
    %v2656 = vmul.f32 %v2521, 0.2
    %v2657 = vmul.f32 %v2523, 0.2
    %v2658 = vmul.f32 %v2525, 0.2
    %v2659 = vmul.f32 %v2529, 0.2
    %v2660 = vmul.f32 %v2531, 0.2
    %v2661 = vmul.f32 %v2533, 0.2
    %v2662 = vmul.f32 %v2535, 0.2
    %v2663 = vmul.f32 %v2539, 0.2
    %v2664 = vmul.f32 %v2541, 0.2
    %v2665 = vmul.f32 %v2543, 0.2
    %v2666 = vmul.f32 %v2545, 0.2
    %v2667 = vmul.f32 %v2549, 0.2
    %v2668 = vmul.f32 %v2551, 0.2
    %v2669 = vmul.f32 %v2553, 0.2
    %v2670 = vmul.f32 %v2555, 0.2
    %v2671 = vmul.f32 %v2559, 0.2
    %v2672 = vmul.f32 %v2561, 0.2
    %v2673 = vmul.f32 %v2563, 0.2
    %v2674 = vmul.f32 %v2565, 0.2
    %v2675 = vmul.f32 %v2569, 0.2
    %v2676 = vmul.f32 %v2571, 0.2
    %v2677 = vmul.f32 %v2573, 0.2
    %v2678 = vmul.f32 %v2575, 0.2
    %v2679 = vmul.f32 %v2579, 0.2
    %v2680 = vmul.f32 %v2581, 0.2
    %v2681 = vmul.f32 %v2583, 0.2
    %v2682 = vmul.f32 %v2585, 0.2
    %v2683 = vmax.f32 %v2349, %v2587
    %v2684 = vmax.f32 %v2351, %v2588
    %v2685 = vmax.f32 %v2353, %v2589
    %v2686 = vmax.f32 %v2355, %v2590
    %v2687 = vmax.f32 %v2359, %v2591
    %v2688 = vmax.f32 %v2361, %v2592
    %v2689 = vmax.f32 %v2363, %v2593
    %v2690 = vmax.f32 %v2365, %v2594
    %v2691 = vmax.f32 %v2369, %v2595
    %v2692 = vmax.f32 %v2371, %v2596
    %v2693 = vmax.f32 %v2373, %v2597
    %v2694 = vmax.f32 %v2375, %v2598
    %v2695 = vmax.f32 %v2379, %v2599
    %v2696 = vmax.f32 %v2381, %v2600
    %v2697 = vmax.f32 %v2383, %v2601
    %v2698 = vmax.f32 %v2385, %v2602
    %v2699 = vmax.f32 %v2389, %v2603
    %v2700 = vmax.f32 %v2391, %v2604
    %v2701 = vmax.f32 %v2393, %v2605
    %v2702 = vmax.f32 %v2395, %v2606
    %v2703 = vmax.f32 %v2399, %v2607
    %v2704 = vmax.f32 %v2401, %v2608
    %v2705 = vmax.f32 %v2403, %v2609
    %v2706 = vmax.f32 %v2405, %v2610
    %v2707 = vmax.f32 %v2409, %v2611
    %v2708 = vmax.f32 %v2411, %v2612
    %v2709 = vmax.f32 %v2413, %v2613
    %v2710 = vmax.f32 %v2415, %v2614
    %v2711 = vmax.f32 %v2419, %v2615
    %v2712 = vmax.f32 %v2421, %v2616
    %v2713 = vmax.f32 %v2423, %v2617
    %v2714 = vmax.f32 %v2425, %v2618
    %v2715 = vmax.f32 %v2429, %v2619
    %v2716 = vmax.f32 %v2431, %v2620
    %v2717 = vmax.f32 %v2433, %v2621
    %v2718 = vmax.f32 %v2435, %v2622
    %v2719 = vmax.f32 %v2439, %v2623
    %v2720 = vmax.f32 %v2441, %v2624
    %v2721 = vmax.f32 %v2443, %v2625
    %v2722 = vmax.f32 %v2445, %v2626
    %v2723 = vmax.f32 %v2449, %v2627
    %v2724 = vmax.f32 %v2451, %v2628
    %v2725 = vmax.f32 %v2453, %v2629
    %v2726 = vmax.f32 %v2455, %v2630
    %v2727 = vmax.f32 %v2459, %v2631
    %v2728 = vmax.f32 %v2461, %v2632
    %v2729 = vmax.f32 %v2463, %v2633
    %v2730 = vmax.f32 %v2465, %v2634
    %v2731 = vmax.f32 %v2469, %v2635
    %v2732 = vmax.f32 %v2471, %v2636
    %v2733 = vmax.f32 %v2473, %v2637
    %v2734 = vmax.f32 %v2475, %v2638
    %v2735 = vmax.f32 %v2479, %v2639
    %v2736 = vmax.f32 %v2481, %v2640
    %v2737 = vmax.f32 %v2483, %v2641
    %v2738 = vmax.f32 %v2485, %v2642
    %v2739 = vmax.f32 %v2489, %v2643
    %v2740 = vmax.f32 %v2491, %v2644
    %v2741 = vmax.f32 %v2493, %v2645
    %v2742 = vmax.f32 %v2495, %v2646
    %v2743 = vmax.f32 %v2499, %v2647
    %v2744 = vmax.f32 %v2501, %v2648
    %v2745 = vmax.f32 %v2503, %v2649
    %v2746 = vmax.f32 %v2505, %v2650
    %v2747 = vmax.f32 %v2509, %v2651
    %v2748 = vmax.f32 %v2511, %v2652
    %v2749 = vmax.f32 %v2513, %v2653
    %v2750 = vmax.f32 %v2515, %v2654
    %v2751 = vmax.f32 %v2519, %v2655
    %v2752 = vmax.f32 %v2521, %v2656
    %v2753 = vmax.f32 %v2523, %v2657
    %v2754 = vmax.f32 %v2525, %v2658
    %v2755 = vmax.f32 %v2529, %v2659
    %v2756 = vmax.f32 %v2531, %v2660
    %v2757 = vmax.f32 %v2533, %v2661
    %v2758 = vmax.f32 %v2535, %v2662
    %v2759 = vmax.f32 %v2539, %v2663
    %v2760 = vmax.f32 %v2541, %v2664
    %v2761 = vmax.f32 %v2543, %v2665
    %v2762 = vmax.f32 %v2545, %v2666
    %v2763 = vmax.f32 %v2549, %v2667
    %v2764 = vmax.f32 %v2551, %v2668
    %v2765 = vmax.f32 %v2553, %v2669
    %v2766 = vmax.f32 %v2555, %v2670
    %v2767 = vmax.f32 %v2559, %v2671
    %v2768 = vmax.f32 %v2561, %v2672
    %v2769 = vmax.f32 %v2563, %v2673
    %v2770 = vmax.f32 %v2565, %v2674
    %v2771 = vmax.f32 %v2569, %v2675
    %v2772 = vmax.f32 %v2571, %v2676
    %v2773 = vmax.f32 %v2573, %v2677
    %v2774 = vmax.f32 %v2575, %v2678
    %v2775 = vmax.f32 %v2579, %v2679
    %v2776 = vmax.f32 %v2581, %v2680
    %v2777 = vmax.f32 %v2583, %v2681
    %v2778 = vmax.f32 %v2585, %v2682
    %v2779 = vpack.c.bf16 %v2685, %v2683
    %v2780 = vpack.c.bf16 %v2686, %v2684
    %v2781 = vpack.c.bf16 %v2689, %v2687
    %v2782 = vpack.c.bf16 %v2690, %v2688
    %v2783 = vpack.c.bf16 %v2693, %v2691
    %v2784 = vpack.c.bf16 %v2694, %v2692
    %v2785 = vpack.c.bf16 %v2697, %v2695
    %v2786 = vpack.c.bf16 %v2698, %v2696
    %v2787 = vpack.c.bf16 %v2701, %v2699
    %v2788 = vpack.c.bf16 %v2702, %v2700
    %v2789 = vpack.c.bf16 %v2705, %v2703
    %v2790 = vpack.c.bf16 %v2706, %v2704
    %v2791 = vpack.c.bf16 %v2709, %v2707
    %v2792 = vpack.c.bf16 %v2710, %v2708
    %v2793 = vpack.c.bf16 %v2713, %v2711
    %v2794 = vpack.c.bf16 %v2714, %v2712
    %v2795 = vpack.c.bf16 %v2717, %v2715
    %v2796 = vpack.c.bf16 %v2718, %v2716
    %v2797 = vpack.c.bf16 %v2721, %v2719
    %v2798 = vpack.c.bf16 %v2722, %v2720
    %v2799 = vpack.c.bf16 %v2725, %v2723
    %v2800 = vpack.c.bf16 %v2726, %v2724
    %v2801 = vpack.c.bf16 %v2729, %v2727
    %v2802 = vpack.c.bf16 %v2730, %v2728
    %v2803 = vpack.c.bf16 %v2733, %v2731
    %v2804 = vpack.c.bf16 %v2734, %v2732
    %v2805 = vpack.c.bf16 %v2737, %v2735
    %v2806 = vpack.c.bf16 %v2738, %v2736
    %v2807 = vpack.c.bf16 %v2741, %v2739
    %v2808 = vpack.c.bf16 %v2742, %v2740
    %v2809 = vpack.c.bf16 %v2745, %v2743
    %v2810 = vpack.c.bf16 %v2746, %v2744
    %v2811 = vpack.c.bf16 %v2749, %v2747
    %v2812 = vpack.c.bf16 %v2750, %v2748
    %v2813 = vpack.c.bf16 %v2753, %v2751
    %v2814 = vpack.c.bf16 %v2754, %v2752
    %v2815 = vpack.c.bf16 %v2757, %v2755
    %v2816 = vpack.c.bf16 %v2758, %v2756
    %v2817 = vpack.c.bf16 %v2761, %v2759
    %v2818 = vpack.c.bf16 %v2762, %v2760
    %v2819 = vpack.c.bf16 %v2765, %v2763
    %v2820 = vpack.c.bf16 %v2766, %v2764
    %v2821 = vpack.c.bf16 %v2769, %v2767
    %v2822 = vpack.c.bf16 %v2770, %v2768
    %v2823 = vpack.c.bf16 %v2773, %v2771
    %v2824 = vpack.c.bf16 %v2774, %v2772
    %v2825 = vpack.c.bf16 %v2777, %v2775
    %v2826 = vpack.c.bf16 %v2778, %v2776
    %v2827 = vld [vmem:[%s5] sm:$0xf]
    %v2828 = vld [vmem:[%s5 + $0x4] sm:$0xf]
    %v2829 = vld [vmem:[%s5 + $0x8] sm:$0xf]
    %v2830 = vld [vmem:[%s5 + $0xc] sm:$0xf]
    %v2831 = vld [vmem:[%s5 + $0x10] sm:$0xf]
    %v2832 = vld [vmem:[%s5 + $0x14] sm:$0xf]
    %v2833 = vld [vmem:[%s5 + $0x18] sm:$0xf]
    %v2834 = vld [vmem:[%s5 + $0x1c] sm:$0xf]
    %v2835 = vld [vmem:[%s5 + $0x20] sm:$0xf]
    %v2836 = vld [vmem:[%s5 + $0x24] sm:$0xf]
    %v2837 = vld [vmem:[%s5 + $0x28] sm:$0xf]
    %v2838 = vld [vmem:[%s5 + $0x2c] sm:$0xf]
    %v2839 = vld [vmem:[%s5 + $0x30] sm:$0xf]
    %v2840 = vld [vmem:[%s5 + $0x34] sm:$0xf]
    %v2841 = vld [vmem:[%s5 + $0x38] sm:$0xf]
    %v2842 = vld [vmem:[%s5 + $0x3c] sm:$0xf]
    %v2843 = vld [vmem:[%s5 + $0x40] sm:$0xf]
    %v2844 = vld [vmem:[%s5 + $0x44] sm:$0xf]
    %v2845 = vld [vmem:[%s5 + $0x48] sm:$0xf]
    %v2846 = vld [vmem:[%s5 + $0x4c] sm:$0xf]
    %v2847 = vld [vmem:[%s5 + $0x50] sm:$0xf]
    %v2848 = vld [vmem:[%s5 + $0x54] sm:$0xf]
    %v2849 = vld [vmem:[%s5 + $0x58] sm:$0xf]
    %v2850 = vld [vmem:[%s5 + $0x5c] sm:$0xf]
    %v2851 = vld [vmem:[%s5 + $0x60] sm:$0xf]
    %v2852 = vld [vmem:[%s5 + $0x64] sm:$0xf]
    %v2853 = vld [vmem:[%s5 + $0x68] sm:$0xf]
    %v2854 = vld [vmem:[%s5 + $0x6c] sm:$0xf]
    %v2855 = vld [vmem:[%s5 + $0x70] sm:$0xf]
    %v2856 = vld [vmem:[%s5 + $0x74] sm:$0xf]
    %v2857 = vld [vmem:[%s5 + $0x78] sm:$0xf]
    %v2858 = vld [vmem:[%s5 + $0x7c] sm:$0xf]
    %s2859 = sld [smem:[#allocation2]]
    %v2860 = vstv %s2859
    %v2893 = vunpack.c.l.b16 %v2827
    %v2894 = vunpack.c.l.b16 %v2828
    %v2895 = vunpack.c.l.b16 %v2829
    %v2896 = vunpack.c.l.b16 %v2830
    %v2897 = vunpack.c.l.b16 %v2831
    %v2898 = vunpack.c.l.b16 %v2832
    %v2899 = vunpack.c.l.b16 %v2833
    %v2900 = vunpack.c.l.b16 %v2834
    %v2901 = vunpack.c.l.b16 %v2835
    %v2902 = vunpack.c.l.b16 %v2836
    %v2903 = vunpack.c.l.b16 %v2837
    %v2904 = vunpack.c.l.b16 %v2838
    %v2905 = vunpack.c.l.b16 %v2839
    %v2906 = vunpack.c.l.b16 %v2840
    %v2907 = vunpack.c.l.b16 %v2841
    %v2908 = vunpack.c.l.b16 %v2842
    %v2909 = vunpack.c.l.b16 %v2843
    %v2910 = vunpack.c.l.b16 %v2844
    %v2911 = vunpack.c.l.b16 %v2845
    %v2912 = vunpack.c.l.b16 %v2846
    %v2913 = vunpack.c.l.b16 %v2847
    %v2914 = vunpack.c.l.b16 %v2848
    %v2915 = vunpack.c.l.b16 %v2849
    %v2916 = vunpack.c.l.b16 %v2850
    %v2917 = vunpack.c.l.b16 %v2851
    %v2918 = vunpack.c.l.b16 %v2852
    %v2919 = vunpack.c.l.b16 %v2853
    %v2920 = vunpack.c.l.b16 %v2854
    %v2921 = vunpack.c.l.b16 %v2855
    %v2922 = vunpack.c.l.b16 %v2856
    %v2923 = vunpack.c.l.b16 %v2857
    %v2924 = vunpack.c.l.b16 %v2858
    %v2925 = vpack.c.b16 %v2894, %v2893
    %v2926 = vpack.c.b16 %v2896, %v2895
    %v2927 = vpack.c.b16 %v2898, %v2897
    %v2928 = vpack.c.b16 %v2900, %v2899
    %v2929 = vpack.c.b16 %v2902, %v2901
    %v2930 = vpack.c.b16 %v2904, %v2903
    %v2931 = vpack.c.b16 %v2906, %v2905
    %v2932 = vpack.c.b16 %v2908, %v2907
    %v2933 = vpack.c.b16 %v2910, %v2909
    %v2934 = vpack.c.b16 %v2912, %v2911
    %v2935 = vpack.c.b16 %v2914, %v2913
    %v2936 = vpack.c.b16 %v2916, %v2915
    %v2937 = vpack.c.b16 %v2918, %v2917
    %v2938 = vpack.c.b16 %v2920, %v2919
    %v2939 = vpack.c.b16 %v2922, %v2921
    %v2940 = vpack.c.b16 %v2924, %v2923
    %2957 = vmatprep.subr.bf16.mxu0 0
    %2958 = vmatpush1.bf16.msra.mxu0 %v2932
    %2959 = vmatprep.subr.bf16.mxu0 0
    %2960 = vmatpush1.bf16.msra.mxu0 %v2931
    %2961 = vmatprep.subr.bf16.mxu0 0
    %2962 = vmatpush1.bf16.msra.mxu0 %v2930
    %2963 = vmatprep.subr.bf16.mxu0 0
    %2964 = vmatpush1.bf16.msra.mxu0 %v2929
    %2965 = vmatprep.subr.bf16.mxu0 0
    %2966 = vmatpush1.bf16.msra.mxu0 %v2928
    %2967 = vmatprep.subr.bf16.mxu0 0
    %2968 = vmatpush1.bf16.msra.mxu0 %v2927
    %2969 = vmatprep.subr.bf16.mxu0 0
    %2970 = vmatpush1.bf16.msra.mxu0 %v2926
    %2971 = vmatprep.subr.bf16.mxu0 0
    %2972 = vmatpush1.bf16.msra.mxu0 %v2925
    %2973 = vmatprep.subr.bf16.mxu0 0
    %2974 = vmatpush2.bf16.msra.mxu0 %v2940
    %2975 = vmatprep.subr.bf16.mxu0 0
    %2976 = vmatpush2.bf16.msra.mxu0 %v2939
    %2977 = vmatprep.subr.bf16.mxu0 0
    %2978 = vmatpush2.bf16.msra.mxu0 %v2938
    %2979 = vmatprep.subr.bf16.mxu0 0
    %2980 = vmatpush2.bf16.msra.mxu0 %v2937
    %2981 = vmatprep.subr.bf16.mxu0 0
    %2982 = vmatpush2.bf16.msra.mxu0 %v2936
    %2983 = vmatprep.subr.bf16.mxu0 0
    %2984 = vmatpush2.bf16.msra.mxu0 %v2935
    %2985 = vmatprep.subr.bf16.mxu0 0
    %2986 = vmatpush2.bf16.msra.mxu0 %v2934
    %2987 = vmatprep.subr.bf16.mxu0 0
    %2988 = vmatpush2.bf16.msra.mxu0 %v2933
    %2989 = vmatprep.mubr.bf16.mxu0 %v2780
    %2990 = vmatmul.mubr.bf16.gmra.mxu0 %v2779
    %v2991 = vpop.f32.mrf.mxu0
    %v2992 = vadd.f32 %v2860, %v2991
    %v2993 = vpop.f32.mrf.mxu0
    %v2994 = vpop.f32.mrf.mxu0
    %v2995 = vadd.f32 %v2860, %v2994
    %v2996 = vpop.f32.mrf.mxu0
    %2997 = vmatprep.mubr.bf16.mxu0 %v2782
    %2998 = vmatmul.mubr.bf16.gmra.mxu0 %v2781
    %v2999 = vpop.f32.mrf.mxu0
    %v3000 = vadd.f32 %v2860, %v2999
    %v3001 = vpop.f32.mrf.mxu0
    %v3002 = vpop.f32.mrf.mxu0
    %v3003 = vadd.f32 %v2860, %v3002
    %v3004 = vpop.f32.mrf.mxu0
    %3005 = vmatprep.mubr.bf16.mxu0 %v2784
    %3006 = vmatmul.mubr.bf16.gmra.mxu0 %v2783
    %v3007 = vpop.f32.mrf.mxu0
    %v3008 = vadd.f32 %v2860, %v3007
    %v3009 = vpop.f32.mrf.mxu0
    %v3010 = vpop.f32.mrf.mxu0
    %v3011 = vadd.f32 %v2860, %v3010
    %v3012 = vpop.f32.mrf.mxu0
    %3013 = vmatprep.mubr.bf16.mxu0 %v2786
    %3014 = vmatmul.mubr.bf16.gmra.mxu0 %v2785
    %v3015 = vpop.f32.mrf.mxu0
    %v3016 = vadd.f32 %v2860, %v3015
    %v3017 = vpop.f32.mrf.mxu0
    %v3018 = vpop.f32.mrf.mxu0
    %v3019 = vadd.f32 %v2860, %v3018
    %v3020 = vpop.f32.mrf.mxu0
    %3021 = vmatprep.mubr.bf16.mxu0 %v2788
    %3022 = vmatmul.mubr.bf16.gmra.mxu0 %v2787
    %v3023 = vpop.f32.mrf.mxu0
    %v3024 = vadd.f32 %v2860, %v3023
    %v3025 = vpop.f32.mrf.mxu0
    %v3026 = vpop.f32.mrf.mxu0
    %v3027 = vadd.f32 %v2860, %v3026
    %v3028 = vpop.f32.mrf.mxu0
    %3029 = vmatprep.mubr.bf16.mxu0 %v2790
    %3030 = vmatmul.mubr.bf16.gmra.mxu0 %v2789
    %v3031 = vpop.f32.mrf.mxu0
    %v3032 = vadd.f32 %v2860, %v3031
    %v3033 = vpop.f32.mrf.mxu0
    %v3034 = vpop.f32.mrf.mxu0
    %v3035 = vadd.f32 %v2860, %v3034
    %v3036 = vpop.f32.mrf.mxu0
    %3037 = vmatprep.mubr.bf16.mxu0 %v2792
    %3038 = vmatmul.mubr.bf16.gmra.mxu0 %v2791
    %v3039 = vpop.f32.mrf.mxu0
    %v3040 = vadd.f32 %v2860, %v3039
    %v3041 = vpop.f32.mrf.mxu0
    %v3042 = vpop.f32.mrf.mxu0
    %v3043 = vadd.f32 %v2860, %v3042
    %v3044 = vpop.f32.mrf.mxu0
    %3045 = vmatprep.mubr.bf16.mxu0 %v2794
    %3046 = vmatmul.mubr.bf16.gmra.mxu0 %v2793
    %v3047 = vpop.f32.mrf.mxu0
    %v3048 = vadd.f32 %v2860, %v3047
    %v3049 = vpop.f32.mrf.mxu0
    %v3050 = vpop.f32.mrf.mxu0
    %v3051 = vadd.f32 %v2860, %v3050
    %v3052 = vpop.f32.mrf.mxu0
    %3053 = vmatprep.mubr.bf16.mxu0 %v2796
    %3054 = vmatmul.mubr.bf16.gmra.mxu0 %v2795
    %v3055 = vpop.f32.mrf.mxu0
    %v3056 = vadd.f32 %v2860, %v3055
    %v3057 = vpop.f32.mrf.mxu0
    %v3058 = vpop.f32.mrf.mxu0
    %v3059 = vadd.f32 %v2860, %v3058
    %v3060 = vpop.f32.mrf.mxu0
    %3061 = vmatprep.mubr.bf16.mxu0 %v2798
    %3062 = vmatmul.mubr.bf16.gmra.mxu0 %v2797
    %v3063 = vpop.f32.mrf.mxu0
    %v3064 = vadd.f32 %v2860, %v3063
    %v3065 = vpop.f32.mrf.mxu0
    %v3066 = vpop.f32.mrf.mxu0
    %v3067 = vadd.f32 %v2860, %v3066
    %v3068 = vpop.f32.mrf.mxu0
    %3069 = vmatprep.mubr.bf16.mxu0 %v2800
    %3070 = vmatmul.mubr.bf16.gmra.mxu0 %v2799
    %v3071 = vpop.f32.mrf.mxu0
    %v3072 = vadd.f32 %v2860, %v3071
    %v3073 = vpop.f32.mrf.mxu0
    %v3074 = vpop.f32.mrf.mxu0
    %v3075 = vadd.f32 %v2860, %v3074
    %v3076 = vpop.f32.mrf.mxu0
    %3077 = vmatprep.mubr.bf16.mxu0 %v2802
    %3078 = vmatmul.mubr.bf16.gmra.mxu0 %v2801
    %v3079 = vpop.f32.mrf.mxu0
    %v3080 = vadd.f32 %v2860, %v3079
    %v3081 = vpop.f32.mrf.mxu0
    %v3082 = vpop.f32.mrf.mxu0
    %v3083 = vadd.f32 %v2860, %v3082
    %v3084 = vpop.f32.mrf.mxu0
    %3085 = vmatprep.mubr.bf16.mxu0 %v2804
    %3086 = vmatmul.mubr.bf16.gmra.mxu0 %v2803
    %v3087 = vpop.f32.mrf.mxu0
    %v3088 = vadd.f32 %v2860, %v3087
    %v3089 = vpop.f32.mrf.mxu0
    %v3090 = vpop.f32.mrf.mxu0
    %v3091 = vadd.f32 %v2860, %v3090
    %v3092 = vpop.f32.mrf.mxu0
    %3093 = vmatprep.mubr.bf16.mxu0 %v2806
    %3094 = vmatmul.mubr.bf16.gmra.mxu0 %v2805
    %v3095 = vpop.f32.mrf.mxu0
    %v3096 = vadd.f32 %v2860, %v3095
    %v3097 = vpop.f32.mrf.mxu0
    %v3098 = vpop.f32.mrf.mxu0
    %v3099 = vadd.f32 %v2860, %v3098
    %v3100 = vpop.f32.mrf.mxu0
    %3101 = vmatprep.mubr.bf16.mxu0 %v2808
    %3102 = vmatmul.mubr.bf16.gmra.mxu0 %v2807
    %v3103 = vpop.f32.mrf.mxu0
    %v3104 = vadd.f32 %v2860, %v3103
    %v3105 = vpop.f32.mrf.mxu0
    %v3106 = vpop.f32.mrf.mxu0
    %v3107 = vadd.f32 %v2860, %v3106
    %v3108 = vpop.f32.mrf.mxu0
    %3109 = vmatprep.mubr.bf16.mxu0 %v2810
    %3110 = vmatmul.mubr.bf16.gmra.mxu0 %v2809
    %v3111 = vpop.f32.mrf.mxu0
    %v3112 = vadd.f32 %v2860, %v3111
    %v3113 = vpop.f32.mrf.mxu0
    %v3114 = vpop.f32.mrf.mxu0
    %v3115 = vadd.f32 %v2860, %v3114
    %v3116 = vpop.f32.mrf.mxu0
    %3117 = vmatprep.mubr.bf16.mxu0 %v2812
    %3118 = vmatmul.mubr.bf16.gmra.mxu0 %v2811
    %v3119 = vpop.f32.mrf.mxu0
    %v3120 = vadd.f32 %v2860, %v3119
    %v3121 = vpop.f32.mrf.mxu0
    %v3122 = vpop.f32.mrf.mxu0
    %v3123 = vadd.f32 %v2860, %v3122
    %v3124 = vpop.f32.mrf.mxu0
    %3125 = vmatprep.mubr.bf16.mxu0 %v2814
    %3126 = vmatmul.mubr.bf16.gmra.mxu0 %v2813
    %v3127 = vpop.f32.mrf.mxu0
    %v3128 = vadd.f32 %v2860, %v3127
    %v3129 = vpop.f32.mrf.mxu0
    %v3130 = vpop.f32.mrf.mxu0
    %v3131 = vadd.f32 %v2860, %v3130
    %v3132 = vpop.f32.mrf.mxu0
    %3133 = vmatprep.mubr.bf16.mxu0 %v2816
    %3134 = vmatmul.mubr.bf16.gmra.mxu0 %v2815
    %v3135 = vpop.f32.mrf.mxu0
    %v3136 = vadd.f32 %v2860, %v3135
    %v3137 = vpop.f32.mrf.mxu0
    %v3138 = vpop.f32.mrf.mxu0
    %v3139 = vadd.f32 %v2860, %v3138
    %v3140 = vpop.f32.mrf.mxu0
    %3141 = vmatprep.mubr.bf16.mxu0 %v2818
    %3142 = vmatmul.mubr.bf16.gmra.mxu0 %v2817
    %v3143 = vpop.f32.mrf.mxu0
    %v3144 = vadd.f32 %v2860, %v3143
    %v3145 = vpop.f32.mrf.mxu0
    %v3146 = vpop.f32.mrf.mxu0
    %v3147 = vadd.f32 %v2860, %v3146
    %v3148 = vpop.f32.mrf.mxu0
    %3149 = vmatprep.mubr.bf16.mxu0 %v2820
    %3150 = vmatmul.mubr.bf16.gmra.mxu0 %v2819
    %v3151 = vpop.f32.mrf.mxu0
    %v3152 = vadd.f32 %v2860, %v3151
    %v3153 = vpop.f32.mrf.mxu0
    %v3154 = vpop.f32.mrf.mxu0
    %v3155 = vadd.f32 %v2860, %v3154
    %v3156 = vpop.f32.mrf.mxu0
    %3157 = vmatprep.mubr.bf16.mxu0 %v2822
    %3158 = vmatmul.mubr.bf16.gmra.mxu0 %v2821
    %v3159 = vpop.f32.mrf.mxu0
    %v3160 = vadd.f32 %v2860, %v3159
    %v3161 = vpop.f32.mrf.mxu0
    %v3162 = vpop.f32.mrf.mxu0
    %v3163 = vadd.f32 %v2860, %v3162
    %v3164 = vpop.f32.mrf.mxu0
    %3165 = vmatprep.mubr.bf16.mxu0 %v2824
    %3166 = vmatmul.mubr.bf16.gmra.mxu0 %v2823
    %v3167 = vpop.f32.mrf.mxu0
    %v3168 = vadd.f32 %v2860, %v3167
    %v3169 = vpop.f32.mrf.mxu0
    %v3170 = vpop.f32.mrf.mxu0
    %v3171 = vadd.f32 %v2860, %v3170
    %v3172 = vpop.f32.mrf.mxu0
    %3173 = vmatprep.mubr.bf16.mxu0 %v2826
    %3174 = vmatmul.mubr.bf16.gmra.mxu0 %v2825
    %v3175 = vpop.f32.mrf.mxu0
    %v3176 = vadd.f32 %v2860, %v3175
    %v3177 = vpop.f32.mrf.mxu0
    %v3178 = vpop.f32.mrf.mxu0
    %v3179 = vadd.f32 %v2860, %v3178
    %v3180 = vpop.f32.mrf.mxu0
    %3181 = vdwg.mxu0
    %v3182 = vxor.u32 %v2992, 2147483648
    %v3183 = vxor.u32 %v2995, 2147483648
    %v3184 = vxor.u32 %v3000, 2147483648
    %v3185 = vxor.u32 %v3003, 2147483648
    %v3186 = vxor.u32 %v3008, 2147483648
    %v3187 = vxor.u32 %v3011, 2147483648
    %v3188 = vxor.u32 %v3016, 2147483648
    %v3189 = vxor.u32 %v3019, 2147483648
    %v3190 = vxor.u32 %v3024, 2147483648
    %v3191 = vxor.u32 %v3027, 2147483648
    %v3192 = vxor.u32 %v3032, 2147483648
    %v3193 = vxor.u32 %v3035, 2147483648
    %v3194 = vxor.u32 %v3040, 2147483648
    %v3195 = vxor.u32 %v3043, 2147483648
    %v3196 = vxor.u32 %v3048, 2147483648
    %v3197 = vxor.u32 %v3051, 2147483648
    %v3198 = vxor.u32 %v3056, 2147483648
    %v3199 = vxor.u32 %v3059, 2147483648
    %v3200 = vxor.u32 %v3064, 2147483648
    %v3201 = vxor.u32 %v3067, 2147483648
    %v3202 = vxor.u32 %v3072, 2147483648
    %v3203 = vxor.u32 %v3075, 2147483648
    %v3204 = vxor.u32 %v3080, 2147483648
    %v3205 = vxor.u32 %v3083, 2147483648
    %v3206 = vxor.u32 %v3088, 2147483648
    %v3207 = vxor.u32 %v3091, 2147483648
    %v3208 = vxor.u32 %v3096, 2147483648
    %v3209 = vxor.u32 %v3099, 2147483648
    %v3210 = vxor.u32 %v3104, 2147483648
    %v3211 = vxor.u32 %v3107, 2147483648
    %v3212 = vxor.u32 %v3112, 2147483648
    %v3213 = vxor.u32 %v3115, 2147483648
    %v3214 = vxor.u32 %v3120, 2147483648
    %v3215 = vxor.u32 %v3123, 2147483648
    %v3216 = vxor.u32 %v3128, 2147483648
    %v3217 = vxor.u32 %v3131, 2147483648
    %v3218 = vxor.u32 %v3136, 2147483648
    %v3219 = vxor.u32 %v3139, 2147483648
    %v3220 = vxor.u32 %v3144, 2147483648
    %v3221 = vxor.u32 %v3147, 2147483648
    %v3222 = vxor.u32 %v3152, 2147483648
    %v3223 = vxor.u32 %v3155, 2147483648
    %v3224 = vxor.u32 %v3160, 2147483648
    %v3225 = vxor.u32 %v3163, 2147483648
    %v3226 = vxor.u32 %v3168, 2147483648
    %v3227 = vxor.u32 %v3171, 2147483648
    %v3228 = vxor.u32 %v3176, 2147483648
    %v3229 = vxor.u32 %v3179, 2147483648
    %v3230 = vmul.f32 %v3182, 1.442695
    %v3231 = vpow.pop %v3230
    %v3232 = vmul.f32 %v3183, 1.442695
    %v3233 = vpow.pop %v3232
    %v3234 = vmul.f32 %v3184, 1.442695
    %v3235 = vpow.pop %v3234
    %v3236 = vmul.f32 %v3185, 1.442695
    %v3237 = vpow.pop %v3236
    %v3238 = vmul.f32 %v3186, 1.442695
    %v3239 = vpow.pop %v3238
    %v3240 = vmul.f32 %v3187, 1.442695
    %v3241 = vpow.pop %v3240
    %v3242 = vmul.f32 %v3188, 1.442695
    %v3243 = vpow.pop %v3242
    %v3244 = vmul.f32 %v3189, 1.442695
    %v3245 = vpow.pop %v3244
    %v3246 = vmul.f32 %v3190, 1.442695
    %v3247 = vpow.pop %v3246
    %v3248 = vmul.f32 %v3191, 1.442695
    %v3249 = vpow.pop %v3248
    %v3250 = vmul.f32 %v3192, 1.442695
    %v3251 = vpow.pop %v3250
    %v3252 = vmul.f32 %v3193, 1.442695
    %v3253 = vpow.pop %v3252
    %v3254 = vmul.f32 %v3194, 1.442695
    %v3255 = vpow.pop %v3254
    %v3256 = vmul.f32 %v3195, 1.442695
    %v3257 = vpow.pop %v3256
    %v3258 = vmul.f32 %v3196, 1.442695
    %v3259 = vpow.pop %v3258
    %v3260 = vmul.f32 %v3197, 1.442695
    %v3261 = vpow.pop %v3260
    %v3262 = vmul.f32 %v3198, 1.442695
    %v3263 = vpow.pop %v3262
    %v3264 = vmul.f32 %v3199, 1.442695
    %v3265 = vpow.pop %v3264
    %v3266 = vmul.f32 %v3200, 1.442695
    %v3267 = vpow.pop %v3266
    %v3268 = vmul.f32 %v3201, 1.442695
    %v3269 = vpow.pop %v3268
    %v3270 = vmul.f32 %v3202, 1.442695
    %v3271 = vpow.pop %v3270
    %v3272 = vmul.f32 %v3203, 1.442695
    %v3273 = vpow.pop %v3272
    %v3274 = vmul.f32 %v3204, 1.442695
    %v3275 = vpow.pop %v3274
    %v3276 = vmul.f32 %v3205, 1.442695
    %v3277 = vpow.pop %v3276
    %v3278 = vmul.f32 %v3206, 1.442695
    %v3279 = vpow.pop %v3278
    %v3280 = vmul.f32 %v3207, 1.442695
    %v3281 = vpow.pop %v3280
    %v3282 = vmul.f32 %v3208, 1.442695
    %v3283 = vpow.pop %v3282
    %v3284 = vmul.f32 %v3209, 1.442695
    %v3285 = vpow.pop %v3284
    %v3286 = vmul.f32 %v3210, 1.442695
    %v3287 = vpow.pop %v3286
    %v3288 = vmul.f32 %v3211, 1.442695
    %v3289 = vpow.pop %v3288
    %v3290 = vmul.f32 %v3212, 1.442695
    %v3291 = vpow.pop %v3290
    %v3292 = vmul.f32 %v3213, 1.442695
    %v3293 = vpow.pop %v3292
    %v3294 = vmul.f32 %v3214, 1.442695
    %v3295 = vpow.pop %v3294
    %v3296 = vmul.f32 %v3215, 1.442695
    %v3297 = vpow.pop %v3296
    %v3298 = vmul.f32 %v3216, 1.442695
    %v3299 = vpow.pop %v3298
    %v3300 = vmul.f32 %v3217, 1.442695
    %v3301 = vpow.pop %v3300
    %v3302 = vmul.f32 %v3218, 1.442695
    %v3303 = vpow.pop %v3302
    %v3304 = vmul.f32 %v3219, 1.442695
    %v3305 = vpow.pop %v3304
    %v3306 = vmul.f32 %v3220, 1.442695
    %v3307 = vpow.pop %v3306
    %v3308 = vmul.f32 %v3221, 1.442695
    %v3309 = vpow.pop %v3308
    %v3310 = vmul.f32 %v3222, 1.442695
    %v3311 = vpow.pop %v3310
    %v3312 = vmul.f32 %v3223, 1.442695
    %v3313 = vpow.pop %v3312
    %v3314 = vmul.f32 %v3224, 1.442695
    %v3315 = vpow.pop %v3314
    %v3316 = vmul.f32 %v3225, 1.442695
    %v3317 = vpow.pop %v3316
    %v3318 = vmul.f32 %v3226, 1.442695
    %v3319 = vpow.pop %v3318
    %v3320 = vmul.f32 %v3227, 1.442695
    %v3321 = vpow.pop %v3320
    %v3322 = vmul.f32 %v3228, 1.442695
    %v3323 = vpow.pop %v3322
    %v3324 = vmul.f32 %v3229, 1.442695
    %v3325 = vpow.pop %v3324
    %v3326 = vadd.f32 %v3231, 1.0
    %v3327 = vadd.f32 %v3233, 1.0
    %v3328 = vadd.f32 %v3235, 1.0
    %v3329 = vadd.f32 %v3237, 1.0
    %v3330 = vadd.f32 %v3239, 1.0
    %v3331 = vadd.f32 %v3241, 1.0
    %v3332 = vadd.f32 %v3243, 1.0
    %v3333 = vadd.f32 %v3245, 1.0
    %v3334 = vadd.f32 %v3247, 1.0
    %v3335 = vadd.f32 %v3249, 1.0
    %v3336 = vadd.f32 %v3251, 1.0
    %v3337 = vadd.f32 %v3253, 1.0
    %v3338 = vadd.f32 %v3255, 1.0
    %v3339 = vadd.f32 %v3257, 1.0
    %v3340 = vadd.f32 %v3259, 1.0
    %v3341 = vadd.f32 %v3261, 1.0
    %v3342 = vadd.f32 %v3263, 1.0
    %v3343 = vadd.f32 %v3265, 1.0
    %v3344 = vadd.f32 %v3267, 1.0
    %v3345 = vadd.f32 %v3269, 1.0
    %v3346 = vadd.f32 %v3271, 1.0
    %v3347 = vadd.f32 %v3273, 1.0
    %v3348 = vadd.f32 %v3275, 1.0
    %v3349 = vadd.f32 %v3277, 1.0
    %v3350 = vadd.f32 %v3279, 1.0
    %v3351 = vadd.f32 %v3281, 1.0
    %v3352 = vadd.f32 %v3283, 1.0
    %v3353 = vadd.f32 %v3285, 1.0
    %v3354 = vadd.f32 %v3287, 1.0
    %v3355 = vadd.f32 %v3289, 1.0
    %v3356 = vadd.f32 %v3291, 1.0
    %v3357 = vadd.f32 %v3293, 1.0
    %v3358 = vadd.f32 %v3295, 1.0
    %v3359 = vadd.f32 %v3297, 1.0
    %v3360 = vadd.f32 %v3299, 1.0
    %v3361 = vadd.f32 %v3301, 1.0
    %v3362 = vadd.f32 %v3303, 1.0
    %v3363 = vadd.f32 %v3305, 1.0
    %v3364 = vadd.f32 %v3307, 1.0
    %v3365 = vadd.f32 %v3309, 1.0
    %v3366 = vadd.f32 %v3311, 1.0
    %v3367 = vadd.f32 %v3313, 1.0
    %v3368 = vadd.f32 %v3315, 1.0
    %v3369 = vadd.f32 %v3317, 1.0
    %v3370 = vadd.f32 %v3319, 1.0
    %v3371 = vadd.f32 %v3321, 1.0
    %v3372 = vadd.f32 %v3323, 1.0
    %v3373 = vadd.f32 %v3325, 1.0
    %v3374 = vrcp.pop %v3326
    %v3375 = vmul.f32 1.0, %v3374
    %v3376 = vrcp.pop %v3327
    %v3377 = vmul.f32 1.0, %v3376
    %v3378 = vrcp.pop %v3328
    %v3379 = vmul.f32 1.0, %v3378
    %v3380 = vrcp.pop %v3329
    %v3381 = vmul.f32 1.0, %v3380
    %v3382 = vrcp.pop %v3330
    %v3383 = vmul.f32 1.0, %v3382
    %v3384 = vrcp.pop %v3331
    %v3385 = vmul.f32 1.0, %v3384
    %v3386 = vrcp.pop %v3332
    %v3387 = vmul.f32 1.0, %v3386
    %v3388 = vrcp.pop %v3333
    %v3389 = vmul.f32 1.0, %v3388
    %v3390 = vrcp.pop %v3334
    %v3391 = vmul.f32 1.0, %v3390
    %v3392 = vrcp.pop %v3335
    %v3393 = vmul.f32 1.0, %v3392
    %v3394 = vrcp.pop %v3336
    %v3395 = vmul.f32 1.0, %v3394
    %v3396 = vrcp.pop %v3337
    %v3397 = vmul.f32 1.0, %v3396
    %v3398 = vrcp.pop %v3338
    %v3399 = vmul.f32 1.0, %v3398
    %v3400 = vrcp.pop %v3339
    %v3401 = vmul.f32 1.0, %v3400
    %v3402 = vrcp.pop %v3340
    %v3403 = vmul.f32 1.0, %v3402
    %v3404 = vrcp.pop %v3341
    %v3405 = vmul.f32 1.0, %v3404
    %v3406 = vrcp.pop %v3342
    %v3407 = vmul.f32 1.0, %v3406
    %v3408 = vrcp.pop %v3343
    %v3409 = vmul.f32 1.0, %v3408
    %v3410 = vrcp.pop %v3344
    %v3411 = vmul.f32 1.0, %v3410
    %v3412 = vrcp.pop %v3345
    %v3413 = vmul.f32 1.0, %v3412
    %v3414 = vrcp.pop %v3346
    %v3415 = vmul.f32 1.0, %v3414
    %v3416 = vrcp.pop %v3347
    %v3417 = vmul.f32 1.0, %v3416
    %v3418 = vrcp.pop %v3348
    %v3419 = vmul.f32 1.0, %v3418
    %v3420 = vrcp.pop %v3349
    %v3421 = vmul.f32 1.0, %v3420
    %v3422 = vrcp.pop %v3350
    %v3423 = vmul.f32 1.0, %v3422
    %v3424 = vrcp.pop %v3351
    %v3425 = vmul.f32 1.0, %v3424
    %v3426 = vrcp.pop %v3352
    %v3427 = vmul.f32 1.0, %v3426
    %v3428 = vrcp.pop %v3353
    %v3429 = vmul.f32 1.0, %v3428
    %v3430 = vrcp.pop %v3354
    %v3431 = vmul.f32 1.0, %v3430
    %v3432 = vrcp.pop %v3355
    %v3433 = vmul.f32 1.0, %v3432
    %v3434 = vrcp.pop %v3356
    %v3435 = vmul.f32 1.0, %v3434
    %v3436 = vrcp.pop %v3357
    %v3437 = vmul.f32 1.0, %v3436
    %v3438 = vrcp.pop %v3358
    %v3439 = vmul.f32 1.0, %v3438
    %v3440 = vrcp.pop %v3359
    %v3441 = vmul.f32 1.0, %v3440
    %v3442 = vrcp.pop %v3360
    %v3443 = vmul.f32 1.0, %v3442
    %v3444 = vrcp.pop %v3361
    %v3445 = vmul.f32 1.0, %v3444
    %v3446 = vrcp.pop %v3362
    %v3447 = vmul.f32 1.0, %v3446
    %v3448 = vrcp.pop %v3363
    %v3449 = vmul.f32 1.0, %v3448
    %v3450 = vrcp.pop %v3364
    %v3451 = vmul.f32 1.0, %v3450
    %v3452 = vrcp.pop %v3365
    %v3453 = vmul.f32 1.0, %v3452
    %v3454 = vrcp.pop %v3366
    %v3455 = vmul.f32 1.0, %v3454
    %v3456 = vrcp.pop %v3367
    %v3457 = vmul.f32 1.0, %v3456
    %v3458 = vrcp.pop %v3368
    %v3459 = vmul.f32 1.0, %v3458
    %v3460 = vrcp.pop %v3369
    %v3461 = vmul.f32 1.0, %v3460
    %v3462 = vrcp.pop %v3370
    %v3463 = vmul.f32 1.0, %v3462
    %v3464 = vrcp.pop %v3371
    %v3465 = vmul.f32 1.0, %v3464
    %v3466 = vrcp.pop %v3372
    %v3467 = vmul.f32 1.0, %v3466
    %v3468 = vrcp.pop %v3373
    %v3469 = vmul.f32 1.0, %v3468
    %vm3470 = vcmask 7168
    %3471 = vst.msk [vmem:[#allocation8] sm:$0xff] %vm3470, %v3375
    %3472 = vst.msk [vmem:[#allocation8 + $0x8] sm:$0xff] %vm3470, %v3377
    %3473 = vst.msk [vmem:[#allocation8 + $0x10] sm:$0xff] %vm3470, %v3379
    %3474 = vst.msk [vmem:[#allocation8 + $0x18] sm:$0xff] %vm3470, %v3381
    %3475 = vst.msk [vmem:[#allocation8 + $0x20] sm:$0xff] %vm3470, %v3383
    %3476 = vst.msk [vmem:[#allocation8 + $0x28] sm:$0xff] %vm3470, %v3385
    %3477 = vst.msk [vmem:[#allocation8 + $0x30] sm:$0xff] %vm3470, %v3387
    %3478 = vst.msk [vmem:[#allocation8 + $0x38] sm:$0xff] %vm3470, %v3389
    %3479 = vst.msk [vmem:[#allocation8 + $0x40] sm:$0xff] %vm3470, %v3391
    %3480 = vst.msk [vmem:[#allocation8 + $0x48] sm:$0xff] %vm3470, %v3393
    %3481 = vst.msk [vmem:[#allocation8 + $0x50] sm:$0xff] %vm3470, %v3395
    %3482 = vst.msk [vmem:[#allocation8 + $0x58] sm:$0xff] %vm3470, %v3397
    %3483 = vst.msk [vmem:[#allocation8 + $0x60] sm:$0xff] %vm3470, %v3399
    %3484 = vst.msk [vmem:[#allocation8 + $0x68] sm:$0xff] %vm3470, %v3401
    %3485 = vst.msk [vmem:[#allocation8 + $0x70] sm:$0xff] %vm3470, %v3403
    %3486 = vst.msk [vmem:[#allocation8 + $0x78] sm:$0xff] %vm3470, %v3405
    %3487 = vst.msk [vmem:[#allocation8 + $0x80] sm:$0xff] %vm3470, %v3407
    %3488 = vst.msk [vmem:[#allocation8 + $0x88] sm:$0xff] %vm3470, %v3409
    %3489 = vst.msk [vmem:[#allocation8 + $0x90] sm:$0xff] %vm3470, %v3411
    %3490 = vst.msk [vmem:[#allocation8 + $0x98] sm:$0xff] %vm3470, %v3413
    %3491 = vst.msk [vmem:[#allocation8 + $0xa0] sm:$0xff] %vm3470, %v3415
    %3492 = vst.msk [vmem:[#allocation8 + $0xa8] sm:$0xff] %vm3470, %v3417
    %3493 = vst.msk [vmem:[#allocation8 + $0xb0] sm:$0xff] %vm3470, %v3419
    %3494 = vst.msk [vmem:[#allocation8 + $0xb8] sm:$0xff] %vm3470, %v3421
    %3495 = vst.msk [vmem:[#allocation8 + $0xc0] sm:$0xff] %vm3470, %v3423
    %3496 = vst.msk [vmem:[#allocation8 + $0xc8] sm:$0xff] %vm3470, %v3425
    %3497 = vst.msk [vmem:[#allocation8 + $0xd0] sm:$0xff] %vm3470, %v3427
    %3498 = vst.msk [vmem:[#allocation8 + $0xd8] sm:$0xff] %vm3470, %v3429
    %3499 = vst.msk [vmem:[#allocation8 + $0xe0] sm:$0xff] %vm3470, %v3431
    %3500 = vst.msk [vmem:[#allocation8 + $0xe8] sm:$0xff] %vm3470, %v3433
    %3501 = vst.msk [vmem:[#allocation8 + $0xf0] sm:$0xff] %vm3470, %v3435
    %3502 = vst.msk [vmem:[#allocation8 + $0xf8] sm:$0xff] %vm3470, %v3437
    %3503 = vst.msk [vmem:[#allocation8 + $0x100] sm:$0xff] %vm3470, %v3439
    %3504 = vst.msk [vmem:[#allocation8 + $0x108] sm:$0xff] %vm3470, %v3441
    %3505 = vst.msk [vmem:[#allocation8 + $0x110] sm:$0xff] %vm3470, %v3443
    %3506 = vst.msk [vmem:[#allocation8 + $0x118] sm:$0xff] %vm3470, %v3445
    %3507 = vst.msk [vmem:[#allocation8 + $0x120] sm:$0xff] %vm3470, %v3447
    %3508 = vst.msk [vmem:[#allocation8 + $0x128] sm:$0xff] %vm3470, %v3449
    %3509 = vst.msk [vmem:[#allocation8 + $0x130] sm:$0xff] %vm3470, %v3451
    %3510 = vst.msk [vmem:[#allocation8 + $0x138] sm:$0xff] %vm3470, %v3453
    %3511 = vst.msk [vmem:[#allocation8 + $0x140] sm:$0xff] %vm3470, %v3455
    %3512 = vst.msk [vmem:[#allocation8 + $0x148] sm:$0xff] %vm3470, %v3457
    %3513 = vst.msk [vmem:[#allocation8 + $0x150] sm:$0xff] %vm3470, %v3459
    %3514 = vst.msk [vmem:[#allocation8 + $0x158] sm:$0xff] %vm3470, %v3461
    %3515 = vst.msk [vmem:[#allocation8 + $0x160] sm:$0xff] %vm3470, %v3463
    %3516 = vst.msk [vmem:[#allocation8 + $0x168] sm:$0xff] %vm3470, %v3465
    %3517 = vst.msk [vmem:[#allocation8 + $0x170] sm:$0xff] %vm3470, %v3467
    %3518 = vst.msk [vmem:[#allocation8 + $0x178] sm:$0xff] %vm3470, %v3469
    // Predicated region
    $region42: #{tpu_custom_call.1} parent=1 // pred_check
      _
    $region43: #{tpu_custom_call.1} parent=1 // pred_check_branch
      %3520 = sbr.rel (0) target = $region45
    $region44: #{tpu_custom_call.1} parent=1 // pred_region
      // Predicated region
      $region46: #{tpu_custom_call.1} parent=44 // pred_check
        _
      $region47: #{tpu_custom_call.1} parent=44 // pred_check_branch
        %3522 = sbr.rel (0) target = $region49
      $region48: #{tpu_custom_call.1} parent=44 // pred_region
        // Predicated region
        $region50: #{tpu_custom_call.1} parent=48 // pred_check
          _
        $region51: #{tpu_custom_call.1} parent=48 // pred_check_branch
          %3524 = sbr.rel (0) target = $region53
        $region52: #{tpu_custom_call.1} parent=48 // pred_region
          // Predicated region
          $region65: #{tpu_custom_call.1} parent=52 // pred_check
            _
          $region66: #{tpu_custom_call.1} parent=52 // pred_check_branch
            %3614 = sbr.rel (0) target = $region68
          $region67: #{tpu_custom_call.1} parent=52 // pred_region
            loop: start=0, step=1, limit=1
            $region69: #{tpu_custom_call.1} parent=67 // loop_pre_header
              _
            $region70: #{tpu_custom_call.1} parent=67 // loop_header
              %s3616 = sphi 0, %s3620
              %p3617 = scmp.ge.s32.totalorder %s3616, 1
              %s3621 = sphi [#allocation8], [#allocation8]
              %s3622 = sphi %s7, %s7
            $region71: #{tpu_custom_call.1} parent=67 // loop_header_branch
              %3619 = sbr.rel (%p3617) target = $region75
            $region72: #{tpu_custom_call.1} parent=67 // loop_body
              %v3623 = vld [vmem:[%s3621] sm:$0xff]
              %3624 = vst [vmem:[%s3622] sm:$0xff] %v3623
              %v3625 = vld [vmem:[%s3621 + $0x8] sm:$0xff]
              %3626 = vst [vmem:[%s3622 + $0x8] sm:$0xff] %v3625
              %v3627 = vld [vmem:[%s3621 + $0x10] sm:$0xff]
              %3628 = vst [vmem:[%s3622 + $0x10] sm:$0xff] %v3627
              %v3629 = vld [vmem:[%s3621 + $0x18] sm:$0xff]
              %3630 = vst [vmem:[%s3622 + $0x18] sm:$0xff] %v3629
              %v3631 = vld [vmem:[%s3621 + $0x20] sm:$0xff]
              %3632 = vst [vmem:[%s3622 + $0x20] sm:$0xff] %v3631
              %v3633 = vld [vmem:[%s3621 + $0x28] sm:$0xff]
              %3634 = vst [vmem:[%s3622 + $0x28] sm:$0xff] %v3633
              %v3635 = vld [vmem:[%s3621 + $0x30] sm:$0xff]
              %3636 = vst [vmem:[%s3622 + $0x30] sm:$0xff] %v3635
              %v3637 = vld [vmem:[%s3621 + $0x38] sm:$0xff]
              %3638 = vst [vmem:[%s3622 + $0x38] sm:$0xff] %v3637
              %v3639 = vld [vmem:[%s3621 + $0x40] sm:$0xff]
              %3640 = vst [vmem:[%s3622 + $0x40] sm:$0xff] %v3639
              %v3641 = vld [vmem:[%s3621 + $0x48] sm:$0xff]
              %3642 = vst [vmem:[%s3622 + $0x48] sm:$0xff] %v3641
              %v3643 = vld [vmem:[%s3621 + $0x50] sm:$0xff]
              %3644 = vst [vmem:[%s3622 + $0x50] sm:$0xff] %v3643
              %v3645 = vld [vmem:[%s3621 + $0x58] sm:$0xff]
              %3646 = vst [vmem:[%s3622 + $0x58] sm:$0xff] %v3645
              %v3647 = vld [vmem:[%s3621 + $0x60] sm:$0xff]
              %3648 = vst [vmem:[%s3622 + $0x60] sm:$0xff] %v3647
              %v3649 = vld [vmem:[%s3621 + $0x68] sm:$0xff]
              %3650 = vst [vmem:[%s3622 + $0x68] sm:$0xff] %v3649
              %v3651 = vld [vmem:[%s3621 + $0x70] sm:$0xff]
              %3652 = vst [vmem:[%s3622 + $0x70] sm:$0xff] %v3651
              %v3653 = vld [vmem:[%s3621 + $0x78] sm:$0xff]
              %3654 = vst [vmem:[%s3622 + $0x78] sm:$0xff] %v3653
              %v3655 = vld [vmem:[%s3621 + $0x80] sm:$0xff]
              %3656 = vst [vmem:[%s3622 + $0x80] sm:$0xff] %v3655
              %v3657 = vld [vmem:[%s3621 + $0x88] sm:$0xff]
              %3658 = vst [vmem:[%s3622 + $0x88] sm:$0xff] %v3657
              %v3659 = vld [vmem:[%s3621 + $0x90] sm:$0xff]
              %3660 = vst [vmem:[%s3622 + $0x90] sm:$0xff] %v3659
              %v3661 = vld [vmem:[%s3621 + $0x98] sm:$0xff]
              %3662 = vst [vmem:[%s3622 + $0x98] sm:$0xff] %v3661
              %v3663 = vld [vmem:[%s3621 + $0xa0] sm:$0xff]
              %3664 = vst [vmem:[%s3622 + $0xa0] sm:$0xff] %v3663
              %v3665 = vld [vmem:[%s3621 + $0xa8] sm:$0xff]
              %3666 = vst [vmem:[%s3622 + $0xa8] sm:$0xff] %v3665
              %v3667 = vld [vmem:[%s3621 + $0xb0] sm:$0xff]
              %3668 = vst [vmem:[%s3622 + $0xb0] sm:$0xff] %v3667
              %v3669 = vld [vmem:[%s3621 + $0xb8] sm:$0xff]
              %3670 = vst [vmem:[%s3622 + $0xb8] sm:$0xff] %v3669
              %v3671 = vld [vmem:[%s3621 + $0xc0] sm:$0xff]
              %3672 = vst [vmem:[%s3622 + $0xc0] sm:$0xff] %v3671
              %v3673 = vld [vmem:[%s3621 + $0xc8] sm:$0xff]
              %3674 = vst [vmem:[%s3622 + $0xc8] sm:$0xff] %v3673
              %v3675 = vld [vmem:[%s3621 + $0xd0] sm:$0xff]
              %3676 = vst [vmem:[%s3622 + $0xd0] sm:$0xff] %v3675
              %v3677 = vld [vmem:[%s3621 + $0xd8] sm:$0xff]
              %3678 = vst [vmem:[%s3622 + $0xd8] sm:$0xff] %v3677
              %v3679 = vld [vmem:[%s3621 + $0xe0] sm:$0xff]
              %3680 = vst [vmem:[%s3622 + $0xe0] sm:$0xff] %v3679
              %v3681 = vld [vmem:[%s3621 + $0xe8] sm:$0xff]
              %3682 = vst [vmem:[%s3622 + $0xe8] sm:$0xff] %v3681
              %v3683 = vld [vmem:[%s3621 + $0xf0] sm:$0xff]
              %3684 = vst [vmem:[%s3622 + $0xf0] sm:$0xff] %v3683
              %v3685 = vld [vmem:[%s3621 + $0xf8] sm:$0xff]
              %3686 = vst [vmem:[%s3622 + $0xf8] sm:$0xff] %v3685
              %v3687 = vld [vmem:[%s3621 + $0x100] sm:$0xff]
              %3688 = vst [vmem:[%s3622 + $0x100] sm:$0xff] %v3687
              %v3689 = vld [vmem:[%s3621 + $0x108] sm:$0xff]
              %3690 = vst [vmem:[%s3622 + $0x108] sm:$0xff] %v3689
              %v3691 = vld [vmem:[%s3621 + $0x110] sm:$0xff]
              %3692 = vst [vmem:[%s3622 + $0x110] sm:$0xff] %v3691
              %v3693 = vld [vmem:[%s3621 + $0x118] sm:$0xff]
              %3694 = vst [vmem:[%s3622 + $0x118] sm:$0xff] %v3693
              %v3695 = vld [vmem:[%s3621 + $0x120] sm:$0xff]
              %3696 = vst [vmem:[%s3622 + $0x120] sm:$0xff] %v3695
              %v3697 = vld [vmem:[%s3621 + $0x128] sm:$0xff]
              %3698 = vst [vmem:[%s3622 + $0x128] sm:$0xff] %v3697
            $region73: #{tpu_custom_call.1} parent=67 // loop_footer
              %s3620 = sadd.s32 1, %s3616
            $region74: #{tpu_custom_call.1} parent=67 // loop_footer_branch
              %3615 = sbr.rel target = $region70
            $region75: #{tpu_custom_call.1} parent=67 // loop_exit
              _
          $region68: #{tpu_custom_call.1} parent=52 // pred_fallthru
            _
          // Predicated region
          $region76: #{tpu_custom_call.1} parent=52 // pred_check
            _
          $region77: #{tpu_custom_call.1} parent=52 // pred_check_branch
            %3700 = sbr.rel target = $region79
          $region78: #{tpu_custom_call.1} parent=52 // pred_region
            _
          $region79: #{tpu_custom_call.1} parent=52 // pred_fallthru
            _
        $region53: #{tpu_custom_call.1} parent=48 // pred_fallthru
          _
        // Predicated region
        $region54: #{tpu_custom_call.1} parent=48 // pred_check
          _
        $region55: #{tpu_custom_call.1} parent=48 // pred_check_branch
          %3526 = sbr.rel target = $region57
        $region56: #{tpu_custom_call.1} parent=48 // pred_region
          %s3528 = ssub.s32 256, 1
          loop: start=0, step=1, limit=1
          $region58: #{tpu_custom_call.1} parent=56 // loop_pre_header
            _
          $region59: #{tpu_custom_call.1} parent=56 // loop_header
            %s3530 = sphi 0, %s3534
            %p3531 = scmp.ge.s32.totalorder %s3530, 1
            %s3535 = sphi [#allocation8], [#allocation8]
            %s3536 = sphi %s7, %s7
          $region60: #{tpu_custom_call.1} parent=56 // loop_header_branch
            %3533 = sbr.rel (%p3531) target = $region64
          $region61: #{tpu_custom_call.1} parent=56 // loop_body
            %v3537 = vld [vmem:[%s3535] sm:%s3528]
            %3538 = vst [vmem:[%s3536] sm:%s3528] %v3537
            %v3539 = vld [vmem:[%s3535 + $0x8] sm:%s3528]
            %3540 = vst [vmem:[%s3536 + $0x8] sm:%s3528] %v3539
            %v3541 = vld [vmem:[%s3535 + $0x10] sm:%s3528]
            %3542 = vst [vmem:[%s3536 + $0x10] sm:%s3528] %v3541
            %v3543 = vld [vmem:[%s3535 + $0x18] sm:%s3528]
            %3544 = vst [vmem:[%s3536 + $0x18] sm:%s3528] %v3543
            %v3545 = vld [vmem:[%s3535 + $0x20] sm:%s3528]
            %3546 = vst [vmem:[%s3536 + $0x20] sm:%s3528] %v3545
            %v3547 = vld [vmem:[%s3535 + $0x28] sm:%s3528]
            %3548 = vst [vmem:[%s3536 + $0x28] sm:%s3528] %v3547
            %v3549 = vld [vmem:[%s3535 + $0x30] sm:%s3528]
            %3550 = vst [vmem:[%s3536 + $0x30] sm:%s3528] %v3549
            %v3551 = vld [vmem:[%s3535 + $0x38] sm:%s3528]
            %3552 = vst [vmem:[%s3536 + $0x38] sm:%s3528] %v3551
            %v3553 = vld [vmem:[%s3535 + $0x40] sm:%s3528]
            %3554 = vst [vmem:[%s3536 + $0x40] sm:%s3528] %v3553
            %v3555 = vld [vmem:[%s3535 + $0x48] sm:%s3528]
            %3556 = vst [vmem:[%s3536 + $0x48] sm:%s3528] %v3555
            %v3557 = vld [vmem:[%s3535 + $0x50] sm:%s3528]
            %3558 = vst [vmem:[%s3536 + $0x50] sm:%s3528] %v3557
            %v3559 = vld [vmem:[%s3535 + $0x58] sm:%s3528]
            %3560 = vst [vmem:[%s3536 + $0x58] sm:%s3528] %v3559
            %v3561 = vld [vmem:[%s3535 + $0x60] sm:%s3528]
            %3562 = vst [vmem:[%s3536 + $0x60] sm:%s3528] %v3561
            %v3563 = vld [vmem:[%s3535 + $0x68] sm:%s3528]
            %3564 = vst [vmem:[%s3536 + $0x68] sm:%s3528] %v3563
            %v3565 = vld [vmem:[%s3535 + $0x70] sm:%s3528]
            %3566 = vst [vmem:[%s3536 + $0x70] sm:%s3528] %v3565
            %v3567 = vld [vmem:[%s3535 + $0x78] sm:%s3528]
            %3568 = vst [vmem:[%s3536 + $0x78] sm:%s3528] %v3567
            %v3569 = vld [vmem:[%s3535 + $0x80] sm:%s3528]
            %3570 = vst [vmem:[%s3536 + $0x80] sm:%s3528] %v3569
            %v3571 = vld [vmem:[%s3535 + $0x88] sm:%s3528]
            %3572 = vst [vmem:[%s3536 + $0x88] sm:%s3528] %v3571
            %v3573 = vld [vmem:[%s3535 + $0x90] sm:%s3528]
            %3574 = vst [vmem:[%s3536 + $0x90] sm:%s3528] %v3573
            %v3575 = vld [vmem:[%s3535 + $0x98] sm:%s3528]
            %3576 = vst [vmem:[%s3536 + $0x98] sm:%s3528] %v3575
            %v3577 = vld [vmem:[%s3535 + $0xa0] sm:%s3528]
            %3578 = vst [vmem:[%s3536 + $0xa0] sm:%s3528] %v3577
            %v3579 = vld [vmem:[%s3535 + $0xa8] sm:%s3528]
            %3580 = vst [vmem:[%s3536 + $0xa8] sm:%s3528] %v3579
            %v3581 = vld [vmem:[%s3535 + $0xb0] sm:%s3528]
            %3582 = vst [vmem:[%s3536 + $0xb0] sm:%s3528] %v3581
            %v3583 = vld [vmem:[%s3535 + $0xb8] sm:%s3528]
            %3584 = vst [vmem:[%s3536 + $0xb8] sm:%s3528] %v3583
            %v3585 = vld [vmem:[%s3535 + $0xc0] sm:%s3528]
            %3586 = vst [vmem:[%s3536 + $0xc0] sm:%s3528] %v3585
            %v3587 = vld [vmem:[%s3535 + $0xc8] sm:%s3528]
            %3588 = vst [vmem:[%s3536 + $0xc8] sm:%s3528] %v3587
            %v3589 = vld [vmem:[%s3535 + $0xd0] sm:%s3528]
            %3590 = vst [vmem:[%s3536 + $0xd0] sm:%s3528] %v3589
            %v3591 = vld [vmem:[%s3535 + $0xd8] sm:%s3528]
            %3592 = vst [vmem:[%s3536 + $0xd8] sm:%s3528] %v3591
            %v3593 = vld [vmem:[%s3535 + $0xe0] sm:%s3528]
            %3594 = vst [vmem:[%s3536 + $0xe0] sm:%s3528] %v3593
            %v3595 = vld [vmem:[%s3535 + $0xe8] sm:%s3528]
            %3596 = vst [vmem:[%s3536 + $0xe8] sm:%s3528] %v3595
            %v3597 = vld [vmem:[%s3535 + $0xf0] sm:%s3528]
            %3598 = vst [vmem:[%s3536 + $0xf0] sm:%s3528] %v3597
            %v3599 = vld [vmem:[%s3535 + $0xf8] sm:%s3528]
            %3600 = vst [vmem:[%s3536 + $0xf8] sm:%s3528] %v3599
            %v3601 = vld [vmem:[%s3535 + $0x100] sm:%s3528]
            %3602 = vst [vmem:[%s3536 + $0x100] sm:%s3528] %v3601
            %v3603 = vld [vmem:[%s3535 + $0x108] sm:%s3528]
            %3604 = vst [vmem:[%s3536 + $0x108] sm:%s3528] %v3603
            %v3605 = vld [vmem:[%s3535 + $0x110] sm:%s3528]
            %3606 = vst [vmem:[%s3536 + $0x110] sm:%s3528] %v3605
            %v3607 = vld [vmem:[%s3535 + $0x118] sm:%s3528]
            %3608 = vst [vmem:[%s3536 + $0x118] sm:%s3528] %v3607
            %v3609 = vld [vmem:[%s3535 + $0x120] sm:%s3528]
            %3610 = vst [vmem:[%s3536 + $0x120] sm:%s3528] %v3609
            %v3611 = vld [vmem:[%s3535 + $0x128] sm:%s3528]
            %3612 = vst [vmem:[%s3536 + $0x128] sm:%s3528] %v3611
          $region62: #{tpu_custom_call.1} parent=56 // loop_footer
            %s3534 = sadd.s32 1, %s3530
          $region63: #{tpu_custom_call.1} parent=56 // loop_footer_branch
            %3529 = sbr.rel target = $region59
          $region64: #{tpu_custom_call.1} parent=56 // loop_exit
            _
        $region57: #{tpu_custom_call.1} parent=48 // pred_fallthru
          _
      $region49: #{tpu_custom_call.1} parent=44 // pred_fallthru
        _
      %3701 = vnop
    $region45: #{tpu_custom_call.1} parent=1 // pred_fallthru
      _
    // Predicated region
    $region80: #{tpu_custom_call.1} parent=1 // pred_check
      _
    $region81: #{tpu_custom_call.1} parent=1 // pred_check_branch
      %3703 = sbr.rel (0) target = $region83
    $region82: #{tpu_custom_call.1} parent=1 // pred_region
      _
    $region83: #{tpu_custom_call.1} parent=1 // pred_fallthru
      _
    %3704 = vsyncpa [#allocation4], 1
    %3705 = vsyncpa [#allocation6], 1

</llo_original>
